<compile_context>
chip_gen: v7x
topology: tpu7x:2x2x1
jax: 0.10.0
libtpu: 0.0.40
codegen_flags: <defaults>
</compile_context>

<pallas_src>
import functools

import jax
import jax.numpy as jnp
from jax.experimental import pallas as pl
from jax.experimental.pallas import tpu as pltpu


# ---------------------------------------------------------------------------
# Kernel
# ---------------------------------------------------------------------------
def mlp_kernel(x_ref,
               w1_ref, t1_ref,
               w2_ref, t2_ref,
               w3_ref, b3_ref,
               w4_ref, b4_ref,
               o_ref,
               *, epi_dtype):
    # x tile: (tile_b, D), bf16.
    x = x_ref[...]

    # fc1 (+ folded bn1) -> relu.  bf16 MXU matmul, f32 accumulate, then the
    # epilogue (bias add + relu) runs in epi_dtype (bf16 on v6e/v7x, f32 on v5e).
    h1 = jnp.dot(x, w1_ref[...], preferred_element_type=jnp.float32)
    h1 = jnp.maximum(h1.astype(epi_dtype) + t1_ref[...], 0.0).astype(jnp.bfloat16)

    # fc2 (+ folded bn2) -> relu.
    h2 = jnp.dot(h1, w2_ref[...], preferred_element_type=jnp.float32)
    h2 = jnp.maximum(h2.astype(epi_dtype) + t2_ref[...], 0.0).astype(jnp.bfloat16)

    # fc3 -> relu, kept f32 (feeds the f32 VPU/XLU fc4 path below).
    h3 = jnp.dot(h2, w3_ref[...], preferred_element_type=jnp.float32) + b3_ref[...]
    h3 = jnp.maximum(h3, 0.0)

    # fc4: output width 1 -> off the MXU.  VPU multiply + lane reduction;
    # w4 is a (1, 64) f32 row.
    o_ref[...] = jnp.sum(h3 * w4_ref[...], axis=-1, keepdims=True) + b4_ref[...]


# ---------------------------------------------------------------------------
# Wrapper
# ---------------------------------------------------------------------------
def _epilogue_dtype():
    """bf16 epilogue on v6e/v7x (bf16-native VPU), f32 on v5-generation chips."""
    try:
        kind = jax.devices()[0].device_kind.lower()
    except Exception:  # pragma: no cover - defensive
        kind = ""
    return jnp.float32 if "v5" in kind else jnp.bfloat16


def _pick_tile(B, tile_b, min_grid_steps=4):
    """Largest tile <= tile_b that keeps >= min_grid_steps grid steps when possible."""
    tile_b = min(tile_b, B)
    while tile_b > 128 and B // tile_b < min_grid_steps:
        tile_b //= 2
    return tile_b


def simple_cnn_forward(x, kparams, *, tile_b=1024):
    B, D = x.shape
    tile_b = _pick_tile(B, tile_b)
    assert B % tile_b == 0, "batch must be divisible by the batch tile"
    # bf16 x tile: sublane packing requires a multiple of 16 unless full-extent.
    assert tile_b == B or tile_b % 16 == 0, "batch tile must be a multiple of 16"

    (w1, t1, w2, t2, w3, b3, w4, b4) = kparams

    epi_dtype = _epilogue_dtype()
    x = x.astype(jnp.bfloat16)
    t1 = t1.astype(epi_dtype)
    t2 = t2.astype(epi_dtype)
    params = (w1, t1, w2, t2, w3, b3, w4, b4)

    def batch_spec(last):
        # Tile only the batch axis; features stay whole on the lane axis.
        return pl.BlockSpec((tile_b, last), lambda i: (i, 0))

    def full_spec(a):
        # Whole array resident every step (constant index_map).
        return pl.BlockSpec(a.shape, lambda i: (0, 0))

    in_specs = [batch_spec(D)] + [full_spec(a) for a in params]
    out_specs = pl.BlockSpec((tile_b, 1), lambda i: (i, 0))

    flops = 2 * B * (D * 256 + 256 * 128 + 128 * 64 + 64 * 1)
    bytes_accessed = (
        int(x.size) * 2                                   # bf16 input tiles
        + B * 4                                           # f32 output
        + sum(int(a.size) * a.dtype.itemsize for a in params)
    )

    kernel = functools.partial(mlp_kernel, epi_dtype=epi_dtype)

    return pl.pallas_call(
        kernel,
        out_shape=jax.ShapeDtypeStruct((B, 1), jnp.float32),
        grid_spec=pltpu.PrefetchScalarGridSpec(
            num_scalar_prefetch=0,
            grid=(B // tile_b,),
            in_specs=in_specs,
            out_specs=out_specs,
        ),
        compiler_params=pltpu.CompilerParams(
            dimension_semantics=("parallel",)),
        cost_estimate=pl.CostEstimate(
            flops=flops, transcendentals=0, bytes_accessed=bytes_accessed),
    )(x, *params)


# ---------------------------------------------------------------------------
# Parameters (PyTorch-equivalent) + BN folding
# ---------------------------------------------------------------------------
def init_params(key, input_dim):
    """Deterministic synthetic params matching SimpleCNN (eval-mode BN)."""
    dims = [(input_dim, 256), (256, 128), (128, 64), (64, 1)]
    keys = iter(jax.random.split(key, 16))

    def linear(d_in, d_out):
        # nn.Linear: weight (out, in), bias (out,).  We store W^T = (in, out).
        bound = 1.0 / jnp.sqrt(jnp.float32(d_in))
        w = jax.random.uniform(next(keys), (d_in, d_out), jnp.float32, -bound, bound)
        b = jax.random.uniform(next(keys), (1, d_out), jnp.float32, -bound, bound)
        return w, b

    def bn(n):
        gamma = 1.0 + 0.1 * jax.random.normal(next(keys), (1, n), jnp.float32)
        beta = 0.1 * jax.random.normal(next(keys), (1, n), jnp.float32)
        mean = 0.1 * jax.random.normal(next(keys), (1, n), jnp.float32)
        var = 1.0 + 0.1 * jax.random.uniform(next(keys), (1, n), jnp.float32)
        return gamma, beta, mean, var

    w1, b1 = linear(*dims[0]); bn1 = bn(256)
    w2, b2 = linear(*dims[1]); bn2 = bn(128)
    w3, b3 = linear(*dims[2])
    w4, b4 = linear(*dims[3])
    return dict(w1=w1, b1=b1, bn1=bn1, w2=w2, b2=b2, bn2=bn2,
                w3=w3, b3=b3, w4=w4, b4=b4)


def fold_params(raw, eps=1e-5):
    """Fold eval-mode BN into weights/biases; matmul weights to bf16."""
    # TODO(synk): training-mode BatchNorm (batch-stat normalization + running-
    # stat updates) is not implemented; this is the eval-mode forward.
    g1, be1, m1, v1 = raw["bn1"]
    s1 = g1 / jnp.sqrt(v1 + eps)
    w1f = (raw["w1"] * s1).astype(jnp.bfloat16)
    t1f = raw["b1"] * s1 + (be1 - m1 * s1)          # f32; cast to epi dtype later

    g2, be2, m2, v2 = raw["bn2"]
    s2 = g2 / jnp.sqrt(v2 + eps)
    w2f = (raw["w2"] * s2).astype(jnp.bfloat16)
    t2f = raw["b2"] * s2 + (be2 - m2 * s2)

    w3f = raw["w3"].astype(jnp.bfloat16)
    b3 = raw["b3"]

    w4_row = raw["w4"].reshape(1, 64)               # (64,1) -> (1,64), f32 VPU path
    b4 = raw["b4"]                                  # (1,1)

    return (w1f, t1f, w2f, t2f, w3f, b3, w4_row, b4)


def reference_forward(x, raw, eps=1e-5):
    """Pure-JAX f32 reference following the PyTorch forward exactly."""
    def bn(z, p):
        g, b, m, v = p
        return (z - m) / jnp.sqrt(v + eps) * g + b

    h = jnp.maximum(bn(x @ raw["w1"] + raw["b1"], raw["bn1"]), 0.0)
    h = jnp.maximum(bn(h @ raw["w2"] + raw["b2"], raw["bn2"]), 0.0)
    h = jnp.maximum(h @ raw["w3"] + raw["b3"], 0.0)
    return h @ raw["w4"] + raw["b4"]


# ---------------------------------------------------------------------------
# Demo / correctness check
# ---------------------------------------------------------------------------
if __name__ == "__main__":
    key = jax.random.PRNGKey(0)
    k_x, k_p = jax.random.split(key)

    # 4096 rows, tile_b=1024 -> 4 parallel grid steps (>= 2 per v7x TensorCore).
    B, input_dim = 4096, 16
    x = jax.random.normal(k_x, (B, input_dim), jnp.float32)

    raw = init_params(k_p, input_dim)
    kparams = fold_params(raw)

    out = simple_cnn_forward(x, kparams, tile_b=1024)
    out = jax.block_until_ready(out)

    ref = reference_forward(x, raw)
    assert out.shape == (B, 1)
    max_err = float(jnp.max(jnp.abs(out - ref)))
    # bf16 matmul inputs (+ bf16 epilogue on v6e/v7x) -> relaxed tolerance
    # vs the pure-f32 reference.
    assert jnp.allclose(out, ref, atol=5e-2, rtol=5e-2), \
        f"mismatch vs JAX reference (max abs err {max_err})"

    print("KERNEL_OK")
</pallas_src>

<mosaic_0001>
module attributes {stable_mosaic.version = 11 : i64} {
  func.func @mlp_kernel(%arg0: i32, %arg1: memref<1024x16xbf16, #tpu.memory_space<vmem>>, %arg2: memref<16x256xbf16, #tpu.memory_space<vmem>>, %arg3: memref<1x256xbf16, #tpu.memory_space<vmem>>, %arg4: memref<256x128xbf16, #tpu.memory_space<vmem>>, %arg5: memref<1x128xbf16, #tpu.memory_space<vmem>>, %arg6: memref<128x64xbf16, #tpu.memory_space<vmem>>, %arg7: memref<1x64xf32, #tpu.memory_space<vmem>>, %arg8: memref<1x64xf32, #tpu.memory_space<vmem>>, %arg9: memref<1x1xf32, #tpu.memory_space<vmem>>, %arg10: memref<1024x1xf32, #tpu.memory_space<vmem>>) attributes {dimension_semantics = [#tpu.dimension_semantics<parallel>], iteration_bounds = array<i64: 4>, scalar_prefetch = 0 : i64, scratch_operands = 0 : i64, tpu.core_type = #tpu.core_type<tc>, window_params = [{transform_indices = @transform_0, window_bounds = array<i64: 1024, 16>}, {pipeline_mode = #tpu.pipeline_mode<synchronous>, transform_indices = @transform_1, window_bounds = array<i64: 16, 256>}, {pipeline_mode = #tpu.pipeline_mode<synchronous>, transform_indices = @transform_2, window_bounds = array<i64: 1, 256>}, {pipeline_mode = #tpu.pipeline_mode<synchronous>, transform_indices = @transform_3, window_bounds = array<i64: 256, 128>}, {pipeline_mode = #tpu.pipeline_mode<synchronous>, transform_indices = @transform_4, window_bounds = array<i64: 1, 128>}, {pipeline_mode = #tpu.pipeline_mode<synchronous>, transform_indices = @transform_5, window_bounds = array<i64: 128, 64>}, {pipeline_mode = #tpu.pipeline_mode<synchronous>, transform_indices = @transform_6, window_bounds = array<i64: 1, 64>}, {pipeline_mode = #tpu.pipeline_mode<synchronous>, transform_indices = @transform_7, window_bounds = array<i64: 1, 64>}, {pipeline_mode = #tpu.pipeline_mode<synchronous>, transform_indices = @transform_8, window_bounds = array<i64: 1, 1>}, {transform_indices = @transform_9, window_bounds = array<i64: 1024, 1>}]} {
    %c0 = arith.constant 0 : index
    %c0_0 = arith.constant 0 : index
    %0 = vector.load %arg1[%c0, %c0_0] : memref<1024x16xbf16, #tpu.memory_space<vmem>>, vector<1024x16xbf16>
    %c0_1 = arith.constant 0 : index
    %c0_2 = arith.constant 0 : index
    %1 = vector.load %arg2[%c0_1, %c0_2] : memref<16x256xbf16, #tpu.memory_space<vmem>>, vector<16x256xbf16>
    %cst = arith.constant dense<0.000000e+00> : vector<1024x256xf32>
    %2 = tpu.matmul %0, %1, %cst {dimension_numbers = #tpu.dot_dimension_numbers<[1], [0], [0], [1], [0, 0, 1, 1], [], []>} : vector<1024x16xbf16>, vector<16x256xbf16>, vector<1024x256xf32> -> vector<1024x256xf32>
    %3 = arith.truncf %2 : vector<1024x256xf32> to vector<1024x256xbf16>
    %c0_3 = arith.constant 0 : index
    %c0_4 = arith.constant 0 : index
    %4 = vector.load %arg3[%c0_3, %c0_4] : memref<1x256xbf16, #tpu.memory_space<vmem>>, vector<1x256xbf16>
    %5 = vector.broadcast %4 : vector<1x256xbf16> to vector<1024x256xbf16>
    %6 = arith.addf %3, %5 : vector<1024x256xbf16>
    %cst_5 = arith.constant 0.000000e+00 : bf16
    %7 = vector.broadcast %cst_5 : bf16 to vector<1024x256xbf16>
    %8 = arith.maximumf %6, %7 : vector<1024x256xbf16>
    %c0_6 = arith.constant 0 : index
    %c0_7 = arith.constant 0 : index
    %9 = vector.load %arg4[%c0_6, %c0_7] : memref<256x128xbf16, #tpu.memory_space<vmem>>, vector<256x128xbf16>
    %cst_8 = arith.constant dense<0.000000e+00> : vector<1024x128xf32>
    %10 = tpu.matmul %8, %9, %cst_8 {dimension_numbers = #tpu.dot_dimension_numbers<[1], [0], [0], [1], [0, 0, 1, 1], [], []>} : vector<1024x256xbf16>, vector<256x128xbf16>, vector<1024x128xf32> -> vector<1024x128xf32>
    %11 = arith.truncf %10 : vector<1024x128xf32> to vector<1024x128xbf16>
    %c0_9 = arith.constant 0 : index
    %c0_10 = arith.constant 0 : index
    %12 = vector.load %arg5[%c0_9, %c0_10] : memref<1x128xbf16, #tpu.memory_space<vmem>>, vector<1x128xbf16>
    %13 = vector.broadcast %12 : vector<1x128xbf16> to vector<1024x128xbf16>
    %14 = arith.addf %11, %13 : vector<1024x128xbf16>
    %cst_11 = arith.constant 0.000000e+00 : bf16
    %15 = vector.broadcast %cst_11 : bf16 to vector<1024x128xbf16>
    %16 = arith.maximumf %14, %15 : vector<1024x128xbf16>
    %c0_12 = arith.constant 0 : index
    %c0_13 = arith.constant 0 : index
    %17 = vector.load %arg6[%c0_12, %c0_13] : memref<128x64xbf16, #tpu.memory_space<vmem>>, vector<128x64xbf16>
    %cst_14 = arith.constant dense<0.000000e+00> : vector<1024x64xf32>
    %18 = tpu.matmul %16, %17, %cst_14 {dimension_numbers = #tpu.dot_dimension_numbers<[1], [0], [0], [1], [0, 0, 1, 1], [], []>} : vector<1024x128xbf16>, vector<128x64xbf16>, vector<1024x64xf32> -> vector<1024x64xf32>
    %c0_15 = arith.constant 0 : index
    %c0_16 = arith.constant 0 : index
    %19 = vector.load %arg7[%c0_15, %c0_16] : memref<1x64xf32, #tpu.memory_space<vmem>>, vector<1x64xf32>
    %20 = vector.broadcast %19 : vector<1x64xf32> to vector<1024x64xf32>
    %21 = arith.addf %18, %20 : vector<1024x64xf32>
    %cst_17 = arith.constant 0.000000e+00 : f32
    %22 = vector.broadcast %cst_17 : f32 to vector<1024x64xf32>
    %23 = arith.maximumf %21, %22 : vector<1024x64xf32>
    %c0_18 = arith.constant 0 : index
    %c0_19 = arith.constant 0 : index
    %24 = vector.load %arg8[%c0_18, %c0_19] : memref<1x64xf32, #tpu.memory_space<vmem>>, vector<1x64xf32>
    %25 = vector.broadcast %24 : vector<1x64xf32> to vector<1024x64xf32>
    %26 = arith.mulf %23, %25 : vector<1024x64xf32>
    %cst_20 = arith.constant dense<0.000000e+00> : vector<1024xf32>
    %27 = vector.multi_reduction <add>, %26, %cst_20 [1] : vector<1024x64xf32> to vector<1024xf32>
    %28 = vector.shape_cast %27 : vector<1024xf32> to vector<1024x1xf32>
    %c0_21 = arith.constant 0 : index
    %c0_22 = arith.constant 0 : index
    %29 = vector.load %arg9[%c0_21, %c0_22] : memref<1x1xf32, #tpu.memory_space<vmem>>, vector<1x1xf32>
    %30 = vector.broadcast %29 : vector<1x1xf32> to vector<1024x1xf32>
    %31 = arith.addf %28, %30 : vector<1024x1xf32>
    %c0_23 = arith.constant 0 : index
    %c0_24 = arith.constant 0 : index
    %32 = vector.load %arg10[%c0_23, %c0_24] : memref<1024x1xf32, #tpu.memory_space<vmem>>, vector<1024x1xf32>
    tpu.vector_store %arg10[%c0_23, %c0_24], %31 {strides = array<i32>} : memref<1024x1xf32, #tpu.memory_space<vmem>>, vector<1024x1xf32>,
    return
  }
  func.func @transform_0(%arg0: i32) -> (i32, i32) {
    %c0_i32 = arith.constant 0 : i32
    %c0_i32_0 = arith.constant 0 : i32
    return %arg0, %c0_i32 : i32, i32
  }
  func.func @transform_1(%arg0: i32) -> (i32, i32) {
    %c0_i32 = arith.constant 0 : i32
    %c0_i32_0 = arith.constant 0 : i32
    %c0_i32_1 = arith.constant 0 : i32
    return %c0_i32, %c0_i32_0 : i32, i32
  }
  func.func @transform_2(%arg0: i32) -> (i32, i32) {
    %c0_i32 = arith.constant 0 : i32
    %c0_i32_0 = arith.constant 0 : i32
    %c0_i32_1 = arith.constant 0 : i32
    return %c0_i32, %c0_i32_0 : i32, i32
  }
  func.func @transform_3(%arg0: i32) -> (i32, i32) {
    %c0_i32 = arith.constant 0 : i32
    %c0_i32_0 = arith.constant 0 : i32
    %c0_i32_1 = arith.constant 0 : i32
    return %c0_i32, %c0_i32_0 : i32, i32
  }
  func.func @transform_4(%arg0: i32) -> (i32, i32) {
    %c0_i32 = arith.constant 0 : i32
    %c0_i32_0 = arith.constant 0 : i32
    %c0_i32_1 = arith.constant 0 : i32
    return %c0_i32, %c0_i32_0 : i32, i32
  }
  func.func @transform_5(%arg0: i32) -> (i32, i32) {
    %c0_i32 = arith.constant 0 : i32
    %c0_i32_0 = arith.constant 0 : i32
    %c0_i32_1 = arith.constant 0 : i32
    return %c0_i32, %c0_i32_0 : i32, i32
  }
  func.func @transform_6(%arg0: i32) -> (i32, i32) {
    %c0_i32 = arith.constant 0 : i32
    %c0_i32_0 = arith.constant 0 : i32
    %c0_i32_1 = arith.constant 0 : i32
    return %c0_i32, %c0_i32_0 : i32, i32
  }
  func.func @transform_7(%arg0: i32) -> (i32, i32) {
    %c0_i32 = arith.constant 0 : i32
    %c0_i32_0 = arith.constant 0 : i32
    %c0_i32_1 = arith.constant 0 : i32
    return %c0_i32, %c0_i32_0 : i32, i32
  }
  func.func @transform_8(%arg0: i32) -> (i32, i32) {
    %c0_i32 = arith.constant 0 : i32
    %c0_i32_0 = arith.constant 0 : i32
    %c0_i32_1 = arith.constant 0 : i32
    return %c0_i32, %c0_i32_0 : i32, i32
  }
  func.func @transform_9(%arg0: i32) -> (i32, i32) {
    %c0_i32 = arith.constant 0 : i32
    %c0_i32_0 = arith.constant 0 : i32
    return %arg0, %c0_i32 : i32, i32
  }
}

</mosaic_0001>

<llo_original>
// kernel: tpu_custom_call.1
$region0: #{tpu_custom_call.1}
  #allocation0 [shape = 'u32[]', space=smem, size = 0x4, offset = 0x4, fixed_abs, tag = 'smem constant byte address 0x4 - core index']
  #allocation1 [shape = 'u32[144,128]{1,0:T(1,128)}', space=vmem, size = 0x12000, scoped, tag = 'internal scratch']
  #allocation2 [shape = 'f32[1,1]{1,0:T(1,128)S(1)}', space=vmem, size = 0x200, scoped, tag = 'scoped memory for tpu_custom_call.1']
  %s0 = inlined_call_operand.vmem [shape: bf16[4096,16], index: 0, kind: input, shape index: {}]
  %s1 = inlined_call_operand.hbm [shape: bf16[16,256], index: 1, kind: input, shape index: {}]
  %s2 = inlined_call_operand.hbm [shape: bf16[1,256], index: 2, kind: input, shape index: {}]
  %s3 = inlined_call_operand.hbm [shape: bf16[256,128], index: 3, kind: input, shape index: {}]
  %s4 = inlined_call_operand.hbm [shape: bf16[1,128], index: 4, kind: input, shape index: {}]
  %s5 = inlined_call_operand.vmem [shape: bf16[128,64], index: 5, kind: input, shape index: {}]
  %s6 = inlined_call_operand.hbm [shape: f32[1,64], index: 6, kind: input, shape index: {}]
  %s7 = inlined_call_operand.hbm [shape: f32[1,64], index: 7, kind: input, shape index: {}]
  %s8 = inlined_call_operand.<no memory space> [shape: f32[1,1], index: 8, kind: input, shape index: {}]
  %s9 = inlined_call_operand.vmem [shape: f32[4096,1], index: 9, kind: output, shape index: {}]
  %s10 = sld [smem:[#allocation0]]
  $region93: #{tpu_custom_call.1} parent=0
    _
  %s12 = ssub.s32 1, %s10
  %s13 = scalar_select 0, %s12, %s10
  %v14 = vstv %s8
  %15 = vst [vmem:[#allocation2] sm:$0x1] %v14
  $region1: #{tpu_custom_call.1} parent=0
    #allocation3 [shape = 'u8[8192]{0}', space=vmem, size = 0x2000, scoped, tag = 'input window, operand 1, single buffered']
    #allocation4 [shape = 's32[2]{0}', space=sflag, size = 0x8, scoped, tag = 'scoped memory for tpu_custom_call.1']
    #allocation5 [shape = 'u8[1024]{0}', space=vmem, size = 0x400, scoped, tag = 'input window, operand 2, single buffered']
    #allocation6 [shape = 's32[1]{0}', space=sflag, size = 0x4, scoped, tag = 'scoped memory for tpu_custom_call.1']
    #allocation7 [shape = 'u8[65536]{0}', space=vmem, size = 0x10000, scoped, tag = 'input window, operand 3, single buffered']
    #allocation8 [shape = 'u8[512]{0}', space=vmem, size = 0x400, scoped, tag = 'input window, operand 4, single buffered']
    #allocation9 [shape = 's32[1]{0}', space=sflag, size = 0x4, scoped, tag = 'scoped memory for tpu_custom_call.1']
    #allocation10 [shape = 'u8[512]{0}', space=vmem, size = 0x400, scoped, tag = 'input window, operand 6, single buffered']
    #allocation11 [shape = 'u8[512]{0}', space=vmem, size = 0x400, scoped, tag = 'input window, operand 7, single buffered']
    #allocation12 [shape = 's32[1]{0}', space=sflag, size = 0x4, scoped, tag = 'scoped memory for tpu_custom_call.1']
    %16 = vsyncpa [#allocation4], 0
    %17 = vsyncpa [#allocation6], 0
    %18 = vsyncpa [#allocation9], 0
    %19 = vsyncpa [#allocation12], 0
    loop: start=0, step=1, limit=6
    $region2: #{tpu_custom_call.1} parent=1 // loop_pre_header
      _
    $region3: #{tpu_custom_call.1} parent=1 // loop_header
      %s21 = sphi 0, %s25
      %p22 = scmp.ge.s32.totalorder %s21, 6
      %s31 = sphi 0, %s33
      %s34 = sphi 0, %s31
      %s35 = sphi 0, %s34
      %s51 = sphi 0, %s35
      %s55 = sphi 0, %s55
      %s57 = sphi 0, %s55
      %s58 = sphi 0, %s57
      %s72 = sphi 0, %s58
      %s76 = sphi 0, %s76
      %s78 = sphi 0, %s76
      %s79 = sphi 0, %s78
      %s93 = sphi 0, %s79
      %s97 = sphi 0, %s97
      %s99 = sphi 0, %s97
      %s100 = sphi 0, %s99
      %s114 = sphi 0, %s100
      %s118 = sphi 0, %s118
      %s120 = sphi 0, %s118
      %s121 = sphi 0, %s120
      %s135 = sphi 0, %s121
      %s139 = sphi 0, %s139
      %s141 = sphi 0, %s139
      %s142 = sphi 0, %s141
      %s156 = sphi 0, %s142
      %s160 = sphi 0, %s160
      %s162 = sphi 0, %s160
      %s163 = sphi 0, %s162
      %s177 = sphi 0, %s163
      %s181 = sphi 0, %s181
      %s183 = sphi 0, %s181
      %s184 = sphi 0, %s183
      %s198 = sphi 0, %s184
      %s202 = sphi 0, %s202
      %s204 = sphi 0, %s202
      %s205 = sphi 0, %s204
      %s219 = sphi 0, %s205
      %s225 = sphi 0, %s227
      %s228 = sphi 0, %s225
      %s229 = sphi 0, %s228
      %s245 = sphi 0, %s229
    $region4: #{tpu_custom_call.1} parent=1 // loop_header_branch
      %24 = sbr.rel (%p22) target = $region8
    $region5: #{tpu_custom_call.1} parent=1 // loop_body
      %s26 = ssub.s32 %s21, 1
      %s27 = ssub.s32 %s21, 2
      %s28 = sadd.s32 %s21, 1
      %s29 = ssub.s32 %s21, %s28
      %p30 = scmp.eq.s32.totalorder %s29, 0
      %s32 = sadd.s32 %s31, 1
      %s33 = scalar_select %p30, %s31, %s32
      %p36 = pneg %p30
      %p37 = scmp.eq.s32.totalorder %s21, 3
      %p38 = por %p36, %p37
      %p39 = scmp.ne.s32.totalorder %s31, %s34
      %p40 = scmp.eq.s32.totalorder %s21, 0
      %p41 = por %p39, %p40
      %p42 = scmp.ne.s32.totalorder %s31, %s34
      %p43 = scmp.eq.s32.totalorder %s26, 3
      %p44 = por %p42, %p43
      %p45 = scmp.ne.s32.totalorder %s34, %s35
      %p46 = scmp.eq.s32.totalorder %s26, 0
      %p47 = por %p45, %p46
      %p48 = scmp.ne.s32.totalorder %s34, %s35
      %p49 = scmp.eq.s32.totalorder %s27, 3
      %p50 = por %p48, %p49
      %p52 = scmp.ne.s32.totalorder %s35, %s51
      %p53 = scmp.eq.s32.totalorder %s27, 0
      %p54 = por %p52, %p53
      %s56 = sadd.s32 %s55, 1
      %p59 = scmp.eq.s32.totalorder %s21, 3
      %p60 = scmp.ne.s32.totalorder %s55, %s57
      %p61 = scmp.eq.s32.totalorder %s21, 0
      %p62 = por %p60, %p61
      %p63 = scmp.ne.s32.totalorder %s55, %s57
      %p64 = scmp.eq.s32.totalorder %s26, 3
      %p65 = por %p63, %p64
      %p66 = scmp.ne.s32.totalorder %s57, %s58
      %p67 = scmp.eq.s32.totalorder %s26, 0
      %p68 = por %p66, %p67
      %p69 = scmp.ne.s32.totalorder %s57, %s58
      %p70 = scmp.eq.s32.totalorder %s27, 3
      %p71 = por %p69, %p70
      %p73 = scmp.ne.s32.totalorder %s58, %s72
      %p74 = scmp.eq.s32.totalorder %s27, 0
      %p75 = por %p73, %p74
      %s77 = sadd.s32 %s76, 1
      %p80 = scmp.eq.s32.totalorder %s21, 3
      %p81 = scmp.ne.s32.totalorder %s76, %s78
      %p82 = scmp.eq.s32.totalorder %s21, 0
      %p83 = por %p81, %p82
      %p84 = scmp.ne.s32.totalorder %s76, %s78
      %p85 = scmp.eq.s32.totalorder %s26, 3
      %p86 = por %p84, %p85
      %p87 = scmp.ne.s32.totalorder %s78, %s79
      %p88 = scmp.eq.s32.totalorder %s26, 0
      %p89 = por %p87, %p88
      %p90 = scmp.ne.s32.totalorder %s78, %s79
      %p91 = scmp.eq.s32.totalorder %s27, 3
      %p92 = por %p90, %p91
      %p94 = scmp.ne.s32.totalorder %s79, %s93
      %p95 = scmp.eq.s32.totalorder %s27, 0
      %p96 = por %p94, %p95
      %s98 = sadd.s32 %s97, 1
      %p101 = scmp.eq.s32.totalorder %s21, 3
      %p102 = scmp.ne.s32.totalorder %s97, %s99
      %p103 = scmp.eq.s32.totalorder %s21, 0
      %p104 = por %p102, %p103
      %p105 = scmp.ne.s32.totalorder %s97, %s99
      %p106 = scmp.eq.s32.totalorder %s26, 3
      %p107 = por %p105, %p106
      %p108 = scmp.ne.s32.totalorder %s99, %s100
      %p109 = scmp.eq.s32.totalorder %s26, 0
      %p110 = por %p108, %p109
      %p111 = scmp.ne.s32.totalorder %s99, %s100
      %p112 = scmp.eq.s32.totalorder %s27, 3
      %p113 = por %p111, %p112
      %p115 = scmp.ne.s32.totalorder %s100, %s114
      %p116 = scmp.eq.s32.totalorder %s27, 0
      %p117 = por %p115, %p116
      %s119 = sadd.s32 %s118, 1
      %p122 = scmp.eq.s32.totalorder %s21, 3
      %p123 = scmp.ne.s32.totalorder %s118, %s120
      %p124 = scmp.eq.s32.totalorder %s21, 0
      %p125 = por %p123, %p124
      %p126 = scmp.ne.s32.totalorder %s118, %s120
      %p127 = scmp.eq.s32.totalorder %s26, 3
      %p128 = por %p126, %p127
      %p129 = scmp.ne.s32.totalorder %s120, %s121
      %p130 = scmp.eq.s32.totalorder %s26, 0
      %p131 = por %p129, %p130
      %p132 = scmp.ne.s32.totalorder %s120, %s121
      %p133 = scmp.eq.s32.totalorder %s27, 3
      %p134 = por %p132, %p133
      %p136 = scmp.ne.s32.totalorder %s121, %s135
      %p137 = scmp.eq.s32.totalorder %s27, 0
      %p138 = por %p136, %p137
      %s140 = sadd.s32 %s139, 1
      %p143 = scmp.eq.s32.totalorder %s21, 3
      %p144 = scmp.ne.s32.totalorder %s139, %s141
      %p145 = scmp.eq.s32.totalorder %s21, 0
      %p146 = por %p144, %p145
      %p147 = scmp.ne.s32.totalorder %s139, %s141
      %p148 = scmp.eq.s32.totalorder %s26, 3
      %p149 = por %p147, %p148
      %p150 = scmp.ne.s32.totalorder %s141, %s142
      %p151 = scmp.eq.s32.totalorder %s26, 0
      %p152 = por %p150, %p151
      %p153 = scmp.ne.s32.totalorder %s141, %s142
      %p154 = scmp.eq.s32.totalorder %s27, 3
      %p155 = por %p153, %p154
      %p157 = scmp.ne.s32.totalorder %s142, %s156
      %p158 = scmp.eq.s32.totalorder %s27, 0
      %p159 = por %p157, %p158
      %s161 = sadd.s32 %s160, 1
      %p164 = scmp.eq.s32.totalorder %s21, 3
      %p165 = scmp.ne.s32.totalorder %s160, %s162
      %p166 = scmp.eq.s32.totalorder %s21, 0
      %p167 = por %p165, %p166
      %p168 = scmp.ne.s32.totalorder %s160, %s162
      %p169 = scmp.eq.s32.totalorder %s26, 3
      %p170 = por %p168, %p169
      %p171 = scmp.ne.s32.totalorder %s162, %s163
      %p172 = scmp.eq.s32.totalorder %s26, 0
      %p173 = por %p171, %p172
      %p174 = scmp.ne.s32.totalorder %s162, %s163
      %p175 = scmp.eq.s32.totalorder %s27, 3
      %p176 = por %p174, %p175
      %p178 = scmp.ne.s32.totalorder %s163, %s177
      %p179 = scmp.eq.s32.totalorder %s27, 0
      %p180 = por %p178, %p179
      %s182 = sadd.s32 %s181, 1
      %p185 = scmp.eq.s32.totalorder %s21, 3
      %p186 = scmp.ne.s32.totalorder %s181, %s183
      %p187 = scmp.eq.s32.totalorder %s21, 0
      %p188 = por %p186, %p187
      %p189 = scmp.ne.s32.totalorder %s181, %s183
      %p190 = scmp.eq.s32.totalorder %s26, 3
      %p191 = por %p189, %p190
      %p192 = scmp.ne.s32.totalorder %s183, %s184
      %p193 = scmp.eq.s32.totalorder %s26, 0
      %p194 = por %p192, %p193
      %p195 = scmp.ne.s32.totalorder %s183, %s184
      %p196 = scmp.eq.s32.totalorder %s27, 3
      %p197 = por %p195, %p196
      %p199 = scmp.ne.s32.totalorder %s184, %s198
      %p200 = scmp.eq.s32.totalorder %s27, 0
      %p201 = por %p199, %p200
      %s203 = sadd.s32 %s202, 1
      %p206 = scmp.eq.s32.totalorder %s21, 3
      %p207 = scmp.ne.s32.totalorder %s202, %s204
      %p208 = scmp.eq.s32.totalorder %s21, 0
      %p209 = por %p207, %p208
      %p210 = scmp.ne.s32.totalorder %s202, %s204
      %p211 = scmp.eq.s32.totalorder %s26, 3
      %p212 = por %p210, %p211
      %p213 = scmp.ne.s32.totalorder %s204, %s205
      %p214 = scmp.eq.s32.totalorder %s26, 0
      %p215 = por %p213, %p214
      %p216 = scmp.ne.s32.totalorder %s204, %s205
      %p217 = scmp.eq.s32.totalorder %s27, 3
      %p218 = por %p216, %p217
      %p220 = scmp.ne.s32.totalorder %s205, %s219
      %p221 = scmp.eq.s32.totalorder %s27, 0
      %p222 = por %p220, %p221
      %s223 = ssub.s32 %s21, %s28
      %p224 = scmp.eq.s32.totalorder %s223, 0
      %s226 = sadd.s32 %s225, 1
      %s227 = scalar_select %p224, %s225, %s226
      %p230 = pneg %p224
      %p231 = scmp.eq.s32.totalorder %s21, 3
      %p232 = por %p230, %p231
      %p233 = scmp.ne.s32.totalorder %s225, %s228
      %p234 = scmp.eq.s32.totalorder %s21, 0
      %p235 = por %p233, %p234
      %p236 = scmp.ne.s32.totalorder %s225, %s228
      %p237 = scmp.eq.s32.totalorder %s26, 3
      %p238 = por %p236, %p237
      %p239 = scmp.ne.s32.totalorder %s228, %s229
      %p240 = scmp.eq.s32.totalorder %s26, 0
      %p241 = por %p239, %p240
      %p242 = scmp.ne.s32.totalorder %s228, %s229
      %p243 = scmp.eq.s32.totalorder %s27, 3
      %p244 = por %p242, %p243
      %p246 = scmp.ne.s32.totalorder %s229, %s245
      %p247 = scmp.eq.s32.totalorder %s27, 0
      %p248 = por %p246, %p247
      %p249 = scmp.le.s32.totalorder 1, %s21
      %p250 = scmp.lt.s32.totalorder %s21, 5
      %p251 = pnand %p249, %p250
      %p252 = pneg %p251
      // Predicated region
      $region9: #{tpu_custom_call.1} parent=5 // pred_check
        _
      $region10: #{tpu_custom_call.1} parent=5 // pred_check_branch
        %254 = sbr.rel (%p251) target = $region12
      $region11: #{tpu_custom_call.1} parent=5 // pred_region
        %s255 = ssub.s32 %s21, 1
        // Predicated region
        $region13: #{tpu_custom_call.1} parent=11 // pred_check
          %p256 = pneg %p68
        $region14: #{tpu_custom_call.1} parent=11 // pred_check_branch
          %258 = sbr.rel (%p256) target = $region16
        $region15: #{tpu_custom_call.1} parent=11 // pred_region
          %s260 = ssub.s32 256, 256
          %261 = vsyncadd [#allocation4], %s260
          %s262 = sshll.u32 [#allocation3], 4
          %s263 = int_to_ptr.vmem [resolvable:$true] %s262
          %268 = dma.hbm_to_vmem [thread:$0]  %s1, 256, %s263, [#allocation4], 128, 128, 8
        $region16: #{tpu_custom_call.1} parent=11 // pred_fallthru
          _
        // Predicated region
        $region17: #{tpu_custom_call.1} parent=11 // pred_check
          %p269 = pneg %p89
        $region18: #{tpu_custom_call.1} parent=11 // pred_check_branch
          %271 = sbr.rel (%p269) target = $region20
        $region19: #{tpu_custom_call.1} parent=11 // pred_region
          %s273 = ssub.s32 32, 32
          %274 = vsyncadd [#allocation6], %s273
          %s276 = sshll.u32 [#allocation5], 4
          %s277 = int_to_ptr.vmem [resolvable:$true] %s276
          %279 = dma.hbm_to_vmem [thread:$0]  %s2, 32, %s277, [#allocation6]
        $region20: #{tpu_custom_call.1} parent=11 // pred_fallthru
          _
        // Predicated region
        $region21: #{tpu_custom_call.1} parent=11 // pred_check
          %p280 = pneg %p110
        $region22: #{tpu_custom_call.1} parent=11 // pred_check_branch
          %282 = sbr.rel (%p280) target = $region24
        $region23: #{tpu_custom_call.1} parent=11 // pred_region
          %s284 = ssub.s32 2048, 2048
          %285 = vsyncadd [#allocation6], %s284
          %s286 = sshll.u32 [#allocation7], 4
          %s287 = int_to_ptr.vmem [resolvable:$true] %s286
          %292 = dma.hbm_to_vmem [thread:$0]  %s3, 2048, %s287, [#allocation6], 64, 64, 4
        $region24: #{tpu_custom_call.1} parent=11 // pred_fallthru
          _
        // Predicated region
        $region25: #{tpu_custom_call.1} parent=11 // pred_check
          %p293 = pneg %p131
        $region26: #{tpu_custom_call.1} parent=11 // pred_check_branch
          %295 = sbr.rel (%p293) target = $region28
        $region27: #{tpu_custom_call.1} parent=11 // pred_region
          %s297 = ssub.s32 16, 16
          %298 = vsyncadd [#allocation9], %s297
          %s300 = sshll.u32 [#allocation8], 4
          %s301 = int_to_ptr.vmem [resolvable:$true] %s300
          %303 = dma.hbm_to_vmem [thread:$0]  %s4, 16, %s301, [#allocation9]
        $region28: #{tpu_custom_call.1} parent=11 // pred_fallthru
          _
        // Predicated region
        $region29: #{tpu_custom_call.1} parent=11 // pred_check
          %p304 = pneg %p152
        $region30: #{tpu_custom_call.1} parent=11 // pred_check_branch
          %306 = sbr.rel (%p304) target = $region32
        $region31: #{tpu_custom_call.1} parent=11 // pred_region
          _
        $region32: #{tpu_custom_call.1} parent=11 // pred_fallthru
          _
        // Predicated region
        $region33: #{tpu_custom_call.1} parent=11 // pred_check
          %p307 = pneg %p173
        $region34: #{tpu_custom_call.1} parent=11 // pred_check_branch
          %309 = sbr.rel (%p307) target = $region36
        $region35: #{tpu_custom_call.1} parent=11 // pred_region
          %s311 = ssub.s32 16, 16
          %312 = vsyncadd [#allocation9], %s311
          %s314 = sshll.u32 [#allocation10], 4
          %s315 = int_to_ptr.vmem [resolvable:$true] %s314
          %317 = dma.hbm_to_vmem [thread:$0]  %s6, 16, %s315, [#allocation9]
        $region36: #{tpu_custom_call.1} parent=11 // pred_fallthru
          _
        // Predicated region
        $region37: #{tpu_custom_call.1} parent=11 // pred_check
          %p318 = pneg %p194
        $region38: #{tpu_custom_call.1} parent=11 // pred_check_branch
          %320 = sbr.rel (%p318) target = $region40
        $region39: #{tpu_custom_call.1} parent=11 // pred_region
          %s322 = ssub.s32 16, 16
          %323 = vsyncadd [#allocation12], %s322
          %s325 = sshll.u32 [#allocation11], 4
          %s326 = int_to_ptr.vmem [resolvable:$true] %s325
          %328 = dma.hbm_to_vmem [thread:$0]  %s7, 16, %s326, [#allocation12]
        $region40: #{tpu_custom_call.1} parent=11 // pred_fallthru
          _
        // Predicated region
        $region41: #{tpu_custom_call.1} parent=11 // pred_check
          %p329 = pneg %p215
        $region42: #{tpu_custom_call.1} parent=11 // pred_check_branch
          %331 = sbr.rel (%p329) target = $region44
        $region43: #{tpu_custom_call.1} parent=11 // pred_region
          _
        $region44: #{tpu_custom_call.1} parent=11 // pred_fallthru
          _
      $region12: #{tpu_custom_call.1} parent=5 // pred_fallthru
        _
      %p332 = scmp.lt.s32.totalorder %s21, 4
      // Predicated region
      $region45: #{tpu_custom_call.1} parent=5 // pred_check
        %p333 = pneg %p332
      $region46: #{tpu_custom_call.1} parent=5 // pred_check_branch
        %335 = sbr.rel (%p333) target = $region48
      $region47: #{tpu_custom_call.1} parent=5 // pred_region
        // Predicated region
        $region49: #{tpu_custom_call.1} parent=47 // pred_check
          %p336 = pneg %p41
        $region50: #{tpu_custom_call.1} parent=47 // pred_check_branch
          %338 = sbr.rel (%p336) target = $region52
        $region51: #{tpu_custom_call.1} parent=47 // pred_region
          %s339 = smul.u32 128, %s21
          %p340 = scmp.lt.s32.totalorder %s339, 511
          %s341 = scalar_select %p340, %s339, 511
          %s342 = smul.addr %s341, 4
          %s343 = scalar_lea.vmem %s0, %s342
          %s344 = smul.u32 128, %s21
        $region52: #{tpu_custom_call.1} parent=47 // pred_fallthru
          _
      $region48: #{tpu_custom_call.1} parent=5 // pred_fallthru
        _
      %p345 = scmp.le.s32.totalorder 1, %s21
      %p346 = scmp.lt.s32.totalorder %s21, 5
      %p347 = pnand %p345, %p346
      %p348 = pneg %p347
      // Predicated region
      $region53: #{tpu_custom_call.1} parent=5 // pred_check
        _
      $region54: #{tpu_custom_call.1} parent=5 // pred_check_branch
        %350 = sbr.rel (%p347) target = $region56
      $region55: #{tpu_custom_call.1} parent=5 // pred_region
        %s351 = ssub.s32 %s21, 1
        // Predicated region
        $region57: #{tpu_custom_call.1} parent=55 // pred_check
          %p352 = pneg %p68
        $region58: #{tpu_custom_call.1} parent=55 // pred_check_branch
          %354 = sbr.rel (%p352) target = $region60
        $region59: #{tpu_custom_call.1} parent=55 // pred_region
          %355 = dma.done [#allocation4], 256
        $region60: #{tpu_custom_call.1} parent=55 // pred_fallthru
          _
        // Predicated region
        $region61: #{tpu_custom_call.1} parent=55 // pred_check
          %p356 = pneg %p89
        $region62: #{tpu_custom_call.1} parent=55 // pred_check_branch
          %358 = sbr.rel (%p356) target = $region64
        $region63: #{tpu_custom_call.1} parent=55 // pred_region
          %359 = dma.done [#allocation6], 32
        $region64: #{tpu_custom_call.1} parent=55 // pred_fallthru
          _
        // Predicated region
        $region65: #{tpu_custom_call.1} parent=55 // pred_check
          %p360 = pneg %p110
        $region66: #{tpu_custom_call.1} parent=55 // pred_check_branch
          %362 = sbr.rel (%p360) target = $region68
        $region67: #{tpu_custom_call.1} parent=55 // pred_region
          %363 = dma.done [#allocation6], 2048
        $region68: #{tpu_custom_call.1} parent=55 // pred_fallthru
          _
        // Predicated region
        $region69: #{tpu_custom_call.1} parent=55 // pred_check
          %p364 = pneg %p131
        $region70: #{tpu_custom_call.1} parent=55 // pred_check_branch
          %366 = sbr.rel (%p364) target = $region72
        $region71: #{tpu_custom_call.1} parent=55 // pred_region
          %367 = dma.done [#allocation9], 16
        $region72: #{tpu_custom_call.1} parent=55 // pred_fallthru
          _
        // Predicated region
        $region73: #{tpu_custom_call.1} parent=55 // pred_check
          %p368 = pneg %p173
        $region74: #{tpu_custom_call.1} parent=55 // pred_check_branch
          %370 = sbr.rel (%p368) target = $region76
        $region75: #{tpu_custom_call.1} parent=55 // pred_region
          %371 = dma.done [#allocation9], 16
        $region76: #{tpu_custom_call.1} parent=55 // pred_fallthru
          _
        // Predicated region
        $region77: #{tpu_custom_call.1} parent=55 // pred_check
          %p372 = pneg %p194
        $region78: #{tpu_custom_call.1} parent=55 // pred_check_branch
          %374 = sbr.rel (%p372) target = $region80
        $region79: #{tpu_custom_call.1} parent=55 // pred_region
          %375 = dma.done [#allocation12], 16
        $region80: #{tpu_custom_call.1} parent=55 // pred_fallthru
          _
        %s376 = smul.u32 128, %s26
        %p377 = scmp.lt.s32.totalorder %s376, 511
        %s378 = scalar_select %p377, %s376, 511
        %s379 = smul.addr %s378, 4
        %s380 = scalar_lea.vmem %s0, %s379
        %p381 = pneg %p47
        %p382 = pneg %p44
        %p383 = pneg %p68
        %p384 = pneg %p65
        %p385 = pneg %p89
        %p386 = pneg %p86
        %p387 = pneg %p110
        %p388 = pneg %p107
        %p389 = pneg %p131
        %p390 = pneg %p128
        %p391 = pneg %p152
        %p392 = pneg %p149
        %p393 = pneg %p173
        %p394 = pneg %p170
        %p395 = pneg %p194
        %p396 = pneg %p191
        %p397 = pneg %p215
        %p398 = pneg %p212
        %p399 = pneg %p241
        %p400 = pneg %p238
        %s401 = smul.u32 128, %s26
        %p402 = scmp.lt.s32.totalorder %s401, 511
        %s403 = scalar_select %p402, %s401, 511
        %s404 = smul.addr %s403, 8
        %s405 = scalar_lea.vmem %s9, %s404
        %s406 = smul.u32 128, %s26
        %p407 = scmp.lt.s32.totalorder %s406, 511
        %s408 = scalar_select %p407, %s406, 511
        %s409 = smul.addr %s408, 4
        %s410 = scalar_lea.vmem %s0, %s409
        %s411 = smul.u32 128, %s26
        %s412 = smul.u32 128, %s26
        %p413 = scmp.lt.s32.totalorder %s412, 511
        %s414 = scalar_select %p413, %s412, 511
        %s415 = smul.addr %s414, 8
        %s416 = scalar_lea.vmem %s9, %s415
        %s417 = smul.u32 128, %s26
        %v419 = vld [vmem:[%s410] sm:$0xf]
        %v420 = vld [vmem:[%s410 + $0x4] sm:$0xf]
        %v421 = vld [vmem:[%s410 + $0x8] sm:$0xf]
        %v422 = vld [vmem:[%s410 + $0xc] sm:$0xf]
        %v423 = vld [vmem:[%s410 + $0x10] sm:$0xf]
        %v424 = vld [vmem:[%s410 + $0x14] sm:$0xf]
        %v425 = vld [vmem:[%s410 + $0x18] sm:$0xf]
        %v426 = vld [vmem:[%s410 + $0x1c] sm:$0xf]
        %v427 = vld [vmem:[%s410 + $0x20] sm:$0xf]
        %v428 = vld [vmem:[%s410 + $0x24] sm:$0xf]
        %v429 = vld [vmem:[%s410 + $0x28] sm:$0xf]
        %v430 = vld [vmem:[%s410 + $0x2c] sm:$0xf]
        %v431 = vld [vmem:[%s410 + $0x30] sm:$0xf]
        %v432 = vld [vmem:[%s410 + $0x34] sm:$0xf]
        %v433 = vld [vmem:[%s410 + $0x38] sm:$0xf]
        %v434 = vld [vmem:[%s410 + $0x3c] sm:$0xf]
        %v435 = vld [vmem:[%s410 + $0x40] sm:$0xf]
        %v436 = vld [vmem:[%s410 + $0x44] sm:$0xf]
        %v437 = vld [vmem:[%s410 + $0x48] sm:$0xf]
        %v438 = vld [vmem:[%s410 + $0x4c] sm:$0xf]
        %v439 = vld [vmem:[%s410 + $0x50] sm:$0xf]
        %v440 = vld [vmem:[%s410 + $0x54] sm:$0xf]
        %v441 = vld [vmem:[%s410 + $0x58] sm:$0xf]
        %v442 = vld [vmem:[%s410 + $0x5c] sm:$0xf]
        %v443 = vld [vmem:[%s410 + $0x60] sm:$0xf]
        %v444 = vld [vmem:[%s410 + $0x64] sm:$0xf]
        %v445 = vld [vmem:[%s410 + $0x68] sm:$0xf]
        %v446 = vld [vmem:[%s410 + $0x6c] sm:$0xf]
        %v447 = vld [vmem:[%s410 + $0x70] sm:$0xf]
        %v448 = vld [vmem:[%s410 + $0x74] sm:$0xf]
        %v449 = vld [vmem:[%s410 + $0x78] sm:$0xf]
        %v450 = vld [vmem:[%s410 + $0x7c] sm:$0xf]
        %v451 = vld [vmem:[%s410 + $0x80] sm:$0xf]
        %v452 = vld [vmem:[%s410 + $0x84] sm:$0xf]
        %v453 = vld [vmem:[%s410 + $0x88] sm:$0xf]
        %v454 = vld [vmem:[%s410 + $0x8c] sm:$0xf]
        %v455 = vld [vmem:[%s410 + $0x90] sm:$0xf]
        %v456 = vld [vmem:[%s410 + $0x94] sm:$0xf]
        %v457 = vld [vmem:[%s410 + $0x98] sm:$0xf]
        %v458 = vld [vmem:[%s410 + $0x9c] sm:$0xf]
        %v459 = vld [vmem:[%s410 + $0xa0] sm:$0xf]
        %v460 = vld [vmem:[%s410 + $0xa4] sm:$0xf]
        %v461 = vld [vmem:[%s410 + $0xa8] sm:$0xf]
        %v462 = vld [vmem:[%s410 + $0xac] sm:$0xf]
        %v463 = vld [vmem:[%s410 + $0xb0] sm:$0xf]
        %v464 = vld [vmem:[%s410 + $0xb4] sm:$0xf]
        %v465 = vld [vmem:[%s410 + $0xb8] sm:$0xf]
        %v466 = vld [vmem:[%s410 + $0xbc] sm:$0xf]
        %v467 = vld [vmem:[%s410 + $0xc0] sm:$0xf]
        %v468 = vld [vmem:[%s410 + $0xc4] sm:$0xf]
        %v469 = vld [vmem:[%s410 + $0xc8] sm:$0xf]
        %v470 = vld [vmem:[%s410 + $0xcc] sm:$0xf]
        %v471 = vld [vmem:[%s410 + $0xd0] sm:$0xf]
        %v472 = vld [vmem:[%s410 + $0xd4] sm:$0xf]
        %v473 = vld [vmem:[%s410 + $0xd8] sm:$0xf]
        %v474 = vld [vmem:[%s410 + $0xdc] sm:$0xf]
        %v475 = vld [vmem:[%s410 + $0xe0] sm:$0xf]
        %v476 = vld [vmem:[%s410 + $0xe4] sm:$0xf]
        %v477 = vld [vmem:[%s410 + $0xe8] sm:$0xf]
        %v478 = vld [vmem:[%s410 + $0xec] sm:$0xf]
        %v479 = vld [vmem:[%s410 + $0xf0] sm:$0xf]
        %v480 = vld [vmem:[%s410 + $0xf4] sm:$0xf]
        %v481 = vld [vmem:[%s410 + $0xf8] sm:$0xf]
        %v482 = vld [vmem:[%s410 + $0xfc] sm:$0xf]
        %v483 = vld [vmem:[%s410 + $0x100] sm:$0xf]
        %v484 = vld [vmem:[%s410 + $0x104] sm:$0xf]
        %v485 = vld [vmem:[%s410 + $0x108] sm:$0xf]
        %v486 = vld [vmem:[%s410 + $0x10c] sm:$0xf]
        %v487 = vld [vmem:[%s410 + $0x110] sm:$0xf]
        %v488 = vld [vmem:[%s410 + $0x114] sm:$0xf]
        %v489 = vld [vmem:[%s410 + $0x118] sm:$0xf]
        %v490 = vld [vmem:[%s410 + $0x11c] sm:$0xf]
        %v491 = vld [vmem:[%s410 + $0x120] sm:$0xf]
        %v492 = vld [vmem:[%s410 + $0x124] sm:$0xf]
        %v493 = vld [vmem:[%s410 + $0x128] sm:$0xf]
        %v494 = vld [vmem:[%s410 + $0x12c] sm:$0xf]
        %v495 = vld [vmem:[%s410 + $0x130] sm:$0xf]
        %v496 = vld [vmem:[%s410 + $0x134] sm:$0xf]
        %v497 = vld [vmem:[%s410 + $0x138] sm:$0xf]
        %v498 = vld [vmem:[%s410 + $0x13c] sm:$0xf]
        %v499 = vld [vmem:[%s410 + $0x140] sm:$0xf]
        %v500 = vld [vmem:[%s410 + $0x144] sm:$0xf]
        %v501 = vld [vmem:[%s410 + $0x148] sm:$0xf]
        %v502 = vld [vmem:[%s410 + $0x14c] sm:$0xf]
        %v503 = vld [vmem:[%s410 + $0x150] sm:$0xf]
        %v504 = vld [vmem:[%s410 + $0x154] sm:$0xf]
        %v505 = vld [vmem:[%s410 + $0x158] sm:$0xf]
        %v506 = vld [vmem:[%s410 + $0x15c] sm:$0xf]
        %v507 = vld [vmem:[%s410 + $0x160] sm:$0xf]
        %v508 = vld [vmem:[%s410 + $0x164] sm:$0xf]
        %v509 = vld [vmem:[%s410 + $0x168] sm:$0xf]
        %v510 = vld [vmem:[%s410 + $0x16c] sm:$0xf]
        %v511 = vld [vmem:[%s410 + $0x170] sm:$0xf]
        %v512 = vld [vmem:[%s410 + $0x174] sm:$0xf]
        %v513 = vld [vmem:[%s410 + $0x178] sm:$0xf]
        %v514 = vld [vmem:[%s410 + $0x17c] sm:$0xf]
        %v515 = vld [vmem:[%s410 + $0x180] sm:$0xf]
        %v516 = vld [vmem:[%s410 + $0x184] sm:$0xf]
        %v517 = vld [vmem:[%s410 + $0x188] sm:$0xf]
        %v518 = vld [vmem:[%s410 + $0x18c] sm:$0xf]
        %v519 = vld [vmem:[%s410 + $0x190] sm:$0xf]
        %v520 = vld [vmem:[%s410 + $0x194] sm:$0xf]
        %v521 = vld [vmem:[%s410 + $0x198] sm:$0xf]
        %v522 = vld [vmem:[%s410 + $0x19c] sm:$0xf]
        %v523 = vld [vmem:[%s410 + $0x1a0] sm:$0xf]
        %v524 = vld [vmem:[%s410 + $0x1a4] sm:$0xf]
        %v525 = vld [vmem:[%s410 + $0x1a8] sm:$0xf]
        %v526 = vld [vmem:[%s410 + $0x1ac] sm:$0xf]
        %v527 = vld [vmem:[%s410 + $0x1b0] sm:$0xf]
        %v528 = vld [vmem:[%s410 + $0x1b4] sm:$0xf]
        %v529 = vld [vmem:[%s410 + $0x1b8] sm:$0xf]
        %v530 = vld [vmem:[%s410 + $0x1bc] sm:$0xf]
        %v531 = vld [vmem:[%s410 + $0x1c0] sm:$0xf]
        %v532 = vld [vmem:[%s410 + $0x1c4] sm:$0xf]
        %v533 = vld [vmem:[%s410 + $0x1c8] sm:$0xf]
        %v534 = vld [vmem:[%s410 + $0x1cc] sm:$0xf]
        %v535 = vld [vmem:[%s410 + $0x1d0] sm:$0xf]
        %v536 = vld [vmem:[%s410 + $0x1d4] sm:$0xf]
        %v537 = vld [vmem:[%s410 + $0x1d8] sm:$0xf]
        %v538 = vld [vmem:[%s410 + $0x1dc] sm:$0xf]
        %v539 = vld [vmem:[%s410 + $0x1e0] sm:$0xf]
        %v540 = vld [vmem:[%s410 + $0x1e4] sm:$0xf]
        %v541 = vld [vmem:[%s410 + $0x1e8] sm:$0xf]
        %v542 = vld [vmem:[%s410 + $0x1ec] sm:$0xf]
        %v543 = vld [vmem:[%s410 + $0x1f0] sm:$0xf]
        %v544 = vld [vmem:[%s410 + $0x1f4] sm:$0xf]
        %v545 = vld [vmem:[%s410 + $0x1f8] sm:$0xf]
        %v546 = vld [vmem:[%s410 + $0x1fc] sm:$0xf]
        %v547 = vld [vmem:[#allocation3] sm:$0xff]
        %v548 = vld [vmem:[#allocation3 + $0x8] sm:$0xff]
        %v677 = vunpack.c.l.b16 %v419
        %v678 = vunpack.c.l.b16 %v420
        %v679 = vunpack.c.l.b16 %v421
        %v680 = vunpack.c.l.b16 %v422
        %v681 = vunpack.c.l.b16 %v423
        %v682 = vunpack.c.l.b16 %v424
        %v683 = vunpack.c.l.b16 %v425
        %v684 = vunpack.c.l.b16 %v426
        %v685 = vunpack.c.l.b16 %v427
        %v686 = vunpack.c.l.b16 %v428
        %v687 = vunpack.c.l.b16 %v429
        %v688 = vunpack.c.l.b16 %v430
        %v689 = vunpack.c.l.b16 %v431
        %v690 = vunpack.c.l.b16 %v432
        %v691 = vunpack.c.l.b16 %v433
        %v692 = vunpack.c.l.b16 %v434
        %v693 = vunpack.c.l.b16 %v435
        %v694 = vunpack.c.l.b16 %v436
        %v695 = vunpack.c.l.b16 %v437
        %v696 = vunpack.c.l.b16 %v438
        %v697 = vunpack.c.l.b16 %v439
        %v698 = vunpack.c.l.b16 %v440
        %v699 = vunpack.c.l.b16 %v441
        %v700 = vunpack.c.l.b16 %v442
        %v701 = vunpack.c.l.b16 %v443
        %v702 = vunpack.c.l.b16 %v444
        %v703 = vunpack.c.l.b16 %v445
        %v704 = vunpack.c.l.b16 %v446
        %v705 = vunpack.c.l.b16 %v447
        %v706 = vunpack.c.l.b16 %v448
        %v707 = vunpack.c.l.b16 %v449
        %v708 = vunpack.c.l.b16 %v450
        %v709 = vunpack.c.l.b16 %v451
        %v710 = vunpack.c.l.b16 %v452
        %v711 = vunpack.c.l.b16 %v453
        %v712 = vunpack.c.l.b16 %v454
        %v713 = vunpack.c.l.b16 %v455
        %v714 = vunpack.c.l.b16 %v456
        %v715 = vunpack.c.l.b16 %v457
        %v716 = vunpack.c.l.b16 %v458
        %v717 = vunpack.c.l.b16 %v459
        %v718 = vunpack.c.l.b16 %v460
        %v719 = vunpack.c.l.b16 %v461
        %v720 = vunpack.c.l.b16 %v462
        %v721 = vunpack.c.l.b16 %v463
        %v722 = vunpack.c.l.b16 %v464
        %v723 = vunpack.c.l.b16 %v465
        %v724 = vunpack.c.l.b16 %v466
        %v725 = vunpack.c.l.b16 %v467
        %v726 = vunpack.c.l.b16 %v468
        %v727 = vunpack.c.l.b16 %v469
        %v728 = vunpack.c.l.b16 %v470
        %v729 = vunpack.c.l.b16 %v471
        %v730 = vunpack.c.l.b16 %v472
        %v731 = vunpack.c.l.b16 %v473
        %v732 = vunpack.c.l.b16 %v474
        %v733 = vunpack.c.l.b16 %v475
        %v734 = vunpack.c.l.b16 %v476
        %v735 = vunpack.c.l.b16 %v477
        %v736 = vunpack.c.l.b16 %v478
        %v737 = vunpack.c.l.b16 %v479
        %v738 = vunpack.c.l.b16 %v480
        %v739 = vunpack.c.l.b16 %v481
        %v740 = vunpack.c.l.b16 %v482
        %v741 = vunpack.c.l.b16 %v483
        %v742 = vunpack.c.l.b16 %v484
        %v743 = vunpack.c.l.b16 %v485
        %v744 = vunpack.c.l.b16 %v486
        %v745 = vunpack.c.l.b16 %v487
        %v746 = vunpack.c.l.b16 %v488
        %v747 = vunpack.c.l.b16 %v489
        %v748 = vunpack.c.l.b16 %v490
        %v749 = vunpack.c.l.b16 %v491
        %v750 = vunpack.c.l.b16 %v492
        %v751 = vunpack.c.l.b16 %v493
        %v752 = vunpack.c.l.b16 %v494
        %v753 = vunpack.c.l.b16 %v495
        %v754 = vunpack.c.l.b16 %v496
        %v755 = vunpack.c.l.b16 %v497
        %v756 = vunpack.c.l.b16 %v498
        %v757 = vunpack.c.l.b16 %v499
        %v758 = vunpack.c.l.b16 %v500
        %v759 = vunpack.c.l.b16 %v501
        %v760 = vunpack.c.l.b16 %v502
        %v761 = vunpack.c.l.b16 %v503
        %v762 = vunpack.c.l.b16 %v504
        %v763 = vunpack.c.l.b16 %v505
        %v764 = vunpack.c.l.b16 %v506
        %v765 = vunpack.c.l.b16 %v507
        %v766 = vunpack.c.l.b16 %v508
        %v767 = vunpack.c.l.b16 %v509
        %v768 = vunpack.c.l.b16 %v510
        %v769 = vunpack.c.l.b16 %v511
        %v770 = vunpack.c.l.b16 %v512
        %v771 = vunpack.c.l.b16 %v513
        %v772 = vunpack.c.l.b16 %v514
        %v773 = vunpack.c.l.b16 %v515
        %v774 = vunpack.c.l.b16 %v516
        %v775 = vunpack.c.l.b16 %v517
        %v776 = vunpack.c.l.b16 %v518
        %v777 = vunpack.c.l.b16 %v519
        %v778 = vunpack.c.l.b16 %v520
        %v779 = vunpack.c.l.b16 %v521
        %v780 = vunpack.c.l.b16 %v522
        %v781 = vunpack.c.l.b16 %v523
        %v782 = vunpack.c.l.b16 %v524
        %v783 = vunpack.c.l.b16 %v525
        %v784 = vunpack.c.l.b16 %v526
        %v785 = vunpack.c.l.b16 %v527
        %v786 = vunpack.c.l.b16 %v528
        %v787 = vunpack.c.l.b16 %v529
        %v788 = vunpack.c.l.b16 %v530
        %v789 = vunpack.c.l.b16 %v531
        %v790 = vunpack.c.l.b16 %v532
        %v791 = vunpack.c.l.b16 %v533
        %v792 = vunpack.c.l.b16 %v534
        %v793 = vunpack.c.l.b16 %v535
        %v794 = vunpack.c.l.b16 %v536
        %v795 = vunpack.c.l.b16 %v537
        %v796 = vunpack.c.l.b16 %v538
        %v797 = vunpack.c.l.b16 %v539
        %v798 = vunpack.c.l.b16 %v540
        %v799 = vunpack.c.l.b16 %v541
        %v800 = vunpack.c.l.b16 %v542
        %v801 = vunpack.c.l.b16 %v543
        %v802 = vunpack.c.l.b16 %v544
        %v803 = vunpack.c.l.b16 %v545
        %v804 = vunpack.c.l.b16 %v546
        %v805 = vpack.c.b16 %v678, %v677
        %v806 = vpack.c.b16 %v680, %v679
        %v807 = vpack.c.b16 %v682, %v681
        %v808 = vpack.c.b16 %v684, %v683
        %v809 = vpack.c.b16 %v686, %v685
        %v810 = vpack.c.b16 %v688, %v687
        %v811 = vpack.c.b16 %v690, %v689
        %v812 = vpack.c.b16 %v692, %v691
        %v813 = vpack.c.b16 %v694, %v693
        %v814 = vpack.c.b16 %v696, %v695
        %v815 = vpack.c.b16 %v698, %v697
        %v816 = vpack.c.b16 %v700, %v699
        %v817 = vpack.c.b16 %v702, %v701
        %v818 = vpack.c.b16 %v704, %v703
        %v819 = vpack.c.b16 %v706, %v705
        %v820 = vpack.c.b16 %v708, %v707
        %v821 = vpack.c.b16 %v710, %v709
        %v822 = vpack.c.b16 %v712, %v711
        %v823 = vpack.c.b16 %v714, %v713
        %v824 = vpack.c.b16 %v716, %v715
        %v825 = vpack.c.b16 %v718, %v717
        %v826 = vpack.c.b16 %v720, %v719
        %v827 = vpack.c.b16 %v722, %v721
        %v828 = vpack.c.b16 %v724, %v723
        %v829 = vpack.c.b16 %v726, %v725
        %v830 = vpack.c.b16 %v728, %v727
        %v831 = vpack.c.b16 %v730, %v729
        %v832 = vpack.c.b16 %v732, %v731
        %v833 = vpack.c.b16 %v734, %v733
        %v834 = vpack.c.b16 %v736, %v735
        %v835 = vpack.c.b16 %v738, %v737
        %v836 = vpack.c.b16 %v740, %v739
        %v837 = vpack.c.b16 %v742, %v741
        %v838 = vpack.c.b16 %v744, %v743
        %v839 = vpack.c.b16 %v746, %v745
        %v840 = vpack.c.b16 %v748, %v747
        %v841 = vpack.c.b16 %v750, %v749
        %v842 = vpack.c.b16 %v752, %v751
        %v843 = vpack.c.b16 %v754, %v753
        %v844 = vpack.c.b16 %v756, %v755
        %v845 = vpack.c.b16 %v758, %v757
        %v846 = vpack.c.b16 %v760, %v759
        %v847 = vpack.c.b16 %v762, %v761
        %v848 = vpack.c.b16 %v764, %v763
        %v849 = vpack.c.b16 %v766, %v765
        %v850 = vpack.c.b16 %v768, %v767
        %v851 = vpack.c.b16 %v770, %v769
        %v852 = vpack.c.b16 %v772, %v771
        %v853 = vpack.c.b16 %v774, %v773
        %v854 = vpack.c.b16 %v776, %v775
        %v855 = vpack.c.b16 %v778, %v777
        %v856 = vpack.c.b16 %v780, %v779
        %v857 = vpack.c.b16 %v782, %v781
        %v858 = vpack.c.b16 %v784, %v783
        %v859 = vpack.c.b16 %v786, %v785
        %v860 = vpack.c.b16 %v788, %v787
        %v861 = vpack.c.b16 %v790, %v789
        %v862 = vpack.c.b16 %v792, %v791
        %v863 = vpack.c.b16 %v794, %v793
        %v864 = vpack.c.b16 %v796, %v795
        %v865 = vpack.c.b16 %v798, %v797
        %v866 = vpack.c.b16 %v800, %v799
        %v867 = vpack.c.b16 %v802, %v801
        %v868 = vpack.c.b16 %v804, %v803
        %v871 = vunpack.c.l.b16 %v547
        %v872 = vunpack.c.h.b16 %v547
        %v873 = vunpack.c.l.b16 %v548
        %v874 = vunpack.c.h.b16 %v548
        %v875 = vpack.c.b16 %v873, %v871
        %v876 = vpack.c.b16 %v874, %v872
        %vm879 = vcmask 130048
        %v881 = vsel %vm879, %v805, 0
        %v884 = vsel %vm879, %v806, 0
        %v887 = vsel %vm879, %v807, 0
        %v890 = vsel %vm879, %v808, 0
        %v893 = vsel %vm879, %v809, 0
        %v896 = vsel %vm879, %v810, 0
        %v899 = vsel %vm879, %v811, 0
        %v902 = vsel %vm879, %v812, 0
        %v905 = vsel %vm879, %v813, 0
        %v908 = vsel %vm879, %v814, 0
        %v911 = vsel %vm879, %v815, 0
        %v914 = vsel %vm879, %v816, 0
        %v917 = vsel %vm879, %v817, 0
        %v920 = vsel %vm879, %v818, 0
        %v923 = vsel %vm879, %v819, 0
        %v926 = vsel %vm879, %v820, 0
        %v929 = vsel %vm879, %v821, 0
        %v932 = vsel %vm879, %v822, 0
        %v935 = vsel %vm879, %v823, 0
        %v938 = vsel %vm879, %v824, 0
        %v941 = vsel %vm879, %v825, 0
        %v944 = vsel %vm879, %v826, 0
        %v947 = vsel %vm879, %v827, 0
        %v950 = vsel %vm879, %v828, 0
        %v953 = vsel %vm879, %v829, 0
        %v956 = vsel %vm879, %v830, 0
        %v959 = vsel %vm879, %v831, 0
        %v962 = vsel %vm879, %v832, 0
        %v965 = vsel %vm879, %v833, 0
        %v968 = vsel %vm879, %v834, 0
        %v971 = vsel %vm879, %v835, 0
        %v974 = vsel %vm879, %v836, 0
        %v977 = vsel %vm879, %v837, 0
        %v980 = vsel %vm879, %v838, 0
        %v983 = vsel %vm879, %v839, 0
        %v986 = vsel %vm879, %v840, 0
        %v989 = vsel %vm879, %v841, 0
        %v992 = vsel %vm879, %v842, 0
        %v995 = vsel %vm879, %v843, 0
        %v998 = vsel %vm879, %v844, 0
        %v1001 = vsel %vm879, %v845, 0
        %v1004 = vsel %vm879, %v846, 0
        %v1007 = vsel %vm879, %v847, 0
        %v1010 = vsel %vm879, %v848, 0
        %v1013 = vsel %vm879, %v849, 0
        %v1016 = vsel %vm879, %v850, 0
        %v1019 = vsel %vm879, %v851, 0
        %v1022 = vsel %vm879, %v852, 0
        %v1025 = vsel %vm879, %v853, 0
        %v1028 = vsel %vm879, %v854, 0
        %v1031 = vsel %vm879, %v855, 0
        %v1034 = vsel %vm879, %v856, 0
        %v1037 = vsel %vm879, %v857, 0
        %v1040 = vsel %vm879, %v858, 0
        %v1043 = vsel %vm879, %v859, 0
        %v1046 = vsel %vm879, %v860, 0
        %v1049 = vsel %vm879, %v861, 0
        %v1052 = vsel %vm879, %v862, 0
        %v1055 = vsel %vm879, %v863, 0
        %v1058 = vsel %vm879, %v864, 0
        %v1061 = vsel %vm879, %v865, 0
        %v1064 = vsel %vm879, %v866, 0
        %v1067 = vsel %vm879, %v867, 0
        %v1070 = vsel %vm879, %v868, 0
        %1072 = vmatprep.subr.bf16.mxu0 %v876
        %1073 = vmatpush1.bf16.msra.mxu0 %v875
        %1074 = vmatprep.subr.bf16.mxu0 0
        %1075 = vmatpush1.bf16.msra.mxu0 0
        %1076 = vmatprep.subr.bf16.mxu0 0
        %1077 = vmatpush1.bf16.msra.mxu0 0
        %1078 = vmatprep.subr.bf16.mxu0 0
        %1079 = vmatpush1.bf16.msra.mxu0 0
        %1080 = vmatprep.subr.bf16.mxu0 0
        %1081 = vmatpush1.bf16.msra.mxu0 0
        %1082 = vmatprep.subr.bf16.mxu0 0
        %1083 = vmatpush1.bf16.msra.mxu0 0
        %1084 = vmatprep.subr.bf16.mxu0 0
        %1085 = vmatpush1.bf16.msra.mxu0 0
        %1086 = vmatprep.subr.bf16.mxu0 0
        %1087 = vmatpush1.bf16.msra.mxu0 0
        %1088 = vmatprep.subr.bf16.mxu0 0
        %1089 = vmatpush1.bf16.msra.mxu0 0
        %1090 = vmatprep.subr.bf16.mxu0 0
        %1091 = vmatpush1.bf16.msra.mxu0 0
        %1092 = vmatprep.subr.bf16.mxu0 0
        %1093 = vmatpush1.bf16.msra.mxu0 0
        %1094 = vmatprep.subr.bf16.mxu0 0
        %1095 = vmatpush1.bf16.msra.mxu0 0
        %1096 = vmatprep.subr.bf16.mxu0 0
        %1097 = vmatpush1.bf16.msra.mxu0 0
        %1098 = vmatprep.subr.bf16.mxu0 0
        %1099 = vmatpush1.bf16.msra.mxu0 0
        %1100 = vmatprep.subr.bf16.mxu0 0
        %1101 = vmatpush1.bf16.msra.mxu0 0
        %1102 = vmatprep.subr.bf16.mxu0 0
        %1103 = vmatpush1.bf16.msra.mxu0 0
        %1104 = vmatprep.mubr.bf16.mxu0 0
        %1105 = vmatmul.mubr.bf16.gmra.mrb[0].mxu0 %v881
        %v1106 = vpop.f32.mrb[0].mxu0
        %v1107 = vadd.f32 0.0, %v1106
        %v1108 = vpop.f32.mrb[0].mxu0
        %v1109 = vadd.f32 0.0, %v1108
        %v1110 = vpop.f32.mrb[0].mxu0
        %v1111 = vadd.f32 0.0, %v1110
        %v1112 = vpop.f32.mrb[0].mxu0
        %v1113 = vadd.f32 0.0, %v1112
        %1114 = vmatprep.mubr.bf16.mxu0 0
        %1115 = vmatmul.mubr.bf16.gmra.mrb[0].mxu0 %v884
        %v1116 = vpop.f32.mrb[0].mxu0
        %v1117 = vadd.f32 0.0, %v1116
        %v1118 = vpop.f32.mrb[0].mxu0
        %v1119 = vadd.f32 0.0, %v1118
        %v1120 = vpop.f32.mrb[0].mxu0
        %v1121 = vadd.f32 0.0, %v1120
        %v1122 = vpop.f32.mrb[0].mxu0
        %v1123 = vadd.f32 0.0, %v1122
        %1124 = vmatprep.mubr.bf16.mxu0 0
        %1125 = vmatmul.mubr.bf16.gmra.mrb[0].mxu0 %v887
        %v1126 = vpop.f32.mrb[0].mxu0
        %v1127 = vadd.f32 0.0, %v1126
        %v1128 = vpop.f32.mrb[0].mxu0
        %v1129 = vadd.f32 0.0, %v1128
        %v1130 = vpop.f32.mrb[0].mxu0
        %v1131 = vadd.f32 0.0, %v1130
        %v1132 = vpop.f32.mrb[0].mxu0
        %v1133 = vadd.f32 0.0, %v1132
        %1134 = vmatprep.mubr.bf16.mxu0 0
        %1135 = vmatmul.mubr.bf16.gmra.mrb[0].mxu0 %v890
        %v1136 = vpop.f32.mrb[0].mxu0
        %v1137 = vadd.f32 0.0, %v1136
        %v1138 = vpop.f32.mrb[0].mxu0
        %v1139 = vadd.f32 0.0, %v1138
        %v1140 = vpop.f32.mrb[0].mxu0
        %v1141 = vadd.f32 0.0, %v1140
        %v1142 = vpop.f32.mrb[0].mxu0
        %v1143 = vadd.f32 0.0, %v1142
        %1144 = vmatprep.mubr.bf16.mxu0 0
        %1145 = vmatmul.mubr.bf16.gmra.mrb[0].mxu0 %v893
        %v1146 = vpop.f32.mrb[0].mxu0
        %v1147 = vadd.f32 0.0, %v1146
        %v1148 = vpop.f32.mrb[0].mxu0
        %v1149 = vadd.f32 0.0, %v1148
        %v1150 = vpop.f32.mrb[0].mxu0
        %v1151 = vadd.f32 0.0, %v1150
        %v1152 = vpop.f32.mrb[0].mxu0
        %v1153 = vadd.f32 0.0, %v1152
        %1154 = vmatprep.mubr.bf16.mxu0 0
        %1155 = vmatmul.mubr.bf16.gmra.mrb[0].mxu0 %v896
        %v1156 = vpop.f32.mrb[0].mxu0
        %v1157 = vadd.f32 0.0, %v1156
        %v1158 = vpop.f32.mrb[0].mxu0
        %v1159 = vadd.f32 0.0, %v1158
        %v1160 = vpop.f32.mrb[0].mxu0
        %v1161 = vadd.f32 0.0, %v1160
        %v1162 = vpop.f32.mrb[0].mxu0
        %v1163 = vadd.f32 0.0, %v1162
        %1164 = vmatprep.mubr.bf16.mxu0 0
        %1165 = vmatmul.mubr.bf16.gmra.mrb[0].mxu0 %v899
        %v1166 = vpop.f32.mrb[0].mxu0
        %v1167 = vadd.f32 0.0, %v1166
        %v1168 = vpop.f32.mrb[0].mxu0
        %v1169 = vadd.f32 0.0, %v1168
        %v1170 = vpop.f32.mrb[0].mxu0
        %v1171 = vadd.f32 0.0, %v1170
        %v1172 = vpop.f32.mrb[0].mxu0
        %v1173 = vadd.f32 0.0, %v1172
        %1174 = vmatprep.mubr.bf16.mxu0 0
        %1175 = vmatmul.mubr.bf16.gmra.mrb[0].mxu0 %v902
        %v1176 = vpop.f32.mrb[0].mxu0
        %v1177 = vadd.f32 0.0, %v1176
        %v1178 = vpop.f32.mrb[0].mxu0
        %v1179 = vadd.f32 0.0, %v1178
        %v1180 = vpop.f32.mrb[0].mxu0
        %v1181 = vadd.f32 0.0, %v1180
        %v1182 = vpop.f32.mrb[0].mxu0
        %v1183 = vadd.f32 0.0, %v1182
        %1184 = vmatprep.mubr.bf16.mxu0 0
        %1185 = vmatmul.mubr.bf16.gmra.mrb[0].mxu0 %v905
        %v1186 = vpop.f32.mrb[0].mxu0
        %v1187 = vadd.f32 0.0, %v1186
        %v1188 = vpop.f32.mrb[0].mxu0
        %v1189 = vadd.f32 0.0, %v1188
        %v1190 = vpop.f32.mrb[0].mxu0
        %v1191 = vadd.f32 0.0, %v1190
        %v1192 = vpop.f32.mrb[0].mxu0
        %v1193 = vadd.f32 0.0, %v1192
        %1194 = vmatprep.mubr.bf16.mxu0 0
        %1195 = vmatmul.mubr.bf16.gmra.mrb[0].mxu0 %v908
        %v1196 = vpop.f32.mrb[0].mxu0
        %v1197 = vadd.f32 0.0, %v1196
        %v1198 = vpop.f32.mrb[0].mxu0
        %v1199 = vadd.f32 0.0, %v1198
        %v1200 = vpop.f32.mrb[0].mxu0
        %v1201 = vadd.f32 0.0, %v1200
        %v1202 = vpop.f32.mrb[0].mxu0
        %v1203 = vadd.f32 0.0, %v1202
        %1204 = vmatprep.mubr.bf16.mxu0 0
        %1205 = vmatmul.mubr.bf16.gmra.mrb[0].mxu0 %v911
        %v1206 = vpop.f32.mrb[0].mxu0
        %v1207 = vadd.f32 0.0, %v1206
        %v1208 = vpop.f32.mrb[0].mxu0
        %v1209 = vadd.f32 0.0, %v1208
        %v1210 = vpop.f32.mrb[0].mxu0
        %v1211 = vadd.f32 0.0, %v1210
        %v1212 = vpop.f32.mrb[0].mxu0
        %v1213 = vadd.f32 0.0, %v1212
        %1214 = vmatprep.mubr.bf16.mxu0 0
        %1215 = vmatmul.mubr.bf16.gmra.mrb[0].mxu0 %v914
        %v1216 = vpop.f32.mrb[0].mxu0
        %v1217 = vadd.f32 0.0, %v1216
        %v1218 = vpop.f32.mrb[0].mxu0
        %v1219 = vadd.f32 0.0, %v1218
        %v1220 = vpop.f32.mrb[0].mxu0
        %v1221 = vadd.f32 0.0, %v1220
        %v1222 = vpop.f32.mrb[0].mxu0
        %v1223 = vadd.f32 0.0, %v1222
        %1224 = vmatprep.mubr.bf16.mxu0 0
        %1225 = vmatmul.mubr.bf16.gmra.mrb[0].mxu0 %v917
        %v1226 = vpop.f32.mrb[0].mxu0
        %v1227 = vadd.f32 0.0, %v1226
        %v1228 = vpop.f32.mrb[0].mxu0
        %v1229 = vadd.f32 0.0, %v1228
        %v1230 = vpop.f32.mrb[0].mxu0
        %v1231 = vadd.f32 0.0, %v1230
        %v1232 = vpop.f32.mrb[0].mxu0
        %v1233 = vadd.f32 0.0, %v1232
        %1234 = vmatprep.mubr.bf16.mxu0 0
        %1235 = vmatmul.mubr.bf16.gmra.mrb[0].mxu0 %v920
        %v1236 = vpop.f32.mrb[0].mxu0
        %v1237 = vadd.f32 0.0, %v1236
        %v1238 = vpop.f32.mrb[0].mxu0
        %v1239 = vadd.f32 0.0, %v1238
        %v1240 = vpop.f32.mrb[0].mxu0
        %v1241 = vadd.f32 0.0, %v1240
        %v1242 = vpop.f32.mrb[0].mxu0
        %v1243 = vadd.f32 0.0, %v1242
        %1244 = vmatprep.mubr.bf16.mxu0 0
        %1245 = vmatmul.mubr.bf16.gmra.mrb[0].mxu0 %v923
        %v1246 = vpop.f32.mrb[0].mxu0
        %v1247 = vadd.f32 0.0, %v1246
        %v1248 = vpop.f32.mrb[0].mxu0
        %v1249 = vadd.f32 0.0, %v1248
        %v1250 = vpop.f32.mrb[0].mxu0
        %v1251 = vadd.f32 0.0, %v1250
        %v1252 = vpop.f32.mrb[0].mxu0
        %v1253 = vadd.f32 0.0, %v1252
        %1254 = vmatprep.mubr.bf16.mxu0 0
        %1255 = vmatmul.mubr.bf16.gmra.mrb[0].mxu0 %v926
        %v1256 = vpop.f32.mrb[0].mxu0
        %v1257 = vadd.f32 0.0, %v1256
        %v1258 = vpop.f32.mrb[0].mxu0
        %v1259 = vadd.f32 0.0, %v1258
        %v1260 = vpop.f32.mrb[0].mxu0
        %v1261 = vadd.f32 0.0, %v1260
        %v1262 = vpop.f32.mrb[0].mxu0
        %v1263 = vadd.f32 0.0, %v1262
        %1264 = vmatprep.mubr.bf16.mxu0 0
        %1265 = vmatmul.mubr.bf16.gmra.mrb[0].mxu0 %v929
        %v1266 = vpop.f32.mrb[0].mxu0
        %v1267 = vadd.f32 0.0, %v1266
        %v1268 = vpop.f32.mrb[0].mxu0
        %v1269 = vadd.f32 0.0, %v1268
        %v1270 = vpop.f32.mrb[0].mxu0
        %v1271 = vadd.f32 0.0, %v1270
        %v1272 = vpop.f32.mrb[0].mxu0
        %v1273 = vadd.f32 0.0, %v1272
        %1274 = vmatprep.mubr.bf16.mxu0 0
        %1275 = vmatmul.mubr.bf16.gmra.mrb[0].mxu0 %v932
        %v1276 = vpop.f32.mrb[0].mxu0
        %v1277 = vadd.f32 0.0, %v1276
        %v1278 = vpop.f32.mrb[0].mxu0
        %v1279 = vadd.f32 0.0, %v1278
        %v1280 = vpop.f32.mrb[0].mxu0
        %v1281 = vadd.f32 0.0, %v1280
        %v1282 = vpop.f32.mrb[0].mxu0
        %v1283 = vadd.f32 0.0, %v1282
        %1284 = vmatprep.mubr.bf16.mxu0 0
        %1285 = vmatmul.mubr.bf16.gmra.mrb[0].mxu0 %v935
        %v1286 = vpop.f32.mrb[0].mxu0
        %v1287 = vadd.f32 0.0, %v1286
        %v1288 = vpop.f32.mrb[0].mxu0
        %v1289 = vadd.f32 0.0, %v1288
        %v1290 = vpop.f32.mrb[0].mxu0
        %v1291 = vadd.f32 0.0, %v1290
        %v1292 = vpop.f32.mrb[0].mxu0
        %v1293 = vadd.f32 0.0, %v1292
        %1294 = vmatprep.mubr.bf16.mxu0 0
        %1295 = vmatmul.mubr.bf16.gmra.mrb[0].mxu0 %v938
        %v1296 = vpop.f32.mrb[0].mxu0
        %v1297 = vadd.f32 0.0, %v1296
        %v1298 = vpop.f32.mrb[0].mxu0
        %v1299 = vadd.f32 0.0, %v1298
        %v1300 = vpop.f32.mrb[0].mxu0
        %v1301 = vadd.f32 0.0, %v1300
        %v1302 = vpop.f32.mrb[0].mxu0
        %v1303 = vadd.f32 0.0, %v1302
        %1304 = vmatprep.mubr.bf16.mxu0 0
        %1305 = vmatmul.mubr.bf16.gmra.mrb[0].mxu0 %v941
        %v1306 = vpop.f32.mrb[0].mxu0
        %v1307 = vadd.f32 0.0, %v1306
        %v1308 = vpop.f32.mrb[0].mxu0
        %v1309 = vadd.f32 0.0, %v1308
        %v1310 = vpop.f32.mrb[0].mxu0
        %v1311 = vadd.f32 0.0, %v1310
        %v1312 = vpop.f32.mrb[0].mxu0
        %v1313 = vadd.f32 0.0, %v1312
        %1314 = vmatprep.mubr.bf16.mxu0 0
        %1315 = vmatmul.mubr.bf16.gmra.mrb[0].mxu0 %v944
        %v1316 = vpop.f32.mrb[0].mxu0
        %v1317 = vadd.f32 0.0, %v1316
        %v1318 = vpop.f32.mrb[0].mxu0
        %v1319 = vadd.f32 0.0, %v1318
        %v1320 = vpop.f32.mrb[0].mxu0
        %v1321 = vadd.f32 0.0, %v1320
        %v1322 = vpop.f32.mrb[0].mxu0
        %v1323 = vadd.f32 0.0, %v1322
        %1324 = vmatprep.mubr.bf16.mxu0 0
        %1325 = vmatmul.mubr.bf16.gmra.mrb[0].mxu0 %v947
        %v1326 = vpop.f32.mrb[0].mxu0
        %v1327 = vadd.f32 0.0, %v1326
        %v1328 = vpop.f32.mrb[0].mxu0
        %v1329 = vadd.f32 0.0, %v1328
        %v1330 = vpop.f32.mrb[0].mxu0
        %v1331 = vadd.f32 0.0, %v1330
        %v1332 = vpop.f32.mrb[0].mxu0
        %v1333 = vadd.f32 0.0, %v1332
        %1334 = vmatprep.mubr.bf16.mxu0 0
        %1335 = vmatmul.mubr.bf16.gmra.mrb[0].mxu0 %v950
        %v1336 = vpop.f32.mrb[0].mxu0
        %v1337 = vadd.f32 0.0, %v1336
        %v1338 = vpop.f32.mrb[0].mxu0
        %v1339 = vadd.f32 0.0, %v1338
        %v1340 = vpop.f32.mrb[0].mxu0
        %v1341 = vadd.f32 0.0, %v1340
        %v1342 = vpop.f32.mrb[0].mxu0
        %v1343 = vadd.f32 0.0, %v1342
        %1344 = vmatprep.mubr.bf16.mxu0 0
        %1345 = vmatmul.mubr.bf16.gmra.mrb[0].mxu0 %v953
        %v1346 = vpop.f32.mrb[0].mxu0
        %v1347 = vadd.f32 0.0, %v1346
        %v1348 = vpop.f32.mrb[0].mxu0
        %v1349 = vadd.f32 0.0, %v1348
        %v1350 = vpop.f32.mrb[0].mxu0
        %v1351 = vadd.f32 0.0, %v1350
        %v1352 = vpop.f32.mrb[0].mxu0
        %v1353 = vadd.f32 0.0, %v1352
        %1354 = vmatprep.mubr.bf16.mxu0 0
        %1355 = vmatmul.mubr.bf16.gmra.mrb[0].mxu0 %v956
        %v1356 = vpop.f32.mrb[0].mxu0
        %v1357 = vadd.f32 0.0, %v1356
        %v1358 = vpop.f32.mrb[0].mxu0
        %v1359 = vadd.f32 0.0, %v1358
        %v1360 = vpop.f32.mrb[0].mxu0
        %v1361 = vadd.f32 0.0, %v1360
        %v1362 = vpop.f32.mrb[0].mxu0
        %v1363 = vadd.f32 0.0, %v1362
        %1364 = vmatprep.mubr.bf16.mxu0 0
        %1365 = vmatmul.mubr.bf16.gmra.mrb[0].mxu0 %v959
        %v1366 = vpop.f32.mrb[0].mxu0
        %v1367 = vadd.f32 0.0, %v1366
        %v1368 = vpop.f32.mrb[0].mxu0
        %v1369 = vadd.f32 0.0, %v1368
        %v1370 = vpop.f32.mrb[0].mxu0
        %v1371 = vadd.f32 0.0, %v1370
        %v1372 = vpop.f32.mrb[0].mxu0
        %v1373 = vadd.f32 0.0, %v1372
        %1374 = vmatprep.mubr.bf16.mxu0 0
        %1375 = vmatmul.mubr.bf16.gmra.mrb[0].mxu0 %v962
        %v1376 = vpop.f32.mrb[0].mxu0
        %v1377 = vadd.f32 0.0, %v1376
        %v1378 = vpop.f32.mrb[0].mxu0
        %v1379 = vadd.f32 0.0, %v1378
        %v1380 = vpop.f32.mrb[0].mxu0
        %v1381 = vadd.f32 0.0, %v1380
        %v1382 = vpop.f32.mrb[0].mxu0
        %v1383 = vadd.f32 0.0, %v1382
        %1384 = vmatprep.mubr.bf16.mxu0 0
        %1385 = vmatmul.mubr.bf16.gmra.mrb[0].mxu0 %v965
        %v1386 = vpop.f32.mrb[0].mxu0
        %v1387 = vadd.f32 0.0, %v1386
        %v1388 = vpop.f32.mrb[0].mxu0
        %v1389 = vadd.f32 0.0, %v1388
        %v1390 = vpop.f32.mrb[0].mxu0
        %v1391 = vadd.f32 0.0, %v1390
        %v1392 = vpop.f32.mrb[0].mxu0
        %v1393 = vadd.f32 0.0, %v1392
        %1394 = vmatprep.mubr.bf16.mxu0 0
        %1395 = vmatmul.mubr.bf16.gmra.mrb[0].mxu0 %v968
        %v1396 = vpop.f32.mrb[0].mxu0
        %v1397 = vadd.f32 0.0, %v1396
        %v1398 = vpop.f32.mrb[0].mxu0
        %v1399 = vadd.f32 0.0, %v1398
        %v1400 = vpop.f32.mrb[0].mxu0
        %v1401 = vadd.f32 0.0, %v1400
        %v1402 = vpop.f32.mrb[0].mxu0
        %v1403 = vadd.f32 0.0, %v1402
        %1404 = vmatprep.mubr.bf16.mxu0 0
        %1405 = vmatmul.mubr.bf16.gmra.mrb[0].mxu0 %v971
        %v1406 = vpop.f32.mrb[0].mxu0
        %v1407 = vadd.f32 0.0, %v1406
        %v1408 = vpop.f32.mrb[0].mxu0
        %v1409 = vadd.f32 0.0, %v1408
        %v1410 = vpop.f32.mrb[0].mxu0
        %v1411 = vadd.f32 0.0, %v1410
        %v1412 = vpop.f32.mrb[0].mxu0
        %v1413 = vadd.f32 0.0, %v1412
        %1414 = vmatprep.mubr.bf16.mxu0 0
        %1415 = vmatmul.mubr.bf16.gmra.mrb[0].mxu0 %v974
        %v1416 = vpop.f32.mrb[0].mxu0
        %v1417 = vadd.f32 0.0, %v1416
        %v1418 = vpop.f32.mrb[0].mxu0
        %v1419 = vadd.f32 0.0, %v1418
        %v1420 = vpop.f32.mrb[0].mxu0
        %v1421 = vadd.f32 0.0, %v1420
        %v1422 = vpop.f32.mrb[0].mxu0
        %v1423 = vadd.f32 0.0, %v1422
        %1424 = vmatprep.mubr.bf16.mxu0 0
        %1425 = vmatmul.mubr.bf16.gmra.mrb[0].mxu0 %v977
        %v1426 = vpop.f32.mrb[0].mxu0
        %v1427 = vadd.f32 0.0, %v1426
        %v1428 = vpop.f32.mrb[0].mxu0
        %v1429 = vadd.f32 0.0, %v1428
        %v1430 = vpop.f32.mrb[0].mxu0
        %v1431 = vadd.f32 0.0, %v1430
        %v1432 = vpop.f32.mrb[0].mxu0
        %v1433 = vadd.f32 0.0, %v1432
        %1434 = vmatprep.mubr.bf16.mxu0 0
        %1435 = vmatmul.mubr.bf16.gmra.mrb[0].mxu0 %v980
        %v1436 = vpop.f32.mrb[0].mxu0
        %v1437 = vadd.f32 0.0, %v1436
        %v1438 = vpop.f32.mrb[0].mxu0
        %v1439 = vadd.f32 0.0, %v1438
        %v1440 = vpop.f32.mrb[0].mxu0
        %v1441 = vadd.f32 0.0, %v1440
        %v1442 = vpop.f32.mrb[0].mxu0
        %v1443 = vadd.f32 0.0, %v1442
        %1444 = vmatprep.mubr.bf16.mxu0 0
        %1445 = vmatmul.mubr.bf16.gmra.mrb[0].mxu0 %v983
        %v1446 = vpop.f32.mrb[0].mxu0
        %v1447 = vadd.f32 0.0, %v1446
        %v1448 = vpop.f32.mrb[0].mxu0
        %v1449 = vadd.f32 0.0, %v1448
        %v1450 = vpop.f32.mrb[0].mxu0
        %v1451 = vadd.f32 0.0, %v1450
        %v1452 = vpop.f32.mrb[0].mxu0
        %v1453 = vadd.f32 0.0, %v1452
        %1454 = vmatprep.mubr.bf16.mxu0 0
        %1455 = vmatmul.mubr.bf16.gmra.mrb[0].mxu0 %v986
        %v1456 = vpop.f32.mrb[0].mxu0
        %v1457 = vadd.f32 0.0, %v1456
        %v1458 = vpop.f32.mrb[0].mxu0
        %v1459 = vadd.f32 0.0, %v1458
        %v1460 = vpop.f32.mrb[0].mxu0
        %v1461 = vadd.f32 0.0, %v1460
        %v1462 = vpop.f32.mrb[0].mxu0
        %v1463 = vadd.f32 0.0, %v1462
        %1464 = vmatprep.mubr.bf16.mxu0 0
        %1465 = vmatmul.mubr.bf16.gmra.mrb[0].mxu0 %v989
        %v1466 = vpop.f32.mrb[0].mxu0
        %v1467 = vadd.f32 0.0, %v1466
        %v1468 = vpop.f32.mrb[0].mxu0
        %v1469 = vadd.f32 0.0, %v1468
        %v1470 = vpop.f32.mrb[0].mxu0
        %v1471 = vadd.f32 0.0, %v1470
        %v1472 = vpop.f32.mrb[0].mxu0
        %v1473 = vadd.f32 0.0, %v1472
        %1474 = vmatprep.mubr.bf16.mxu0 0
        %1475 = vmatmul.mubr.bf16.gmra.mrb[0].mxu0 %v992
        %v1476 = vpop.f32.mrb[0].mxu0
        %v1477 = vadd.f32 0.0, %v1476
        %v1478 = vpop.f32.mrb[0].mxu0
        %v1479 = vadd.f32 0.0, %v1478
        %v1480 = vpop.f32.mrb[0].mxu0
        %v1481 = vadd.f32 0.0, %v1480
        %v1482 = vpop.f32.mrb[0].mxu0
        %v1483 = vadd.f32 0.0, %v1482
        %1484 = vmatprep.mubr.bf16.mxu0 0
        %1485 = vmatmul.mubr.bf16.gmra.mrb[0].mxu0 %v995
        %v1486 = vpop.f32.mrb[0].mxu0
        %v1487 = vadd.f32 0.0, %v1486
        %v1488 = vpop.f32.mrb[0].mxu0
        %v1489 = vadd.f32 0.0, %v1488
        %v1490 = vpop.f32.mrb[0].mxu0
        %v1491 = vadd.f32 0.0, %v1490
        %v1492 = vpop.f32.mrb[0].mxu0
        %v1493 = vadd.f32 0.0, %v1492
        %1494 = vmatprep.mubr.bf16.mxu0 0
        %1495 = vmatmul.mubr.bf16.gmra.mrb[0].mxu0 %v998
        %v1496 = vpop.f32.mrb[0].mxu0
        %v1497 = vadd.f32 0.0, %v1496
        %v1498 = vpop.f32.mrb[0].mxu0
        %v1499 = vadd.f32 0.0, %v1498
        %v1500 = vpop.f32.mrb[0].mxu0
        %v1501 = vadd.f32 0.0, %v1500
        %v1502 = vpop.f32.mrb[0].mxu0
        %v1503 = vadd.f32 0.0, %v1502
        %1504 = vmatprep.mubr.bf16.mxu0 0
        %1505 = vmatmul.mubr.bf16.gmra.mrb[0].mxu0 %v1001
        %v1506 = vpop.f32.mrb[0].mxu0
        %v1507 = vadd.f32 0.0, %v1506
        %v1508 = vpop.f32.mrb[0].mxu0
        %v1509 = vadd.f32 0.0, %v1508
        %v1510 = vpop.f32.mrb[0].mxu0
        %v1511 = vadd.f32 0.0, %v1510
        %v1512 = vpop.f32.mrb[0].mxu0
        %v1513 = vadd.f32 0.0, %v1512
        %1514 = vmatprep.mubr.bf16.mxu0 0
        %1515 = vmatmul.mubr.bf16.gmra.mrb[0].mxu0 %v1004
        %v1516 = vpop.f32.mrb[0].mxu0
        %v1517 = vadd.f32 0.0, %v1516
        %v1518 = vpop.f32.mrb[0].mxu0
        %v1519 = vadd.f32 0.0, %v1518
        %v1520 = vpop.f32.mrb[0].mxu0
        %v1521 = vadd.f32 0.0, %v1520
        %v1522 = vpop.f32.mrb[0].mxu0
        %v1523 = vadd.f32 0.0, %v1522
        %1524 = vmatprep.mubr.bf16.mxu0 0
        %1525 = vmatmul.mubr.bf16.gmra.mrb[0].mxu0 %v1007
        %v1526 = vpop.f32.mrb[0].mxu0
        %v1527 = vadd.f32 0.0, %v1526
        %v1528 = vpop.f32.mrb[0].mxu0
        %v1529 = vadd.f32 0.0, %v1528
        %v1530 = vpop.f32.mrb[0].mxu0
        %v1531 = vadd.f32 0.0, %v1530
        %v1532 = vpop.f32.mrb[0].mxu0
        %v1533 = vadd.f32 0.0, %v1532
        %1534 = vmatprep.mubr.bf16.mxu0 0
        %1535 = vmatmul.mubr.bf16.gmra.mrb[0].mxu0 %v1010
        %v1536 = vpop.f32.mrb[0].mxu0
        %v1537 = vadd.f32 0.0, %v1536
        %v1538 = vpop.f32.mrb[0].mxu0
        %v1539 = vadd.f32 0.0, %v1538
        %v1540 = vpop.f32.mrb[0].mxu0
        %v1541 = vadd.f32 0.0, %v1540
        %v1542 = vpop.f32.mrb[0].mxu0
        %v1543 = vadd.f32 0.0, %v1542
        %1544 = vmatprep.mubr.bf16.mxu0 0
        %1545 = vmatmul.mubr.bf16.gmra.mrb[0].mxu0 %v1013
        %v1546 = vpop.f32.mrb[0].mxu0
        %v1547 = vadd.f32 0.0, %v1546
        %v1548 = vpop.f32.mrb[0].mxu0
        %v1549 = vadd.f32 0.0, %v1548
        %v1550 = vpop.f32.mrb[0].mxu0
        %v1551 = vadd.f32 0.0, %v1550
        %v1552 = vpop.f32.mrb[0].mxu0
        %v1553 = vadd.f32 0.0, %v1552
        %1554 = vmatprep.mubr.bf16.mxu0 0
        %1555 = vmatmul.mubr.bf16.gmra.mrb[0].mxu0 %v1016
        %v1556 = vpop.f32.mrb[0].mxu0
        %v1557 = vadd.f32 0.0, %v1556
        %v1558 = vpop.f32.mrb[0].mxu0
        %v1559 = vadd.f32 0.0, %v1558
        %v1560 = vpop.f32.mrb[0].mxu0
        %v1561 = vadd.f32 0.0, %v1560
        %v1562 = vpop.f32.mrb[0].mxu0
        %v1563 = vadd.f32 0.0, %v1562
        %1564 = vmatprep.mubr.bf16.mxu0 0
        %1565 = vmatmul.mubr.bf16.gmra.mrb[0].mxu0 %v1019
        %v1566 = vpop.f32.mrb[0].mxu0
        %v1567 = vadd.f32 0.0, %v1566
        %v1568 = vpop.f32.mrb[0].mxu0
        %v1569 = vadd.f32 0.0, %v1568
        %v1570 = vpop.f32.mrb[0].mxu0
        %v1571 = vadd.f32 0.0, %v1570
        %v1572 = vpop.f32.mrb[0].mxu0
        %v1573 = vadd.f32 0.0, %v1572
        %1574 = vmatprep.mubr.bf16.mxu0 0
        %1575 = vmatmul.mubr.bf16.gmra.mrb[0].mxu0 %v1022
        %v1576 = vpop.f32.mrb[0].mxu0
        %v1577 = vadd.f32 0.0, %v1576
        %v1578 = vpop.f32.mrb[0].mxu0
        %v1579 = vadd.f32 0.0, %v1578
        %v1580 = vpop.f32.mrb[0].mxu0
        %v1581 = vadd.f32 0.0, %v1580
        %v1582 = vpop.f32.mrb[0].mxu0
        %v1583 = vadd.f32 0.0, %v1582
        %1584 = vmatprep.mubr.bf16.mxu0 0
        %1585 = vmatmul.mubr.bf16.gmra.mrb[0].mxu0 %v1025
        %v1586 = vpop.f32.mrb[0].mxu0
        %v1587 = vadd.f32 0.0, %v1586
        %v1588 = vpop.f32.mrb[0].mxu0
        %v1589 = vadd.f32 0.0, %v1588
        %v1590 = vpop.f32.mrb[0].mxu0
        %v1591 = vadd.f32 0.0, %v1590
        %v1592 = vpop.f32.mrb[0].mxu0
        %v1593 = vadd.f32 0.0, %v1592
        %1594 = vmatprep.mubr.bf16.mxu0 0
        %1595 = vmatmul.mubr.bf16.gmra.mrb[0].mxu0 %v1028
        %v1596 = vpop.f32.mrb[0].mxu0
        %v1597 = vadd.f32 0.0, %v1596
        %v1598 = vpop.f32.mrb[0].mxu0
        %v1599 = vadd.f32 0.0, %v1598
        %v1600 = vpop.f32.mrb[0].mxu0
        %v1601 = vadd.f32 0.0, %v1600
        %v1602 = vpop.f32.mrb[0].mxu0
        %v1603 = vadd.f32 0.0, %v1602
        %1604 = vmatprep.mubr.bf16.mxu0 0
        %1605 = vmatmul.mubr.bf16.gmra.mrb[0].mxu0 %v1031
        %v1606 = vpop.f32.mrb[0].mxu0
        %v1607 = vadd.f32 0.0, %v1606
        %v1608 = vpop.f32.mrb[0].mxu0
        %v1609 = vadd.f32 0.0, %v1608
        %v1610 = vpop.f32.mrb[0].mxu0
        %v1611 = vadd.f32 0.0, %v1610
        %v1612 = vpop.f32.mrb[0].mxu0
        %v1613 = vadd.f32 0.0, %v1612
        %1614 = vmatprep.mubr.bf16.mxu0 0
        %1615 = vmatmul.mubr.bf16.gmra.mrb[0].mxu0 %v1034
        %v1616 = vpop.f32.mrb[0].mxu0
        %v1617 = vadd.f32 0.0, %v1616
        %v1618 = vpop.f32.mrb[0].mxu0
        %v1619 = vadd.f32 0.0, %v1618
        %v1620 = vpop.f32.mrb[0].mxu0
        %v1621 = vadd.f32 0.0, %v1620
        %v1622 = vpop.f32.mrb[0].mxu0
        %v1623 = vadd.f32 0.0, %v1622
        %1624 = vmatprep.mubr.bf16.mxu0 0
        %1625 = vmatmul.mubr.bf16.gmra.mrb[0].mxu0 %v1037
        %v1626 = vpop.f32.mrb[0].mxu0
        %v1627 = vadd.f32 0.0, %v1626
        %v1628 = vpop.f32.mrb[0].mxu0
        %v1629 = vadd.f32 0.0, %v1628
        %v1630 = vpop.f32.mrb[0].mxu0
        %v1631 = vadd.f32 0.0, %v1630
        %v1632 = vpop.f32.mrb[0].mxu0
        %v1633 = vadd.f32 0.0, %v1632
        %1634 = vmatprep.mubr.bf16.mxu0 0
        %1635 = vmatmul.mubr.bf16.gmra.mrb[0].mxu0 %v1040
        %v1636 = vpop.f32.mrb[0].mxu0
        %v1637 = vadd.f32 0.0, %v1636
        %v1638 = vpop.f32.mrb[0].mxu0
        %v1639 = vadd.f32 0.0, %v1638
        %v1640 = vpop.f32.mrb[0].mxu0
        %v1641 = vadd.f32 0.0, %v1640
        %v1642 = vpop.f32.mrb[0].mxu0
        %v1643 = vadd.f32 0.0, %v1642
        %1644 = vmatprep.mubr.bf16.mxu0 0
        %1645 = vmatmul.mubr.bf16.gmra.mrb[0].mxu0 %v1043
        %v1646 = vpop.f32.mrb[0].mxu0
        %v1647 = vadd.f32 0.0, %v1646
        %v1648 = vpop.f32.mrb[0].mxu0
        %v1649 = vadd.f32 0.0, %v1648
        %v1650 = vpop.f32.mrb[0].mxu0
        %v1651 = vadd.f32 0.0, %v1650
        %v1652 = vpop.f32.mrb[0].mxu0
        %v1653 = vadd.f32 0.0, %v1652
        %1654 = vmatprep.mubr.bf16.mxu0 0
        %1655 = vmatmul.mubr.bf16.gmra.mrb[0].mxu0 %v1046
        %v1656 = vpop.f32.mrb[0].mxu0
        %v1657 = vadd.f32 0.0, %v1656
        %v1658 = vpop.f32.mrb[0].mxu0
        %v1659 = vadd.f32 0.0, %v1658
        %v1660 = vpop.f32.mrb[0].mxu0
        %v1661 = vadd.f32 0.0, %v1660
        %v1662 = vpop.f32.mrb[0].mxu0
        %v1663 = vadd.f32 0.0, %v1662
        %1664 = vmatprep.mubr.bf16.mxu0 0
        %1665 = vmatmul.mubr.bf16.gmra.mrb[0].mxu0 %v1049
        %v1666 = vpop.f32.mrb[0].mxu0
        %v1667 = vadd.f32 0.0, %v1666
        %v1668 = vpop.f32.mrb[0].mxu0
        %v1669 = vadd.f32 0.0, %v1668
        %v1670 = vpop.f32.mrb[0].mxu0
        %v1671 = vadd.f32 0.0, %v1670
        %v1672 = vpop.f32.mrb[0].mxu0
        %v1673 = vadd.f32 0.0, %v1672
        %1674 = vmatprep.mubr.bf16.mxu0 0
        %1675 = vmatmul.mubr.bf16.gmra.mrb[0].mxu0 %v1052
        %v1676 = vpop.f32.mrb[0].mxu0
        %v1677 = vadd.f32 0.0, %v1676
        %v1678 = vpop.f32.mrb[0].mxu0
        %v1679 = vadd.f32 0.0, %v1678
        %v1680 = vpop.f32.mrb[0].mxu0
        %v1681 = vadd.f32 0.0, %v1680
        %v1682 = vpop.f32.mrb[0].mxu0
        %v1683 = vadd.f32 0.0, %v1682
        %1684 = vmatprep.mubr.bf16.mxu0 0
        %1685 = vmatmul.mubr.bf16.gmra.mrb[0].mxu0 %v1055
        %v1686 = vpop.f32.mrb[0].mxu0
        %v1687 = vadd.f32 0.0, %v1686
        %v1688 = vpop.f32.mrb[0].mxu0
        %v1689 = vadd.f32 0.0, %v1688
        %v1690 = vpop.f32.mrb[0].mxu0
        %v1691 = vadd.f32 0.0, %v1690
        %v1692 = vpop.f32.mrb[0].mxu0
        %v1693 = vadd.f32 0.0, %v1692
        %1694 = vmatprep.mubr.bf16.mxu0 0
        %1695 = vmatmul.mubr.bf16.gmra.mrb[0].mxu0 %v1058
        %v1696 = vpop.f32.mrb[0].mxu0
        %v1697 = vadd.f32 0.0, %v1696
        %v1698 = vpop.f32.mrb[0].mxu0
        %v1699 = vadd.f32 0.0, %v1698
        %v1700 = vpop.f32.mrb[0].mxu0
        %v1701 = vadd.f32 0.0, %v1700
        %v1702 = vpop.f32.mrb[0].mxu0
        %v1703 = vadd.f32 0.0, %v1702
        %1704 = vmatprep.mubr.bf16.mxu0 0
        %1705 = vmatmul.mubr.bf16.gmra.mrb[0].mxu0 %v1061
        %v1706 = vpop.f32.mrb[0].mxu0
        %v1707 = vadd.f32 0.0, %v1706
        %v1708 = vpop.f32.mrb[0].mxu0
        %v1709 = vadd.f32 0.0, %v1708
        %v1710 = vpop.f32.mrb[0].mxu0
        %v1711 = vadd.f32 0.0, %v1710
        %v1712 = vpop.f32.mrb[0].mxu0
        %v1713 = vadd.f32 0.0, %v1712
        %1714 = vmatprep.mubr.bf16.mxu0 0
        %1715 = vmatmul.mubr.bf16.gmra.mrb[0].mxu0 %v1064
        %v1716 = vpop.f32.mrb[0].mxu0
        %v1717 = vadd.f32 0.0, %v1716
        %v1718 = vpop.f32.mrb[0].mxu0
        %v1719 = vadd.f32 0.0, %v1718
        %v1720 = vpop.f32.mrb[0].mxu0
        %v1721 = vadd.f32 0.0, %v1720
        %v1722 = vpop.f32.mrb[0].mxu0
        %v1723 = vadd.f32 0.0, %v1722
        %1724 = vmatprep.mubr.bf16.mxu0 0
        %1725 = vmatmul.mubr.bf16.gmra.mrb[0].mxu0 %v1067
        %v1726 = vpop.f32.mrb[0].mxu0
        %v1727 = vadd.f32 0.0, %v1726
        %v1728 = vpop.f32.mrb[0].mxu0
        %v1729 = vadd.f32 0.0, %v1728
        %v1730 = vpop.f32.mrb[0].mxu0
        %v1731 = vadd.f32 0.0, %v1730
        %v1732 = vpop.f32.mrb[0].mxu0
        %v1733 = vadd.f32 0.0, %v1732
        %1734 = vmatprep.mubr.bf16.mxu0 0
        %1735 = vmatmul.mubr.bf16.gmra.mrb[0].mxu0 %v1070
        %v1736 = vpop.f32.mrb[0].mxu0
        %v1737 = vadd.f32 0.0, %v1736
        %v1738 = vpop.f32.mrb[0].mxu0
        %v1739 = vadd.f32 0.0, %v1738
        %v1740 = vpop.f32.mrb[0].mxu0
        %v1741 = vadd.f32 0.0, %v1740
        %v1742 = vpop.f32.mrb[0].mxu0
        %v1743 = vadd.f32 0.0, %v1742
        %1744 = vdwg.mxu0
        %v1745 = vpack.c.bf16 %v1111, %v1107
        %v1746 = vpack.c.bf16 %v1113, %v1109
        %v1747 = vpack.c.bf16 %v1121, %v1117
        %v1748 = vpack.c.bf16 %v1123, %v1119
        %v1749 = vpack.c.bf16 %v1131, %v1127
        %v1750 = vpack.c.bf16 %v1133, %v1129
        %v1751 = vpack.c.bf16 %v1141, %v1137
        %v1752 = vpack.c.bf16 %v1143, %v1139
        %v1753 = vpack.c.bf16 %v1151, %v1147
        %v1754 = vpack.c.bf16 %v1153, %v1149
        %v1755 = vpack.c.bf16 %v1161, %v1157
        %v1756 = vpack.c.bf16 %v1163, %v1159
        %v1757 = vpack.c.bf16 %v1171, %v1167
        %v1758 = vpack.c.bf16 %v1173, %v1169
        %v1759 = vpack.c.bf16 %v1181, %v1177
        %v1760 = vpack.c.bf16 %v1183, %v1179
        %v1761 = vpack.c.bf16 %v1191, %v1187
        %v1762 = vpack.c.bf16 %v1193, %v1189
        %v1763 = vpack.c.bf16 %v1201, %v1197
        %v1764 = vpack.c.bf16 %v1203, %v1199
        %v1765 = vpack.c.bf16 %v1211, %v1207
        %v1766 = vpack.c.bf16 %v1213, %v1209
        %v1767 = vpack.c.bf16 %v1221, %v1217
        %v1768 = vpack.c.bf16 %v1223, %v1219
        %v1769 = vpack.c.bf16 %v1231, %v1227
        %v1770 = vpack.c.bf16 %v1233, %v1229
        %v1771 = vpack.c.bf16 %v1241, %v1237
        %v1772 = vpack.c.bf16 %v1243, %v1239
        %v1773 = vpack.c.bf16 %v1251, %v1247
        %v1774 = vpack.c.bf16 %v1253, %v1249
        %v1775 = vpack.c.bf16 %v1261, %v1257
        %v1776 = vpack.c.bf16 %v1263, %v1259
        %v1777 = vpack.c.bf16 %v1271, %v1267
        %v1778 = vpack.c.bf16 %v1273, %v1269
        %v1779 = vpack.c.bf16 %v1281, %v1277
        %v1780 = vpack.c.bf16 %v1283, %v1279
        %v1781 = vpack.c.bf16 %v1291, %v1287
        %v1782 = vpack.c.bf16 %v1293, %v1289
        %v1783 = vpack.c.bf16 %v1301, %v1297
        %v1784 = vpack.c.bf16 %v1303, %v1299
        %v1785 = vpack.c.bf16 %v1311, %v1307
        %v1786 = vpack.c.bf16 %v1313, %v1309
        %v1787 = vpack.c.bf16 %v1321, %v1317
        %v1788 = vpack.c.bf16 %v1323, %v1319
        %v1789 = vpack.c.bf16 %v1331, %v1327
        %v1790 = vpack.c.bf16 %v1333, %v1329
        %v1791 = vpack.c.bf16 %v1341, %v1337
        %v1792 = vpack.c.bf16 %v1343, %v1339
        %v1793 = vpack.c.bf16 %v1351, %v1347
        %v1794 = vpack.c.bf16 %v1353, %v1349
        %v1795 = vpack.c.bf16 %v1361, %v1357
        %v1796 = vpack.c.bf16 %v1363, %v1359
        %v1797 = vpack.c.bf16 %v1371, %v1367
        %v1798 = vpack.c.bf16 %v1373, %v1369
        %v1799 = vpack.c.bf16 %v1381, %v1377
        %v1800 = vpack.c.bf16 %v1383, %v1379
        %v1801 = vpack.c.bf16 %v1391, %v1387
        %v1802 = vpack.c.bf16 %v1393, %v1389
        %v1803 = vpack.c.bf16 %v1401, %v1397
        %v1804 = vpack.c.bf16 %v1403, %v1399
        %v1805 = vpack.c.bf16 %v1411, %v1407
        %v1806 = vpack.c.bf16 %v1413, %v1409
        %v1807 = vpack.c.bf16 %v1421, %v1417
        %v1808 = vpack.c.bf16 %v1423, %v1419
        %v1809 = vpack.c.bf16 %v1431, %v1427
        %v1810 = vpack.c.bf16 %v1433, %v1429
        %v1811 = vpack.c.bf16 %v1441, %v1437
        %v1812 = vpack.c.bf16 %v1443, %v1439
        %v1813 = vpack.c.bf16 %v1451, %v1447
        %v1814 = vpack.c.bf16 %v1453, %v1449
        %v1815 = vpack.c.bf16 %v1461, %v1457
        %v1816 = vpack.c.bf16 %v1463, %v1459
        %v1817 = vpack.c.bf16 %v1471, %v1467
        %v1818 = vpack.c.bf16 %v1473, %v1469
        %v1819 = vpack.c.bf16 %v1481, %v1477
        %v1820 = vpack.c.bf16 %v1483, %v1479
        %v1821 = vpack.c.bf16 %v1491, %v1487
        %v1822 = vpack.c.bf16 %v1493, %v1489
        %v1823 = vpack.c.bf16 %v1501, %v1497
        %v1824 = vpack.c.bf16 %v1503, %v1499
        %v1825 = vpack.c.bf16 %v1511, %v1507
        %v1826 = vpack.c.bf16 %v1513, %v1509
        %v1827 = vpack.c.bf16 %v1521, %v1517
        %v1828 = vpack.c.bf16 %v1523, %v1519
        %v1829 = vpack.c.bf16 %v1531, %v1527
        %v1830 = vpack.c.bf16 %v1533, %v1529
        %v1831 = vpack.c.bf16 %v1541, %v1537
        %v1832 = vpack.c.bf16 %v1543, %v1539
        %v1833 = vpack.c.bf16 %v1551, %v1547
        %v1834 = vpack.c.bf16 %v1553, %v1549
        %v1835 = vpack.c.bf16 %v1561, %v1557
        %v1836 = vpack.c.bf16 %v1563, %v1559
        %v1837 = vpack.c.bf16 %v1571, %v1567
        %v1838 = vpack.c.bf16 %v1573, %v1569
        %v1839 = vpack.c.bf16 %v1581, %v1577
        %v1840 = vpack.c.bf16 %v1583, %v1579
        %v1841 = vpack.c.bf16 %v1591, %v1587
        %v1842 = vpack.c.bf16 %v1593, %v1589
        %v1843 = vpack.c.bf16 %v1601, %v1597
        %v1844 = vpack.c.bf16 %v1603, %v1599
        %v1845 = vpack.c.bf16 %v1611, %v1607
        %v1846 = vpack.c.bf16 %v1613, %v1609
        %v1847 = vpack.c.bf16 %v1621, %v1617
        %v1848 = vpack.c.bf16 %v1623, %v1619
        %v1849 = vpack.c.bf16 %v1631, %v1627
        %v1850 = vpack.c.bf16 %v1633, %v1629
        %v1851 = vpack.c.bf16 %v1641, %v1637
        %v1852 = vpack.c.bf16 %v1643, %v1639
        %v1853 = vpack.c.bf16 %v1651, %v1647
        %v1854 = vpack.c.bf16 %v1653, %v1649
        %v1855 = vpack.c.bf16 %v1661, %v1657
        %v1856 = vpack.c.bf16 %v1663, %v1659
        %v1857 = vpack.c.bf16 %v1671, %v1667
        %v1858 = vpack.c.bf16 %v1673, %v1669
        %v1859 = vpack.c.bf16 %v1681, %v1677
        %v1860 = vpack.c.bf16 %v1683, %v1679
        %v1861 = vpack.c.bf16 %v1691, %v1687
        %v1862 = vpack.c.bf16 %v1693, %v1689
        %v1863 = vpack.c.bf16 %v1701, %v1697
        %v1864 = vpack.c.bf16 %v1703, %v1699
        %v1865 = vpack.c.bf16 %v1711, %v1707
        %v1866 = vpack.c.bf16 %v1713, %v1709
        %v1867 = vpack.c.bf16 %v1721, %v1717
        %v1868 = vpack.c.bf16 %v1723, %v1719
        %v1869 = vpack.c.bf16 %v1731, %v1727
        %v1870 = vpack.c.bf16 %v1733, %v1729
        %v1871 = vpack.c.bf16 %v1741, %v1737
        %v1872 = vpack.c.bf16 %v1743, %v1739
        %v1873 = vld [vmem:[#allocation5] sm:$0x3]
        %v1876 = vunpack.c.l.s4 1966171168
        %v1877 = vunpack.c.0.s8 %v1876
        %v1878 = vlaneseq
        %v1879 = vshrl.u32 %v1878, 7
        %v1880 = vsub.s32 %v1877, %v1879
        %v1881 = vrot.slane %v1873, %v1880
        %v1882 = vcombine.high %v1881, %v1881
        %v1884 = vunpack.c.l.s4 1966171168
        %v1885 = vunpack.c.0.s8 %v1884
        %v1886 = vlaneseq
        %v1887 = vshrl.u32 %v1886, 7
        %v1888 = vsub.s32 %v1885, %v1887
        %v1889 = vrot.slane %v1881, %v1888
        %v1891 = vunpack.c.l.s4 1966171168
        %v1892 = vunpack.c.0.s8 %v1891
        %v1893 = vlaneseq
        %v1894 = vshrl.u32 %v1893, 7
        %v1895 = vsub.s32 %v1892, %v1894
        %v1896 = vrot.slane %v1882, %v1895
        %v1898 = vpack.i.b16 %v1889, %v1889
        %v1900 = vlaneseq
        %v1901 = vshrl.u32 %v1900, 7
        %v1902 = vsub.s32 0, %v1901
        %v1903 = vrot.slane %v1898, %v1902
        %v1905 = vpack.i.b16 %v1896, %v1896
        %v1907 = vlaneseq
        %v1908 = vshrl.u32 %v1907, 7
        %v1909 = vsub.s32 0, %v1908
        %v1910 = vrot.slane %v1905, %v1909
        %v1911 = vadd.bf16 %v1745, %v1903
        %v1912 = vadd.bf16 %v1746, %v1910
        %v1913 = vadd.bf16 %v1747, %v1903
        %v1914 = vadd.bf16 %v1748, %v1910
        %v1915 = vadd.bf16 %v1749, %v1903
        %v1916 = vadd.bf16 %v1750, %v1910
        %v1917 = vadd.bf16 %v1751, %v1903
        %v1918 = vadd.bf16 %v1752, %v1910
        %v1919 = vadd.bf16 %v1753, %v1903
        %v1920 = vadd.bf16 %v1754, %v1910
        %v1921 = vadd.bf16 %v1755, %v1903
        %v1922 = vadd.bf16 %v1756, %v1910
        %v1923 = vadd.bf16 %v1757, %v1903
        %v1924 = vadd.bf16 %v1758, %v1910
        %v1925 = vadd.bf16 %v1759, %v1903
        %v1926 = vadd.bf16 %v1760, %v1910
        %v1927 = vadd.bf16 %v1761, %v1903
        %v1928 = vadd.bf16 %v1762, %v1910
        %v1929 = vadd.bf16 %v1763, %v1903
        %v1930 = vadd.bf16 %v1764, %v1910
        %v1931 = vadd.bf16 %v1765, %v1903
        %v1932 = vadd.bf16 %v1766, %v1910
        %v1933 = vadd.bf16 %v1767, %v1903
        %v1934 = vadd.bf16 %v1768, %v1910
        %v1935 = vadd.bf16 %v1769, %v1903
        %v1936 = vadd.bf16 %v1770, %v1910
        %v1937 = vadd.bf16 %v1771, %v1903
        %v1938 = vadd.bf16 %v1772, %v1910
        %v1939 = vadd.bf16 %v1773, %v1903
        %v1940 = vadd.bf16 %v1774, %v1910
        %v1941 = vadd.bf16 %v1775, %v1903
        %v1942 = vadd.bf16 %v1776, %v1910
        %v1943 = vadd.bf16 %v1777, %v1903
        %v1944 = vadd.bf16 %v1778, %v1910
        %v1945 = vadd.bf16 %v1779, %v1903
        %v1946 = vadd.bf16 %v1780, %v1910
        %v1947 = vadd.bf16 %v1781, %v1903
        %v1948 = vadd.bf16 %v1782, %v1910
        %v1949 = vadd.bf16 %v1783, %v1903
        %v1950 = vadd.bf16 %v1784, %v1910
        %v1951 = vadd.bf16 %v1785, %v1903
        %v1952 = vadd.bf16 %v1786, %v1910
        %v1953 = vadd.bf16 %v1787, %v1903
        %v1954 = vadd.bf16 %v1788, %v1910
        %v1955 = vadd.bf16 %v1789, %v1903
        %v1956 = vadd.bf16 %v1790, %v1910
        %v1957 = vadd.bf16 %v1791, %v1903
        %v1958 = vadd.bf16 %v1792, %v1910
        %v1959 = vadd.bf16 %v1793, %v1903
        %v1960 = vadd.bf16 %v1794, %v1910
        %v1961 = vadd.bf16 %v1795, %v1903
        %v1962 = vadd.bf16 %v1796, %v1910
        %v1963 = vadd.bf16 %v1797, %v1903
        %v1964 = vadd.bf16 %v1798, %v1910
        %v1965 = vadd.bf16 %v1799, %v1903
        %v1966 = vadd.bf16 %v1800, %v1910
        %v1967 = vadd.bf16 %v1801, %v1903
        %v1968 = vadd.bf16 %v1802, %v1910
        %v1969 = vadd.bf16 %v1803, %v1903
        %v1970 = vadd.bf16 %v1804, %v1910
        %v1971 = vadd.bf16 %v1805, %v1903
        %v1972 = vadd.bf16 %v1806, %v1910
        %v1973 = vadd.bf16 %v1807, %v1903
        %v1974 = vadd.bf16 %v1808, %v1910
        %v1975 = vadd.bf16 %v1809, %v1903
        %v1976 = vadd.bf16 %v1810, %v1910
        %v1977 = vadd.bf16 %v1811, %v1903
        %v1978 = vadd.bf16 %v1812, %v1910
        %v1979 = vadd.bf16 %v1813, %v1903
        %v1980 = vadd.bf16 %v1814, %v1910
        %v1981 = vadd.bf16 %v1815, %v1903
        %v1982 = vadd.bf16 %v1816, %v1910
        %v1983 = vadd.bf16 %v1817, %v1903
        %v1984 = vadd.bf16 %v1818, %v1910
        %v1985 = vadd.bf16 %v1819, %v1903
        %v1986 = vadd.bf16 %v1820, %v1910
        %v1987 = vadd.bf16 %v1821, %v1903
        %v1988 = vadd.bf16 %v1822, %v1910
        %v1989 = vadd.bf16 %v1823, %v1903
        %v1990 = vadd.bf16 %v1824, %v1910
        %v1991 = vadd.bf16 %v1825, %v1903
        %v1992 = vadd.bf16 %v1826, %v1910
        %v1993 = vadd.bf16 %v1827, %v1903
        %v1994 = vadd.bf16 %v1828, %v1910
        %v1995 = vadd.bf16 %v1829, %v1903
        %v1996 = vadd.bf16 %v1830, %v1910
        %v1997 = vadd.bf16 %v1831, %v1903
        %v1998 = vadd.bf16 %v1832, %v1910
        %v1999 = vadd.bf16 %v1833, %v1903
        %v2000 = vadd.bf16 %v1834, %v1910
        %v2001 = vadd.bf16 %v1835, %v1903
        %v2002 = vadd.bf16 %v1836, %v1910
        %v2003 = vadd.bf16 %v1837, %v1903
        %v2004 = vadd.bf16 %v1838, %v1910
        %v2005 = vadd.bf16 %v1839, %v1903
        %v2006 = vadd.bf16 %v1840, %v1910
        %v2007 = vadd.bf16 %v1841, %v1903
        %v2008 = vadd.bf16 %v1842, %v1910
        %v2009 = vadd.bf16 %v1843, %v1903
        %v2010 = vadd.bf16 %v1844, %v1910
        %v2011 = vadd.bf16 %v1845, %v1903
        %v2012 = vadd.bf16 %v1846, %v1910
        %v2013 = vadd.bf16 %v1847, %v1903
        %v2014 = vadd.bf16 %v1848, %v1910
        %v2015 = vadd.bf16 %v1849, %v1903
        %v2016 = vadd.bf16 %v1850, %v1910
        %v2017 = vadd.bf16 %v1851, %v1903
        %v2018 = vadd.bf16 %v1852, %v1910
        %v2019 = vadd.bf16 %v1853, %v1903
        %v2020 = vadd.bf16 %v1854, %v1910
        %v2021 = vadd.bf16 %v1855, %v1903
        %v2022 = vadd.bf16 %v1856, %v1910
        %v2023 = vadd.bf16 %v1857, %v1903
        %v2024 = vadd.bf16 %v1858, %v1910
        %v2025 = vadd.bf16 %v1859, %v1903
        %v2026 = vadd.bf16 %v1860, %v1910
        %v2027 = vadd.bf16 %v1861, %v1903
        %v2028 = vadd.bf16 %v1862, %v1910
        %v2029 = vadd.bf16 %v1863, %v1903
        %v2030 = vadd.bf16 %v1864, %v1910
        %v2031 = vadd.bf16 %v1865, %v1903
        %v2032 = vadd.bf16 %v1866, %v1910
        %v2033 = vadd.bf16 %v1867, %v1903
        %v2034 = vadd.bf16 %v1868, %v1910
        %v2035 = vadd.bf16 %v1869, %v1903
        %v2036 = vadd.bf16 %v1870, %v1910
        %v2037 = vadd.bf16 %v1871, %v1903
        %v2038 = vadd.bf16 %v1872, %v1910
        %v2039 = vmax.bf16 %v1911, 0
        %v2040 = vmax.bf16 %v1912, 0
        %v2041 = vmax.bf16 %v1913, 0
        %v2042 = vmax.bf16 %v1914, 0
        %v2043 = vmax.bf16 %v1915, 0
        %v2044 = vmax.bf16 %v1916, 0
        %v2045 = vmax.bf16 %v1917, 0
        %v2046 = vmax.bf16 %v1918, 0
        %v2047 = vmax.bf16 %v1919, 0
        %v2048 = vmax.bf16 %v1920, 0
        %v2049 = vmax.bf16 %v1921, 0
        %v2050 = vmax.bf16 %v1922, 0
        %v2051 = vmax.bf16 %v1923, 0
        %v2052 = vmax.bf16 %v1924, 0
        %v2053 = vmax.bf16 %v1925, 0
        %v2054 = vmax.bf16 %v1926, 0
        %v2055 = vmax.bf16 %v1927, 0
        %v2056 = vmax.bf16 %v1928, 0
        %v2057 = vmax.bf16 %v1929, 0
        %v2058 = vmax.bf16 %v1930, 0
        %v2059 = vmax.bf16 %v1931, 0
        %v2060 = vmax.bf16 %v1932, 0
        %v2061 = vmax.bf16 %v1933, 0
        %v2062 = vmax.bf16 %v1934, 0
        %v2063 = vmax.bf16 %v1935, 0
        %v2064 = vmax.bf16 %v1936, 0
        %v2065 = vmax.bf16 %v1937, 0
        %v2066 = vmax.bf16 %v1938, 0
        %v2067 = vmax.bf16 %v1939, 0
        %v2068 = vmax.bf16 %v1940, 0
        %v2069 = vmax.bf16 %v1941, 0
        %v2070 = vmax.bf16 %v1942, 0
        %v2071 = vmax.bf16 %v1943, 0
        %v2072 = vmax.bf16 %v1944, 0
        %v2073 = vmax.bf16 %v1945, 0
        %v2074 = vmax.bf16 %v1946, 0
        %v2075 = vmax.bf16 %v1947, 0
        %v2076 = vmax.bf16 %v1948, 0
        %v2077 = vmax.bf16 %v1949, 0
        %v2078 = vmax.bf16 %v1950, 0
        %v2079 = vmax.bf16 %v1951, 0
        %v2080 = vmax.bf16 %v1952, 0
        %v2081 = vmax.bf16 %v1953, 0
        %v2082 = vmax.bf16 %v1954, 0
        %v2083 = vmax.bf16 %v1955, 0
        %v2084 = vmax.bf16 %v1956, 0
        %v2085 = vmax.bf16 %v1957, 0
        %v2086 = vmax.bf16 %v1958, 0
        %v2087 = vmax.bf16 %v1959, 0
        %v2088 = vmax.bf16 %v1960, 0
        %v2089 = vmax.bf16 %v1961, 0
        %v2090 = vmax.bf16 %v1962, 0
        %v2091 = vmax.bf16 %v1963, 0
        %v2092 = vmax.bf16 %v1964, 0
        %v2093 = vmax.bf16 %v1965, 0
        %v2094 = vmax.bf16 %v1966, 0
        %v2095 = vmax.bf16 %v1967, 0
        %v2096 = vmax.bf16 %v1968, 0
        %v2097 = vmax.bf16 %v1969, 0
        %v2098 = vmax.bf16 %v1970, 0
        %v2099 = vmax.bf16 %v1971, 0
        %v2100 = vmax.bf16 %v1972, 0
        %v2101 = vmax.bf16 %v1973, 0
        %v2102 = vmax.bf16 %v1974, 0
        %v2103 = vmax.bf16 %v1975, 0
        %v2104 = vmax.bf16 %v1976, 0
        %v2105 = vmax.bf16 %v1977, 0
        %v2106 = vmax.bf16 %v1978, 0
        %v2107 = vmax.bf16 %v1979, 0
        %v2108 = vmax.bf16 %v1980, 0
        %v2109 = vmax.bf16 %v1981, 0
        %v2110 = vmax.bf16 %v1982, 0
        %v2111 = vmax.bf16 %v1983, 0
        %v2112 = vmax.bf16 %v1984, 0
        %v2113 = vmax.bf16 %v1985, 0
        %v2114 = vmax.bf16 %v1986, 0
        %v2115 = vmax.bf16 %v1987, 0
        %v2116 = vmax.bf16 %v1988, 0
        %v2117 = vmax.bf16 %v1989, 0
        %v2118 = vmax.bf16 %v1990, 0
        %v2119 = vmax.bf16 %v1991, 0
        %v2120 = vmax.bf16 %v1992, 0
        %v2121 = vmax.bf16 %v1993, 0
        %v2122 = vmax.bf16 %v1994, 0
        %v2123 = vmax.bf16 %v1995, 0
        %v2124 = vmax.bf16 %v1996, 0
        %v2125 = vmax.bf16 %v1997, 0
        %v2126 = vmax.bf16 %v1998, 0
        %v2127 = vmax.bf16 %v1999, 0
        %v2128 = vmax.bf16 %v2000, 0
        %v2129 = vmax.bf16 %v2001, 0
        %v2130 = vmax.bf16 %v2002, 0
        %v2131 = vmax.bf16 %v2003, 0
        %v2132 = vmax.bf16 %v2004, 0
        %v2133 = vmax.bf16 %v2005, 0
        %v2134 = vmax.bf16 %v2006, 0
        %v2135 = vmax.bf16 %v2007, 0
        %v2136 = vmax.bf16 %v2008, 0
        %v2137 = vmax.bf16 %v2009, 0
        %v2138 = vmax.bf16 %v2010, 0
        %v2139 = vmax.bf16 %v2011, 0
        %v2140 = vmax.bf16 %v2012, 0
        %v2141 = vmax.bf16 %v2013, 0
        %v2142 = vmax.bf16 %v2014, 0
        %v2143 = vmax.bf16 %v2015, 0
        %v2144 = vmax.bf16 %v2016, 0
        %v2145 = vmax.bf16 %v2017, 0
        %v2146 = vmax.bf16 %v2018, 0
        %v2147 = vmax.bf16 %v2019, 0
        %v2148 = vmax.bf16 %v2020, 0
        %v2149 = vmax.bf16 %v2021, 0
        %v2150 = vmax.bf16 %v2022, 0
        %v2151 = vmax.bf16 %v2023, 0
        %v2152 = vmax.bf16 %v2024, 0
        %v2153 = vmax.bf16 %v2025, 0
        %v2154 = vmax.bf16 %v2026, 0
        %v2155 = vmax.bf16 %v2027, 0
        %v2156 = vmax.bf16 %v2028, 0
        %v2157 = vmax.bf16 %v2029, 0
        %v2158 = vmax.bf16 %v2030, 0
        %v2159 = vmax.bf16 %v2031, 0
        %v2160 = vmax.bf16 %v2032, 0
        %v2161 = vmax.bf16 %v2033, 0
        %v2162 = vmax.bf16 %v2034, 0
        %v2163 = vmax.bf16 %v2035, 0
        %v2164 = vmax.bf16 %v2036, 0
        %v2165 = vmax.bf16 %v2037, 0
        %v2166 = vmax.bf16 %v2038, 0
        %v2167 = vld [vmem:[#allocation7] sm:$0xf]
        %v2168 = vld [vmem:[#allocation7 + $0x4] sm:$0xf]
        %v2169 = vld [vmem:[#allocation7 + $0x8] sm:$0xf]
        %v2170 = vld [vmem:[#allocation7 + $0xc] sm:$0xf]
        %v2171 = vld [vmem:[#allocation7 + $0x10] sm:$0xf]
        %v2172 = vld [vmem:[#allocation7 + $0x14] sm:$0xf]
        %v2173 = vld [vmem:[#allocation7 + $0x18] sm:$0xf]
        %v2174 = vld [vmem:[#allocation7 + $0x1c] sm:$0xf]
        %v2175 = vld [vmem:[#allocation7 + $0x20] sm:$0xf]
        %v2176 = vld [vmem:[#allocation7 + $0x24] sm:$0xf]
        %v2177 = vld [vmem:[#allocation7 + $0x28] sm:$0xf]
        %v2178 = vld [vmem:[#allocation7 + $0x2c] sm:$0xf]
        %v2179 = vld [vmem:[#allocation7 + $0x30] sm:$0xf]
        %v2180 = vld [vmem:[#allocation7 + $0x34] sm:$0xf]
        %v2181 = vld [vmem:[#allocation7 + $0x38] sm:$0xf]
        %v2182 = vld [vmem:[#allocation7 + $0x3c] sm:$0xf]
        %v2183 = vld [vmem:[#allocation7 + $0x40] sm:$0xf]
        %v2184 = vld [vmem:[#allocation7 + $0x44] sm:$0xf]
        %v2185 = vld [vmem:[#allocation7 + $0x48] sm:$0xf]
        %v2186 = vld [vmem:[#allocation7 + $0x4c] sm:$0xf]
        %v2187 = vld [vmem:[#allocation7 + $0x50] sm:$0xf]
        %v2188 = vld [vmem:[#allocation7 + $0x54] sm:$0xf]
        %v2189 = vld [vmem:[#allocation7 + $0x58] sm:$0xf]
        %v2190 = vld [vmem:[#allocation7 + $0x5c] sm:$0xf]
        %v2191 = vld [vmem:[#allocation7 + $0x60] sm:$0xf]
        %v2192 = vld [vmem:[#allocation7 + $0x64] sm:$0xf]
        %v2193 = vld [vmem:[#allocation7 + $0x68] sm:$0xf]
        %v2194 = vld [vmem:[#allocation7 + $0x6c] sm:$0xf]
        %v2195 = vld [vmem:[#allocation7 + $0x70] sm:$0xf]
        %v2196 = vld [vmem:[#allocation7 + $0x74] sm:$0xf]
        %v2197 = vld [vmem:[#allocation7 + $0x78] sm:$0xf]
        %v2198 = vld [vmem:[#allocation7 + $0x7c] sm:$0xf]
        %v2231 = vunpack.c.l.b16 %v2167
        %v2232 = vunpack.c.l.b16 %v2168
        %v2233 = vunpack.c.l.b16 %v2169
        %v2234 = vunpack.c.l.b16 %v2170
        %v2235 = vunpack.c.l.b16 %v2171
        %v2236 = vunpack.c.l.b16 %v2172
        %v2237 = vunpack.c.l.b16 %v2173
        %v2238 = vunpack.c.l.b16 %v2174
        %v2239 = vunpack.c.l.b16 %v2175
        %v2240 = vunpack.c.l.b16 %v2176
        %v2241 = vunpack.c.l.b16 %v2177
        %v2242 = vunpack.c.l.b16 %v2178
        %v2243 = vunpack.c.l.b16 %v2179
        %v2244 = vunpack.c.l.b16 %v2180
        %v2245 = vunpack.c.l.b16 %v2181
        %v2246 = vunpack.c.l.b16 %v2182
        %v2247 = vunpack.c.l.b16 %v2183
        %v2248 = vunpack.c.l.b16 %v2184
        %v2249 = vunpack.c.l.b16 %v2185
        %v2250 = vunpack.c.l.b16 %v2186
        %v2251 = vunpack.c.l.b16 %v2187
        %v2252 = vunpack.c.l.b16 %v2188
        %v2253 = vunpack.c.l.b16 %v2189
        %v2254 = vunpack.c.l.b16 %v2190
        %v2255 = vunpack.c.l.b16 %v2191
        %v2256 = vunpack.c.l.b16 %v2192
        %v2257 = vunpack.c.l.b16 %v2193
        %v2258 = vunpack.c.l.b16 %v2194
        %v2259 = vunpack.c.l.b16 %v2195
        %v2260 = vunpack.c.l.b16 %v2196
        %v2261 = vunpack.c.l.b16 %v2197
        %v2262 = vunpack.c.l.b16 %v2198
        %v2263 = vpack.c.b16 %v2232, %v2231
        %v2264 = vpack.c.b16 %v2234, %v2233
        %v2265 = vpack.c.b16 %v2236, %v2235
        %v2266 = vpack.c.b16 %v2238, %v2237
        %v2267 = vpack.c.b16 %v2240, %v2239
        %v2268 = vpack.c.b16 %v2242, %v2241
        %v2269 = vpack.c.b16 %v2244, %v2243
        %v2270 = vpack.c.b16 %v2246, %v2245
        %v2271 = vpack.c.b16 %v2248, %v2247
        %v2272 = vpack.c.b16 %v2250, %v2249
        %v2273 = vpack.c.b16 %v2252, %v2251
        %v2274 = vpack.c.b16 %v2254, %v2253
        %v2275 = vpack.c.b16 %v2256, %v2255
        %v2276 = vpack.c.b16 %v2258, %v2257
        %v2277 = vpack.c.b16 %v2260, %v2259
        %v2278 = vpack.c.b16 %v2262, %v2261
        %2295 = vmatprep.subr.bf16.mxu0 0
        %2296 = vmatpush1.bf16.msra.mxu0 %v2263
        %2297 = vmatprep.subr.bf16.mxu0 0
        %2298 = vmatpush1.bf16.msra.mxu0 %v2264
        %2299 = vmatprep.subr.bf16.mxu0 0
        %2300 = vmatpush1.bf16.msra.mxu0 %v2265
        %2301 = vmatprep.subr.bf16.mxu0 0
        %2302 = vmatpush1.bf16.msra.mxu0 %v2266
        %2303 = vmatprep.subr.bf16.mxu0 0
        %2304 = vmatpush1.bf16.msra.mxu0 %v2267
        %2305 = vmatprep.subr.bf16.mxu0 0
        %2306 = vmatpush1.bf16.msra.mxu0 %v2268
        %2307 = vmatprep.subr.bf16.mxu0 0
        %2308 = vmatpush1.bf16.msra.mxu0 %v2269
        %2309 = vmatprep.subr.bf16.mxu0 0
        %2310 = vmatpush1.bf16.msra.mxu0 %v2270
        %2311 = vmatprep.subr.bf16.mxu0 0
        %2312 = vmatpush1.bf16.msra.mxu0 %v2271
        %2313 = vmatprep.subr.bf16.mxu0 0
        %2314 = vmatpush1.bf16.msra.mxu0 %v2272
        %2315 = vmatprep.subr.bf16.mxu0 0
        %2316 = vmatpush1.bf16.msra.mxu0 %v2273
        %2317 = vmatprep.subr.bf16.mxu0 0
        %2318 = vmatpush1.bf16.msra.mxu0 %v2274
        %2319 = vmatprep.subr.bf16.mxu0 0
        %2320 = vmatpush1.bf16.msra.mxu0 %v2275
        %2321 = vmatprep.subr.bf16.mxu0 0
        %2322 = vmatpush1.bf16.msra.mxu0 %v2276
        %2323 = vmatprep.subr.bf16.mxu0 0
        %2324 = vmatpush1.bf16.msra.mxu0 %v2277
        %2325 = vmatprep.subr.bf16.mxu0 0
        %2326 = vmatpush1.bf16.msra.mxu0 %v2278
        %2327 = vmatprep.mubr.bf16.mxu0 %v2040
        %2328 = vmatmul.mubr.bf16.gmra.mrb[0].mxu0 %v2039
        %v2329 = vpop.f32.mrb[0].mxu0
        %v2330 = vadd.f32 0.0, %v2329
        %v2331 = vpop.f32.mrb[0].mxu0
        %v2332 = vpop.f32.mrb[0].mxu0
        %v2333 = vadd.f32 0.0, %v2332
        %v2334 = vpop.f32.mrb[0].mxu0
        %2335 = vmatprep.mubr.bf16.mxu0 %v2042
        %2336 = vmatmul.mubr.bf16.gmra.mrb[0].mxu0 %v2041
        %v2337 = vpop.f32.mrb[0].mxu0
        %v2338 = vadd.f32 0.0, %v2337
        %v2339 = vpop.f32.mrb[0].mxu0
        %v2340 = vpop.f32.mrb[0].mxu0
        %v2341 = vadd.f32 0.0, %v2340
        %v2342 = vpop.f32.mrb[0].mxu0
        %2343 = vmatprep.mubr.bf16.mxu0 %v2044
        %2344 = vmatmul.mubr.bf16.gmra.mrb[0].mxu0 %v2043
        %v2345 = vpop.f32.mrb[0].mxu0
        %v2346 = vadd.f32 0.0, %v2345
        %v2347 = vpop.f32.mrb[0].mxu0
        %v2348 = vpop.f32.mrb[0].mxu0
        %v2349 = vadd.f32 0.0, %v2348
        %v2350 = vpop.f32.mrb[0].mxu0
        %2351 = vmatprep.mubr.bf16.mxu0 %v2046
        %2352 = vmatmul.mubr.bf16.gmra.mrb[0].mxu0 %v2045
        %v2353 = vpop.f32.mrb[0].mxu0
        %v2354 = vadd.f32 0.0, %v2353
        %v2355 = vpop.f32.mrb[0].mxu0
        %v2356 = vpop.f32.mrb[0].mxu0
        %v2357 = vadd.f32 0.0, %v2356
        %v2358 = vpop.f32.mrb[0].mxu0
        %2359 = vmatprep.mubr.bf16.mxu0 %v2048
        %2360 = vmatmul.mubr.bf16.gmra.mrb[0].mxu0 %v2047
        %v2361 = vpop.f32.mrb[0].mxu0
        %v2362 = vadd.f32 0.0, %v2361
        %v2363 = vpop.f32.mrb[0].mxu0
        %v2364 = vpop.f32.mrb[0].mxu0
        %v2365 = vadd.f32 0.0, %v2364
        %v2366 = vpop.f32.mrb[0].mxu0
        %2367 = vmatprep.mubr.bf16.mxu0 %v2050
        %2368 = vmatmul.mubr.bf16.gmra.mrb[0].mxu0 %v2049
        %v2369 = vpop.f32.mrb[0].mxu0
        %v2370 = vadd.f32 0.0, %v2369
        %v2371 = vpop.f32.mrb[0].mxu0
        %v2372 = vpop.f32.mrb[0].mxu0
        %v2373 = vadd.f32 0.0, %v2372
        %v2374 = vpop.f32.mrb[0].mxu0
        %2375 = vmatprep.mubr.bf16.mxu0 %v2052
        %2376 = vmatmul.mubr.bf16.gmra.mrb[0].mxu0 %v2051
        %v2377 = vpop.f32.mrb[0].mxu0
        %v2378 = vadd.f32 0.0, %v2377
        %v2379 = vpop.f32.mrb[0].mxu0
        %v2380 = vpop.f32.mrb[0].mxu0
        %v2381 = vadd.f32 0.0, %v2380
        %v2382 = vpop.f32.mrb[0].mxu0
        %2383 = vmatprep.mubr.bf16.mxu0 %v2054
        %2384 = vmatmul.mubr.bf16.gmra.mrb[0].mxu0 %v2053
        %v2385 = vpop.f32.mrb[0].mxu0
        %v2386 = vadd.f32 0.0, %v2385
        %v2387 = vpop.f32.mrb[0].mxu0
        %v2388 = vpop.f32.mrb[0].mxu0
        %v2389 = vadd.f32 0.0, %v2388
        %v2390 = vpop.f32.mrb[0].mxu0
        %2391 = vmatprep.mubr.bf16.mxu0 %v2056
        %2392 = vmatmul.mubr.bf16.gmra.mrb[0].mxu0 %v2055
        %v2393 = vpop.f32.mrb[0].mxu0
        %v2394 = vadd.f32 0.0, %v2393
        %v2395 = vpop.f32.mrb[0].mxu0
        %v2396 = vpop.f32.mrb[0].mxu0
        %v2397 = vadd.f32 0.0, %v2396
        %v2398 = vpop.f32.mrb[0].mxu0
        %2399 = vmatprep.mubr.bf16.mxu0 %v2058
        %2400 = vmatmul.mubr.bf16.gmra.mrb[0].mxu0 %v2057
        %v2401 = vpop.f32.mrb[0].mxu0
        %v2402 = vadd.f32 0.0, %v2401
        %v2403 = vpop.f32.mrb[0].mxu0
        %v2404 = vpop.f32.mrb[0].mxu0
        %v2405 = vadd.f32 0.0, %v2404
        %v2406 = vpop.f32.mrb[0].mxu0
        %2407 = vmatprep.mubr.bf16.mxu0 %v2060
        %2408 = vmatmul.mubr.bf16.gmra.mrb[0].mxu0 %v2059
        %v2409 = vpop.f32.mrb[0].mxu0
        %v2410 = vadd.f32 0.0, %v2409
        %v2411 = vpop.f32.mrb[0].mxu0
        %v2412 = vpop.f32.mrb[0].mxu0
        %v2413 = vadd.f32 0.0, %v2412
        %v2414 = vpop.f32.mrb[0].mxu0
        %2415 = vmatprep.mubr.bf16.mxu0 %v2062
        %2416 = vmatmul.mubr.bf16.gmra.mrb[0].mxu0 %v2061
        %v2417 = vpop.f32.mrb[0].mxu0
        %v2418 = vadd.f32 0.0, %v2417
        %v2419 = vpop.f32.mrb[0].mxu0
        %v2420 = vpop.f32.mrb[0].mxu0
        %v2421 = vadd.f32 0.0, %v2420
        %v2422 = vpop.f32.mrb[0].mxu0
        %2423 = vmatprep.mubr.bf16.mxu0 %v2064
        %2424 = vmatmul.mubr.bf16.gmra.mrb[0].mxu0 %v2063
        %v2425 = vpop.f32.mrb[0].mxu0
        %v2426 = vadd.f32 0.0, %v2425
        %v2427 = vpop.f32.mrb[0].mxu0
        %v2428 = vpop.f32.mrb[0].mxu0
        %v2429 = vadd.f32 0.0, %v2428
        %v2430 = vpop.f32.mrb[0].mxu0
        %2431 = vmatprep.mubr.bf16.mxu0 %v2066
        %2432 = vmatmul.mubr.bf16.gmra.mrb[0].mxu0 %v2065
        %v2433 = vpop.f32.mrb[0].mxu0
        %v2434 = vadd.f32 0.0, %v2433
        %v2435 = vpop.f32.mrb[0].mxu0
        %v2436 = vpop.f32.mrb[0].mxu0
        %v2437 = vadd.f32 0.0, %v2436
        %v2438 = vpop.f32.mrb[0].mxu0
        %2439 = vmatprep.mubr.bf16.mxu0 %v2068
        %2440 = vmatmul.mubr.bf16.gmra.mrb[0].mxu0 %v2067
        %v2441 = vpop.f32.mrb[0].mxu0
        %v2442 = vadd.f32 0.0, %v2441
        %v2443 = vpop.f32.mrb[0].mxu0
        %v2444 = vpop.f32.mrb[0].mxu0
        %v2445 = vadd.f32 0.0, %v2444
        %v2446 = vpop.f32.mrb[0].mxu0
        %2447 = vmatprep.mubr.bf16.mxu0 %v2070
        %2448 = vmatmul.mubr.bf16.gmra.mrb[0].mxu0 %v2069
        %v2449 = vpop.f32.mrb[0].mxu0
        %v2450 = vadd.f32 0.0, %v2449
        %v2451 = vpop.f32.mrb[0].mxu0
        %v2452 = vpop.f32.mrb[0].mxu0
        %v2453 = vadd.f32 0.0, %v2452
        %v2454 = vpop.f32.mrb[0].mxu0
        %2455 = vmatprep.mubr.bf16.mxu0 %v2072
        %2456 = vmatmul.mubr.bf16.gmra.mrb[0].mxu0 %v2071
        %v2457 = vpop.f32.mrb[0].mxu0
        %v2458 = vadd.f32 0.0, %v2457
        %v2459 = vpop.f32.mrb[0].mxu0
        %v2460 = vpop.f32.mrb[0].mxu0
        %v2461 = vadd.f32 0.0, %v2460
        %v2462 = vpop.f32.mrb[0].mxu0
        %2463 = vmatprep.mubr.bf16.mxu0 %v2074
        %2464 = vmatmul.mubr.bf16.gmra.mrb[0].mxu0 %v2073
        %v2465 = vpop.f32.mrb[0].mxu0
        %v2466 = vadd.f32 0.0, %v2465
        %v2467 = vpop.f32.mrb[0].mxu0
        %v2468 = vpop.f32.mrb[0].mxu0
        %v2469 = vadd.f32 0.0, %v2468
        %v2470 = vpop.f32.mrb[0].mxu0
        %2471 = vmatprep.mubr.bf16.mxu0 %v2076
        %2472 = vmatmul.mubr.bf16.gmra.mrb[0].mxu0 %v2075
        %v2473 = vpop.f32.mrb[0].mxu0
        %v2474 = vadd.f32 0.0, %v2473
        %v2475 = vpop.f32.mrb[0].mxu0
        %v2476 = vpop.f32.mrb[0].mxu0
        %v2477 = vadd.f32 0.0, %v2476
        %v2478 = vpop.f32.mrb[0].mxu0
        %2479 = vmatprep.mubr.bf16.mxu0 %v2078
        %2480 = vmatmul.mubr.bf16.gmra.mrb[0].mxu0 %v2077
        %v2481 = vpop.f32.mrb[0].mxu0
        %v2482 = vadd.f32 0.0, %v2481
        %v2483 = vpop.f32.mrb[0].mxu0
        %v2484 = vpop.f32.mrb[0].mxu0
        %v2485 = vadd.f32 0.0, %v2484
        %v2486 = vpop.f32.mrb[0].mxu0
        %2487 = vmatprep.mubr.bf16.mxu0 %v2080
        %2488 = vmatmul.mubr.bf16.gmra.mrb[0].mxu0 %v2079
        %v2489 = vpop.f32.mrb[0].mxu0
        %v2490 = vadd.f32 0.0, %v2489
        %v2491 = vpop.f32.mrb[0].mxu0
        %v2492 = vpop.f32.mrb[0].mxu0
        %v2493 = vadd.f32 0.0, %v2492
        %v2494 = vpop.f32.mrb[0].mxu0
        %2495 = vmatprep.mubr.bf16.mxu0 %v2082
        %2496 = vmatmul.mubr.bf16.gmra.mrb[0].mxu0 %v2081
        %v2497 = vpop.f32.mrb[0].mxu0
        %v2498 = vadd.f32 0.0, %v2497
        %v2499 = vpop.f32.mrb[0].mxu0
        %v2500 = vpop.f32.mrb[0].mxu0
        %v2501 = vadd.f32 0.0, %v2500
        %v2502 = vpop.f32.mrb[0].mxu0
        %2503 = vmatprep.mubr.bf16.mxu0 %v2084
        %2504 = vmatmul.mubr.bf16.gmra.mrb[0].mxu0 %v2083
        %v2505 = vpop.f32.mrb[0].mxu0
        %v2506 = vadd.f32 0.0, %v2505
        %v2507 = vpop.f32.mrb[0].mxu0
        %v2508 = vpop.f32.mrb[0].mxu0
        %v2509 = vadd.f32 0.0, %v2508
        %v2510 = vpop.f32.mrb[0].mxu0
        %2511 = vmatprep.mubr.bf16.mxu0 %v2086
        %2512 = vmatmul.mubr.bf16.gmra.mrb[0].mxu0 %v2085
        %v2513 = vpop.f32.mrb[0].mxu0
        %v2514 = vadd.f32 0.0, %v2513
        %v2515 = vpop.f32.mrb[0].mxu0
        %v2516 = vpop.f32.mrb[0].mxu0
        %v2517 = vadd.f32 0.0, %v2516
        %v2518 = vpop.f32.mrb[0].mxu0
        %2519 = vmatprep.mubr.bf16.mxu0 %v2088
        %2520 = vmatmul.mubr.bf16.gmra.mrb[0].mxu0 %v2087
        %v2521 = vpop.f32.mrb[0].mxu0
        %v2522 = vadd.f32 0.0, %v2521
        %v2523 = vpop.f32.mrb[0].mxu0
        %v2524 = vpop.f32.mrb[0].mxu0
        %v2525 = vadd.f32 0.0, %v2524
        %v2526 = vpop.f32.mrb[0].mxu0
        %2527 = vmatprep.mubr.bf16.mxu0 %v2090
        %2528 = vmatmul.mubr.bf16.gmra.mrb[0].mxu0 %v2089
        %v2529 = vpop.f32.mrb[0].mxu0
        %v2530 = vadd.f32 0.0, %v2529
        %v2531 = vpop.f32.mrb[0].mxu0
        %v2532 = vpop.f32.mrb[0].mxu0
        %v2533 = vadd.f32 0.0, %v2532
        %v2534 = vpop.f32.mrb[0].mxu0
        %2535 = vmatprep.mubr.bf16.mxu0 %v2092
        %2536 = vmatmul.mubr.bf16.gmra.mrb[0].mxu0 %v2091
        %v2537 = vpop.f32.mrb[0].mxu0
        %v2538 = vadd.f32 0.0, %v2537
        %v2539 = vpop.f32.mrb[0].mxu0
        %v2540 = vpop.f32.mrb[0].mxu0
        %v2541 = vadd.f32 0.0, %v2540
        %v2542 = vpop.f32.mrb[0].mxu0
        %2543 = vmatprep.mubr.bf16.mxu0 %v2094
        %2544 = vmatmul.mubr.bf16.gmra.mrb[0].mxu0 %v2093
        %v2545 = vpop.f32.mrb[0].mxu0
        %v2546 = vadd.f32 0.0, %v2545
        %v2547 = vpop.f32.mrb[0].mxu0
        %v2548 = vpop.f32.mrb[0].mxu0
        %v2549 = vadd.f32 0.0, %v2548
        %v2550 = vpop.f32.mrb[0].mxu0
        %2551 = vmatprep.mubr.bf16.mxu0 %v2096
        %2552 = vmatmul.mubr.bf16.gmra.mrb[0].mxu0 %v2095
        %v2553 = vpop.f32.mrb[0].mxu0
        %v2554 = vadd.f32 0.0, %v2553
        %v2555 = vpop.f32.mrb[0].mxu0
        %v2556 = vpop.f32.mrb[0].mxu0
        %v2557 = vadd.f32 0.0, %v2556
        %v2558 = vpop.f32.mrb[0].mxu0
        %2559 = vmatprep.mubr.bf16.mxu0 %v2098
        %2560 = vmatmul.mubr.bf16.gmra.mrb[0].mxu0 %v2097
        %v2561 = vpop.f32.mrb[0].mxu0
        %v2562 = vadd.f32 0.0, %v2561
        %v2563 = vpop.f32.mrb[0].mxu0
        %v2564 = vpop.f32.mrb[0].mxu0
        %v2565 = vadd.f32 0.0, %v2564
        %v2566 = vpop.f32.mrb[0].mxu0
        %2567 = vmatprep.mubr.bf16.mxu0 %v2100
        %2568 = vmatmul.mubr.bf16.gmra.mrb[0].mxu0 %v2099
        %v2569 = vpop.f32.mrb[0].mxu0
        %v2570 = vadd.f32 0.0, %v2569
        %v2571 = vpop.f32.mrb[0].mxu0
        %v2572 = vpop.f32.mrb[0].mxu0
        %v2573 = vadd.f32 0.0, %v2572
        %v2574 = vpop.f32.mrb[0].mxu0
        %2575 = vmatprep.mubr.bf16.mxu0 %v2102
        %2576 = vmatmul.mubr.bf16.gmra.mrb[0].mxu0 %v2101
        %v2577 = vpop.f32.mrb[0].mxu0
        %v2578 = vadd.f32 0.0, %v2577
        %v2579 = vpop.f32.mrb[0].mxu0
        %v2580 = vpop.f32.mrb[0].mxu0
        %v2581 = vadd.f32 0.0, %v2580
        %v2582 = vpop.f32.mrb[0].mxu0
        %2583 = vmatprep.mubr.bf16.mxu0 %v2104
        %2584 = vmatmul.mubr.bf16.gmra.mrb[0].mxu0 %v2103
        %v2585 = vpop.f32.mrb[0].mxu0
        %v2586 = vadd.f32 0.0, %v2585
        %v2587 = vpop.f32.mrb[0].mxu0
        %v2588 = vpop.f32.mrb[0].mxu0
        %v2589 = vadd.f32 0.0, %v2588
        %v2590 = vpop.f32.mrb[0].mxu0
        %2591 = vmatprep.mubr.bf16.mxu0 %v2106
        %2592 = vmatmul.mubr.bf16.gmra.mrb[0].mxu0 %v2105
        %v2593 = vpop.f32.mrb[0].mxu0
        %v2594 = vadd.f32 0.0, %v2593
        %v2595 = vpop.f32.mrb[0].mxu0
        %v2596 = vpop.f32.mrb[0].mxu0
        %v2597 = vadd.f32 0.0, %v2596
        %v2598 = vpop.f32.mrb[0].mxu0
        %2599 = vmatprep.mubr.bf16.mxu0 %v2108
        %2600 = vmatmul.mubr.bf16.gmra.mrb[0].mxu0 %v2107
        %v2601 = vpop.f32.mrb[0].mxu0
        %v2602 = vadd.f32 0.0, %v2601
        %v2603 = vpop.f32.mrb[0].mxu0
        %v2604 = vpop.f32.mrb[0].mxu0
        %v2605 = vadd.f32 0.0, %v2604
        %v2606 = vpop.f32.mrb[0].mxu0
        %2607 = vmatprep.mubr.bf16.mxu0 %v2110
        %2608 = vmatmul.mubr.bf16.gmra.mrb[0].mxu0 %v2109
        %v2609 = vpop.f32.mrb[0].mxu0
        %v2610 = vadd.f32 0.0, %v2609
        %v2611 = vpop.f32.mrb[0].mxu0
        %v2612 = vpop.f32.mrb[0].mxu0
        %v2613 = vadd.f32 0.0, %v2612
        %v2614 = vpop.f32.mrb[0].mxu0
        %2615 = vmatprep.mubr.bf16.mxu0 %v2112
        %2616 = vmatmul.mubr.bf16.gmra.mrb[0].mxu0 %v2111
        %v2617 = vpop.f32.mrb[0].mxu0
        %v2618 = vadd.f32 0.0, %v2617
        %v2619 = vpop.f32.mrb[0].mxu0
        %v2620 = vpop.f32.mrb[0].mxu0
        %v2621 = vadd.f32 0.0, %v2620
        %v2622 = vpop.f32.mrb[0].mxu0
        %2623 = vmatprep.mubr.bf16.mxu0 %v2114
        %2624 = vmatmul.mubr.bf16.gmra.mrb[0].mxu0 %v2113
        %v2625 = vpop.f32.mrb[0].mxu0
        %v2626 = vadd.f32 0.0, %v2625
        %v2627 = vpop.f32.mrb[0].mxu0
        %v2628 = vpop.f32.mrb[0].mxu0
        %v2629 = vadd.f32 0.0, %v2628
        %v2630 = vpop.f32.mrb[0].mxu0
        %2631 = vmatprep.mubr.bf16.mxu0 %v2116
        %2632 = vmatmul.mubr.bf16.gmra.mrb[0].mxu0 %v2115
        %v2633 = vpop.f32.mrb[0].mxu0
        %v2634 = vadd.f32 0.0, %v2633
        %v2635 = vpop.f32.mrb[0].mxu0
        %v2636 = vpop.f32.mrb[0].mxu0
        %v2637 = vadd.f32 0.0, %v2636
        %v2638 = vpop.f32.mrb[0].mxu0
        %2639 = vmatprep.mubr.bf16.mxu0 %v2118
        %2640 = vmatmul.mubr.bf16.gmra.mrb[0].mxu0 %v2117
        %v2641 = vpop.f32.mrb[0].mxu0
        %v2642 = vadd.f32 0.0, %v2641
        %v2643 = vpop.f32.mrb[0].mxu0
        %v2644 = vpop.f32.mrb[0].mxu0
        %v2645 = vadd.f32 0.0, %v2644
        %v2646 = vpop.f32.mrb[0].mxu0
        %2647 = vmatprep.mubr.bf16.mxu0 %v2120
        %2648 = vmatmul.mubr.bf16.gmra.mrb[0].mxu0 %v2119
        %v2649 = vpop.f32.mrb[0].mxu0
        %v2650 = vadd.f32 0.0, %v2649
        %v2651 = vpop.f32.mrb[0].mxu0
        %v2652 = vpop.f32.mrb[0].mxu0
        %v2653 = vadd.f32 0.0, %v2652
        %v2654 = vpop.f32.mrb[0].mxu0
        %2655 = vmatprep.mubr.bf16.mxu0 %v2122
        %2656 = vmatmul.mubr.bf16.gmra.mrb[0].mxu0 %v2121
        %v2657 = vpop.f32.mrb[0].mxu0
        %v2658 = vadd.f32 0.0, %v2657
        %v2659 = vpop.f32.mrb[0].mxu0
        %v2660 = vpop.f32.mrb[0].mxu0
        %v2661 = vadd.f32 0.0, %v2660
        %v2662 = vpop.f32.mrb[0].mxu0
        %2663 = vmatprep.mubr.bf16.mxu0 %v2124
        %2664 = vmatmul.mubr.bf16.gmra.mrb[0].mxu0 %v2123
        %v2665 = vpop.f32.mrb[0].mxu0
        %v2666 = vadd.f32 0.0, %v2665
        %v2667 = vpop.f32.mrb[0].mxu0
        %v2668 = vpop.f32.mrb[0].mxu0
        %v2669 = vadd.f32 0.0, %v2668
        %v2670 = vpop.f32.mrb[0].mxu0
        %2671 = vmatprep.mubr.bf16.mxu0 %v2126
        %2672 = vmatmul.mubr.bf16.gmra.mrb[0].mxu0 %v2125
        %v2673 = vpop.f32.mrb[0].mxu0
        %v2674 = vadd.f32 0.0, %v2673
        %v2675 = vpop.f32.mrb[0].mxu0
        %v2676 = vpop.f32.mrb[0].mxu0
        %v2677 = vadd.f32 0.0, %v2676
        %v2678 = vpop.f32.mrb[0].mxu0
        %2679 = vmatprep.mubr.bf16.mxu0 %v2128
        %2680 = vmatmul.mubr.bf16.gmra.mrb[0].mxu0 %v2127
        %v2681 = vpop.f32.mrb[0].mxu0
        %v2682 = vadd.f32 0.0, %v2681
        %v2683 = vpop.f32.mrb[0].mxu0
        %v2684 = vpop.f32.mrb[0].mxu0
        %v2685 = vadd.f32 0.0, %v2684
        %v2686 = vpop.f32.mrb[0].mxu0
        %2687 = vmatprep.mubr.bf16.mxu0 %v2130
        %2688 = vmatmul.mubr.bf16.gmra.mrb[0].mxu0 %v2129
        %v2689 = vpop.f32.mrb[0].mxu0
        %v2690 = vadd.f32 0.0, %v2689
        %v2691 = vpop.f32.mrb[0].mxu0
        %v2692 = vpop.f32.mrb[0].mxu0
        %v2693 = vadd.f32 0.0, %v2692
        %v2694 = vpop.f32.mrb[0].mxu0
        %2695 = vmatprep.mubr.bf16.mxu0 %v2132
        %2696 = vmatmul.mubr.bf16.gmra.mrb[0].mxu0 %v2131
        %v2697 = vpop.f32.mrb[0].mxu0
        %v2698 = vadd.f32 0.0, %v2697
        %v2699 = vpop.f32.mrb[0].mxu0
        %v2700 = vpop.f32.mrb[0].mxu0
        %v2701 = vadd.f32 0.0, %v2700
        %v2702 = vpop.f32.mrb[0].mxu0
        %2703 = vmatprep.mubr.bf16.mxu0 %v2134
        %2704 = vmatmul.mubr.bf16.gmra.mrb[0].mxu0 %v2133
        %v2705 = vpop.f32.mrb[0].mxu0
        %v2706 = vadd.f32 0.0, %v2705
        %v2707 = vpop.f32.mrb[0].mxu0
        %v2708 = vpop.f32.mrb[0].mxu0
        %v2709 = vadd.f32 0.0, %v2708
        %v2710 = vpop.f32.mrb[0].mxu0
        %2711 = vmatprep.mubr.bf16.mxu0 %v2136
        %2712 = vmatmul.mubr.bf16.gmra.mrb[0].mxu0 %v2135
        %v2713 = vpop.f32.mrb[0].mxu0
        %v2714 = vadd.f32 0.0, %v2713
        %v2715 = vpop.f32.mrb[0].mxu0
        %v2716 = vpop.f32.mrb[0].mxu0
        %v2717 = vadd.f32 0.0, %v2716
        %v2718 = vpop.f32.mrb[0].mxu0
        %2719 = vmatprep.mubr.bf16.mxu0 %v2138
        %2720 = vmatmul.mubr.bf16.gmra.mrb[0].mxu0 %v2137
        %v2721 = vpop.f32.mrb[0].mxu0
        %v2722 = vadd.f32 0.0, %v2721
        %v2723 = vpop.f32.mrb[0].mxu0
        %v2724 = vpop.f32.mrb[0].mxu0
        %v2725 = vadd.f32 0.0, %v2724
        %v2726 = vpop.f32.mrb[0].mxu0
        %2727 = vmatprep.mubr.bf16.mxu0 %v2140
        %2728 = vmatmul.mubr.bf16.gmra.mrb[0].mxu0 %v2139
        %v2729 = vpop.f32.mrb[0].mxu0
        %v2730 = vadd.f32 0.0, %v2729
        %v2731 = vpop.f32.mrb[0].mxu0
        %v2732 = vpop.f32.mrb[0].mxu0
        %v2733 = vadd.f32 0.0, %v2732
        %v2734 = vpop.f32.mrb[0].mxu0
        %2735 = vmatprep.mubr.bf16.mxu0 %v2142
        %2736 = vmatmul.mubr.bf16.gmra.mrb[0].mxu0 %v2141
        %v2737 = vpop.f32.mrb[0].mxu0
        %v2738 = vadd.f32 0.0, %v2737
        %v2739 = vpop.f32.mrb[0].mxu0
        %v2740 = vpop.f32.mrb[0].mxu0
        %v2741 = vadd.f32 0.0, %v2740
        %v2742 = vpop.f32.mrb[0].mxu0
        %2743 = vmatprep.mubr.bf16.mxu0 %v2144
        %2744 = vmatmul.mubr.bf16.gmra.mrb[0].mxu0 %v2143
        %v2745 = vpop.f32.mrb[0].mxu0
        %v2746 = vadd.f32 0.0, %v2745
        %v2747 = vpop.f32.mrb[0].mxu0
        %v2748 = vpop.f32.mrb[0].mxu0
        %v2749 = vadd.f32 0.0, %v2748
        %v2750 = vpop.f32.mrb[0].mxu0
        %2751 = vmatprep.mubr.bf16.mxu0 %v2146
        %2752 = vmatmul.mubr.bf16.gmra.mrb[0].mxu0 %v2145
        %v2753 = vpop.f32.mrb[0].mxu0
        %v2754 = vadd.f32 0.0, %v2753
        %v2755 = vpop.f32.mrb[0].mxu0
        %v2756 = vpop.f32.mrb[0].mxu0
        %v2757 = vadd.f32 0.0, %v2756
        %v2758 = vpop.f32.mrb[0].mxu0
        %2759 = vmatprep.mubr.bf16.mxu0 %v2148
        %2760 = vmatmul.mubr.bf16.gmra.mrb[0].mxu0 %v2147
        %v2761 = vpop.f32.mrb[0].mxu0
        %v2762 = vadd.f32 0.0, %v2761
        %v2763 = vpop.f32.mrb[0].mxu0
        %v2764 = vpop.f32.mrb[0].mxu0
        %v2765 = vadd.f32 0.0, %v2764
        %v2766 = vpop.f32.mrb[0].mxu0
        %2767 = vmatprep.mubr.bf16.mxu0 %v2150
        %2768 = vmatmul.mubr.bf16.gmra.mrb[0].mxu0 %v2149
        %v2769 = vpop.f32.mrb[0].mxu0
        %v2770 = vadd.f32 0.0, %v2769
        %v2771 = vpop.f32.mrb[0].mxu0
        %v2772 = vpop.f32.mrb[0].mxu0
        %v2773 = vadd.f32 0.0, %v2772
        %v2774 = vpop.f32.mrb[0].mxu0
        %2775 = vmatprep.mubr.bf16.mxu0 %v2152
        %2776 = vmatmul.mubr.bf16.gmra.mrb[0].mxu0 %v2151
        %v2777 = vpop.f32.mrb[0].mxu0
        %v2778 = vadd.f32 0.0, %v2777
        %v2779 = vpop.f32.mrb[0].mxu0
        %v2780 = vpop.f32.mrb[0].mxu0
        %v2781 = vadd.f32 0.0, %v2780
        %v2782 = vpop.f32.mrb[0].mxu0
        %2783 = vmatprep.mubr.bf16.mxu0 %v2154
        %2784 = vmatmul.mubr.bf16.gmra.mrb[0].mxu0 %v2153
        %v2785 = vpop.f32.mrb[0].mxu0
        %v2786 = vadd.f32 0.0, %v2785
        %v2787 = vpop.f32.mrb[0].mxu0
        %v2788 = vpop.f32.mrb[0].mxu0
        %v2789 = vadd.f32 0.0, %v2788
        %v2790 = vpop.f32.mrb[0].mxu0
        %2791 = vmatprep.mubr.bf16.mxu0 %v2156
        %2792 = vmatmul.mubr.bf16.gmra.mrb[0].mxu0 %v2155
        %v2793 = vpop.f32.mrb[0].mxu0
        %v2794 = vadd.f32 0.0, %v2793
        %v2795 = vpop.f32.mrb[0].mxu0
        %v2796 = vpop.f32.mrb[0].mxu0
        %v2797 = vadd.f32 0.0, %v2796
        %v2798 = vpop.f32.mrb[0].mxu0
        %2799 = vmatprep.mubr.bf16.mxu0 %v2158
        %2800 = vmatmul.mubr.bf16.gmra.mrb[0].mxu0 %v2157
        %v2801 = vpop.f32.mrb[0].mxu0
        %v2802 = vadd.f32 0.0, %v2801
        %v2803 = vpop.f32.mrb[0].mxu0
        %v2804 = vpop.f32.mrb[0].mxu0
        %v2805 = vadd.f32 0.0, %v2804
        %v2806 = vpop.f32.mrb[0].mxu0
        %2807 = vmatprep.mubr.bf16.mxu0 %v2160
        %2808 = vmatmul.mubr.bf16.gmra.mrb[0].mxu0 %v2159
        %v2809 = vpop.f32.mrb[0].mxu0
        %v2810 = vadd.f32 0.0, %v2809
        %v2811 = vpop.f32.mrb[0].mxu0
        %v2812 = vpop.f32.mrb[0].mxu0
        %v2813 = vadd.f32 0.0, %v2812
        %v2814 = vpop.f32.mrb[0].mxu0
        %2815 = vmatprep.mubr.bf16.mxu0 %v2162
        %2816 = vmatmul.mubr.bf16.gmra.mrb[0].mxu0 %v2161
        %v2817 = vpop.f32.mrb[0].mxu0
        %v2818 = vadd.f32 0.0, %v2817
        %v2819 = vpop.f32.mrb[0].mxu0
        %v2820 = vpop.f32.mrb[0].mxu0
        %v2821 = vadd.f32 0.0, %v2820
        %v2822 = vpop.f32.mrb[0].mxu0
        %2823 = vmatprep.mubr.bf16.mxu0 %v2164
        %2824 = vmatmul.mubr.bf16.gmra.mrb[0].mxu0 %v2163
        %v2825 = vpop.f32.mrb[0].mxu0
        %v2826 = vadd.f32 0.0, %v2825
        %v2827 = vpop.f32.mrb[0].mxu0
        %v2828 = vpop.f32.mrb[0].mxu0
        %v2829 = vadd.f32 0.0, %v2828
        %v2830 = vpop.f32.mrb[0].mxu0
        %2831 = vmatprep.mubr.bf16.mxu0 %v2166
        %2832 = vmatmul.mubr.bf16.gmra.mrb[0].mxu0 %v2165
        %v2833 = vpop.f32.mrb[0].mxu0
        %v2834 = vadd.f32 0.0, %v2833
        %v2835 = vpop.f32.mrb[0].mxu0
        %v2836 = vpop.f32.mrb[0].mxu0
        %v2837 = vadd.f32 0.0, %v2836
        %v2838 = vpop.f32.mrb[0].mxu0
        %2839 = vdwg.mxu0
        %v2840 = vpack.c.bf16 %v2333, %v2330
        %v2841 = vpack.c.bf16 %v2341, %v2338
        %v2842 = vpack.c.bf16 %v2349, %v2346
        %v2843 = vpack.c.bf16 %v2357, %v2354
        %v2844 = vpack.c.bf16 %v2365, %v2362
        %v2845 = vpack.c.bf16 %v2373, %v2370
        %v2846 = vpack.c.bf16 %v2381, %v2378
        %v2847 = vpack.c.bf16 %v2389, %v2386
        %v2848 = vpack.c.bf16 %v2397, %v2394
        %v2849 = vpack.c.bf16 %v2405, %v2402
        %v2850 = vpack.c.bf16 %v2413, %v2410
        %v2851 = vpack.c.bf16 %v2421, %v2418
        %v2852 = vpack.c.bf16 %v2429, %v2426
        %v2853 = vpack.c.bf16 %v2437, %v2434
        %v2854 = vpack.c.bf16 %v2445, %v2442
        %v2855 = vpack.c.bf16 %v2453, %v2450
        %v2856 = vpack.c.bf16 %v2461, %v2458
        %v2857 = vpack.c.bf16 %v2469, %v2466
        %v2858 = vpack.c.bf16 %v2477, %v2474
        %v2859 = vpack.c.bf16 %v2485, %v2482
        %v2860 = vpack.c.bf16 %v2493, %v2490
        %v2861 = vpack.c.bf16 %v2501, %v2498
        %v2862 = vpack.c.bf16 %v2509, %v2506
        %v2863 = vpack.c.bf16 %v2517, %v2514
        %v2864 = vpack.c.bf16 %v2525, %v2522
        %v2865 = vpack.c.bf16 %v2533, %v2530
        %v2866 = vpack.c.bf16 %v2541, %v2538
        %v2867 = vpack.c.bf16 %v2549, %v2546
        %v2868 = vpack.c.bf16 %v2557, %v2554
        %v2869 = vpack.c.bf16 %v2565, %v2562
        %v2870 = vpack.c.bf16 %v2573, %v2570
        %v2871 = vpack.c.bf16 %v2581, %v2578
        %v2872 = vpack.c.bf16 %v2589, %v2586
        %v2873 = vpack.c.bf16 %v2597, %v2594
        %v2874 = vpack.c.bf16 %v2605, %v2602
        %v2875 = vpack.c.bf16 %v2613, %v2610
        %v2876 = vpack.c.bf16 %v2621, %v2618
        %v2877 = vpack.c.bf16 %v2629, %v2626
        %v2878 = vpack.c.bf16 %v2637, %v2634
        %v2879 = vpack.c.bf16 %v2645, %v2642
        %v2880 = vpack.c.bf16 %v2653, %v2650
        %v2881 = vpack.c.bf16 %v2661, %v2658
        %v2882 = vpack.c.bf16 %v2669, %v2666
        %v2883 = vpack.c.bf16 %v2677, %v2674
        %v2884 = vpack.c.bf16 %v2685, %v2682
        %v2885 = vpack.c.bf16 %v2693, %v2690
        %v2886 = vpack.c.bf16 %v2701, %v2698
        %v2887 = vpack.c.bf16 %v2709, %v2706
        %v2888 = vpack.c.bf16 %v2717, %v2714
        %v2889 = vpack.c.bf16 %v2725, %v2722
        %v2890 = vpack.c.bf16 %v2733, %v2730
        %v2891 = vpack.c.bf16 %v2741, %v2738
        %v2892 = vpack.c.bf16 %v2749, %v2746
        %v2893 = vpack.c.bf16 %v2757, %v2754
        %v2894 = vpack.c.bf16 %v2765, %v2762
        %v2895 = vpack.c.bf16 %v2773, %v2770
        %v2896 = vpack.c.bf16 %v2781, %v2778
        %v2897 = vpack.c.bf16 %v2789, %v2786
        %v2898 = vpack.c.bf16 %v2797, %v2794
        %v2899 = vpack.c.bf16 %v2805, %v2802
        %v2900 = vpack.c.bf16 %v2813, %v2810
        %v2901 = vpack.c.bf16 %v2821, %v2818
        %v2902 = vpack.c.bf16 %v2829, %v2826
        %v2903 = vpack.c.bf16 %v2837, %v2834
        %v2904 = vld [vmem:[#allocation8] sm:$0x1]
        %v2906 = vpack.i.b16 %v2904, %v2904
        %v2908 = vlaneseq
        %v2909 = vshrl.u32 %v2908, 7
        %v2910 = vsub.s32 0, %v2909
        %v2911 = vrot.slane %v2906, %v2910
        %v2912 = vadd.bf16 %v2840, %v2911
        %v2913 = vadd.bf16 %v2841, %v2911
        %v2914 = vadd.bf16 %v2842, %v2911
        %v2915 = vadd.bf16 %v2843, %v2911
        %v2916 = vadd.bf16 %v2844, %v2911
        %v2917 = vadd.bf16 %v2845, %v2911
        %v2918 = vadd.bf16 %v2846, %v2911
        %v2919 = vadd.bf16 %v2847, %v2911
        %v2920 = vadd.bf16 %v2848, %v2911
        %v2921 = vadd.bf16 %v2849, %v2911
        %v2922 = vadd.bf16 %v2850, %v2911
        %v2923 = vadd.bf16 %v2851, %v2911
        %v2924 = vadd.bf16 %v2852, %v2911
        %v2925 = vadd.bf16 %v2853, %v2911
        %v2926 = vadd.bf16 %v2854, %v2911
        %v2927 = vadd.bf16 %v2855, %v2911
        %v2928 = vadd.bf16 %v2856, %v2911
        %v2929 = vadd.bf16 %v2857, %v2911
        %v2930 = vadd.bf16 %v2858, %v2911
        %v2931 = vadd.bf16 %v2859, %v2911
        %v2932 = vadd.bf16 %v2860, %v2911
        %v2933 = vadd.bf16 %v2861, %v2911
        %v2934 = vadd.bf16 %v2862, %v2911
        %v2935 = vadd.bf16 %v2863, %v2911
        %v2936 = vadd.bf16 %v2864, %v2911
        %v2937 = vadd.bf16 %v2865, %v2911
        %v2938 = vadd.bf16 %v2866, %v2911
        %v2939 = vadd.bf16 %v2867, %v2911
        %v2940 = vadd.bf16 %v2868, %v2911
        %v2941 = vadd.bf16 %v2869, %v2911
        %v2942 = vadd.bf16 %v2870, %v2911
        %v2943 = vadd.bf16 %v2871, %v2911
        %v2944 = vadd.bf16 %v2872, %v2911
        %v2945 = vadd.bf16 %v2873, %v2911
        %v2946 = vadd.bf16 %v2874, %v2911
        %v2947 = vadd.bf16 %v2875, %v2911
        %v2948 = vadd.bf16 %v2876, %v2911
        %v2949 = vadd.bf16 %v2877, %v2911
        %v2950 = vadd.bf16 %v2878, %v2911
        %v2951 = vadd.bf16 %v2879, %v2911
        %v2952 = vadd.bf16 %v2880, %v2911
        %v2953 = vadd.bf16 %v2881, %v2911
        %v2954 = vadd.bf16 %v2882, %v2911
        %v2955 = vadd.bf16 %v2883, %v2911
        %v2956 = vadd.bf16 %v2884, %v2911
        %v2957 = vadd.bf16 %v2885, %v2911
        %v2958 = vadd.bf16 %v2886, %v2911
        %v2959 = vadd.bf16 %v2887, %v2911
        %v2960 = vadd.bf16 %v2888, %v2911
        %v2961 = vadd.bf16 %v2889, %v2911
        %v2962 = vadd.bf16 %v2890, %v2911
        %v2963 = vadd.bf16 %v2891, %v2911
        %v2964 = vadd.bf16 %v2892, %v2911
        %v2965 = vadd.bf16 %v2893, %v2911
        %v2966 = vadd.bf16 %v2894, %v2911
        %v2967 = vadd.bf16 %v2895, %v2911
        %v2968 = vadd.bf16 %v2896, %v2911
        %v2969 = vadd.bf16 %v2897, %v2911
        %v2970 = vadd.bf16 %v2898, %v2911
        %v2971 = vadd.bf16 %v2899, %v2911
        %v2972 = vadd.bf16 %v2900, %v2911
        %v2973 = vadd.bf16 %v2901, %v2911
        %v2974 = vadd.bf16 %v2902, %v2911
        %v2975 = vadd.bf16 %v2903, %v2911
        %v2976 = vmax.bf16 %v2912, 0
        %v2977 = vmax.bf16 %v2913, 0
        %v2978 = vmax.bf16 %v2914, 0
        %v2979 = vmax.bf16 %v2915, 0
        %v2980 = vmax.bf16 %v2916, 0
        %v2981 = vmax.bf16 %v2917, 0
        %v2982 = vmax.bf16 %v2918, 0
        %v2983 = vmax.bf16 %v2919, 0
        %v2984 = vmax.bf16 %v2920, 0
        %v2985 = vmax.bf16 %v2921, 0
        %v2986 = vmax.bf16 %v2922, 0
        %v2987 = vmax.bf16 %v2923, 0
        %v2988 = vmax.bf16 %v2924, 0
        %v2989 = vmax.bf16 %v2925, 0
        %v2990 = vmax.bf16 %v2926, 0
        %v2991 = vmax.bf16 %v2927, 0
        %v2992 = vmax.bf16 %v2928, 0
        %v2993 = vmax.bf16 %v2929, 0
        %v2994 = vmax.bf16 %v2930, 0
        %v2995 = vmax.bf16 %v2931, 0
        %v2996 = vmax.bf16 %v2932, 0
        %v2997 = vmax.bf16 %v2933, 0
        %v2998 = vmax.bf16 %v2934, 0
        %v2999 = vmax.bf16 %v2935, 0
        %v3000 = vmax.bf16 %v2936, 0
        %v3001 = vmax.bf16 %v2937, 0
        %v3002 = vmax.bf16 %v2938, 0
        %v3003 = vmax.bf16 %v2939, 0
        %v3004 = vmax.bf16 %v2940, 0
        %v3005 = vmax.bf16 %v2941, 0
        %v3006 = vmax.bf16 %v2942, 0
        %v3007 = vmax.bf16 %v2943, 0
        %v3008 = vmax.bf16 %v2944, 0
        %v3009 = vmax.bf16 %v2945, 0
        %v3010 = vmax.bf16 %v2946, 0
        %v3011 = vmax.bf16 %v2947, 0
        %v3012 = vmax.bf16 %v2948, 0
        %v3013 = vmax.bf16 %v2949, 0
        %v3014 = vmax.bf16 %v2950, 0
        %v3015 = vmax.bf16 %v2951, 0
        %v3016 = vmax.bf16 %v2952, 0
        %v3017 = vmax.bf16 %v2953, 0
        %v3018 = vmax.bf16 %v2954, 0
        %v3019 = vmax.bf16 %v2955, 0
        %v3020 = vmax.bf16 %v2956, 0
        %v3021 = vmax.bf16 %v2957, 0
        %v3022 = vmax.bf16 %v2958, 0
        %v3023 = vmax.bf16 %v2959, 0
        %v3024 = vmax.bf16 %v2960, 0
        %v3025 = vmax.bf16 %v2961, 0
        %v3026 = vmax.bf16 %v2962, 0
        %v3027 = vmax.bf16 %v2963, 0
        %v3028 = vmax.bf16 %v2964, 0
        %v3029 = vmax.bf16 %v2965, 0
        %v3030 = vmax.bf16 %v2966, 0
        %v3031 = vmax.bf16 %v2967, 0
        %v3032 = vmax.bf16 %v2968, 0
        %v3033 = vmax.bf16 %v2969, 0
        %v3034 = vmax.bf16 %v2970, 0
        %v3035 = vmax.bf16 %v2971, 0
        %v3036 = vmax.bf16 %v2972, 0
        %v3037 = vmax.bf16 %v2973, 0
        %v3038 = vmax.bf16 %v2974, 0
        %v3039 = vmax.bf16 %v2975, 0
        %v3040 = vld [vmem:[%s5] sm:$0xf]
        %v3041 = vld [vmem:[%s5 + $0x4] sm:$0xf]
        %v3042 = vld [vmem:[%s5 + $0x8] sm:$0xf]
        %v3043 = vld [vmem:[%s5 + $0xc] sm:$0xf]
        %v3044 = vld [vmem:[%s5 + $0x10] sm:$0xf]
        %v3045 = vld [vmem:[%s5 + $0x14] sm:$0xf]
        %v3046 = vld [vmem:[%s5 + $0x18] sm:$0xf]
        %v3047 = vld [vmem:[%s5 + $0x1c] sm:$0xf]
        %v3048 = vld [vmem:[%s5 + $0x20] sm:$0xf]
        %v3049 = vld [vmem:[%s5 + $0x24] sm:$0xf]
        %v3050 = vld [vmem:[%s5 + $0x28] sm:$0xf]
        %v3051 = vld [vmem:[%s5 + $0x2c] sm:$0xf]
        %v3052 = vld [vmem:[%s5 + $0x30] sm:$0xf]
        %v3053 = vld [vmem:[%s5 + $0x34] sm:$0xf]
        %v3054 = vld [vmem:[%s5 + $0x38] sm:$0xf]
        %v3055 = vld [vmem:[%s5 + $0x3c] sm:$0xf]
        %v3056 = vld [vmem:[#allocation10] sm:$0x1]
        %v3058 = vlaneseq
        %v3059 = vshrl.u32 %v3058, 7
        %v3060 = vsub.s32 0, %v3059
        %v3061 = vrot.slane %v3056, %v3060
        %v3079 = vunpack.c.l.b16 %v3040
        %v3080 = vunpack.c.l.b16 %v3041
        %v3081 = vunpack.c.l.b16 %v3042
        %v3082 = vunpack.c.l.b16 %v3043
        %v3083 = vunpack.c.l.b16 %v3044
        %v3084 = vunpack.c.l.b16 %v3045
        %v3085 = vunpack.c.l.b16 %v3046
        %v3086 = vunpack.c.l.b16 %v3047
        %v3087 = vunpack.c.l.b16 %v3048
        %v3088 = vunpack.c.l.b16 %v3049
        %v3089 = vunpack.c.l.b16 %v3050
        %v3090 = vunpack.c.l.b16 %v3051
        %v3091 = vunpack.c.l.b16 %v3052
        %v3092 = vunpack.c.l.b16 %v3053
        %v3093 = vunpack.c.l.b16 %v3054
        %v3094 = vunpack.c.l.b16 %v3055
        %v3095 = vpack.c.b16 %v3080, %v3079
        %v3096 = vpack.c.b16 %v3082, %v3081
        %v3097 = vpack.c.b16 %v3084, %v3083
        %v3098 = vpack.c.b16 %v3086, %v3085
        %v3099 = vpack.c.b16 %v3088, %v3087
        %v3100 = vpack.c.b16 %v3090, %v3089
        %v3101 = vpack.c.b16 %v3092, %v3091
        %v3102 = vpack.c.b16 %v3094, %v3093
        %3111 = vmatprep.subr.bf16.mxu0 0
        %3112 = vmatpush1.bf16.msra.mxu0 %v3095
        %3113 = vmatprep.subr.bf16.mxu0 0
        %3114 = vmatpush1.bf16.msra.mxu0 %v3096
        %3115 = vmatprep.subr.bf16.mxu0 0
        %3116 = vmatpush1.bf16.msra.mxu0 %v3097
        %3117 = vmatprep.subr.bf16.mxu0 0
        %3118 = vmatpush1.bf16.msra.mxu0 %v3098
        %3119 = vmatprep.subr.bf16.mxu0 0
        %3120 = vmatpush1.bf16.msra.mxu0 %v3099
        %3121 = vmatprep.subr.bf16.mxu0 0
        %3122 = vmatpush1.bf16.msra.mxu0 %v3100
        %3123 = vmatprep.subr.bf16.mxu0 0
        %3124 = vmatpush1.bf16.msra.mxu0 %v3101
        %3125 = vmatprep.subr.bf16.mxu0 0
        %3126 = vmatpush1.bf16.msra.mxu0 %v3102
        %3127 = vmatprep.subr.bf16.mxu0 0
        %3128 = vmatpush1.bf16.msra.mxu0 0
        %3129 = vmatprep.subr.bf16.mxu0 0
        %3130 = vmatpush1.bf16.msra.mxu0 0
        %3131 = vmatprep.subr.bf16.mxu0 0
        %3132 = vmatpush1.bf16.msra.mxu0 0
        %3133 = vmatprep.subr.bf16.mxu0 0
        %3134 = vmatpush1.bf16.msra.mxu0 0
        %3135 = vmatprep.subr.bf16.mxu0 0
        %3136 = vmatpush1.bf16.msra.mxu0 0
        %3137 = vmatprep.subr.bf16.mxu0 0
        %3138 = vmatpush1.bf16.msra.mxu0 0
        %3139 = vmatprep.subr.bf16.mxu0 0
        %3140 = vmatpush1.bf16.msra.mxu0 0
        %3141 = vmatprep.subr.bf16.mxu0 0
        %3142 = vmatpush1.bf16.msra.mxu0 0
        %3143 = vmatprep.mubr.bf16.mxu0 0
        %3144 = vmatmul.mubr.bf16.gmra.mrb[0].mxu0 %v2976
        %v3145 = vpop.f32.mrb[0].mxu0
        %v3146 = vadd.f32 %v3061, %v3145
        %v3147 = vpop.f32.mrb[0].mxu0
        %v3148 = vpop.f32.mrb[0].mxu0
        %v3149 = vadd.f32 %v3061, %v3148
        %v3150 = vpop.f32.mrb[0].mxu0
        %3151 = vmatprep.mubr.bf16.mxu0 0
        %3152 = vmatmul.mubr.bf16.gmra.mrb[0].mxu0 %v2977
        %v3153 = vpop.f32.mrb[0].mxu0
        %v3154 = vadd.f32 %v3061, %v3153
        %v3155 = vpop.f32.mrb[0].mxu0
        %v3156 = vpop.f32.mrb[0].mxu0
        %v3157 = vadd.f32 %v3061, %v3156
        %v3158 = vpop.f32.mrb[0].mxu0
        %3159 = vmatprep.mubr.bf16.mxu0 0
        %3160 = vmatmul.mubr.bf16.gmra.mrb[0].mxu0 %v2978
        %v3161 = vpop.f32.mrb[0].mxu0
        %v3162 = vadd.f32 %v3061, %v3161
        %v3163 = vpop.f32.mrb[0].mxu0
        %v3164 = vpop.f32.mrb[0].mxu0
        %v3165 = vadd.f32 %v3061, %v3164
        %v3166 = vpop.f32.mrb[0].mxu0
        %3167 = vmatprep.mubr.bf16.mxu0 0
        %3168 = vmatmul.mubr.bf16.gmra.mrb[0].mxu0 %v2979
        %v3169 = vpop.f32.mrb[0].mxu0
        %v3170 = vadd.f32 %v3061, %v3169
        %v3171 = vpop.f32.mrb[0].mxu0
        %v3172 = vpop.f32.mrb[0].mxu0
        %v3173 = vadd.f32 %v3061, %v3172
        %v3174 = vpop.f32.mrb[0].mxu0
        %3175 = vmatprep.mubr.bf16.mxu0 0
        %3176 = vmatmul.mubr.bf16.gmra.mrb[0].mxu0 %v2980
        %v3177 = vpop.f32.mrb[0].mxu0
        %v3178 = vadd.f32 %v3061, %v3177
        %v3179 = vpop.f32.mrb[0].mxu0
        %v3180 = vpop.f32.mrb[0].mxu0
        %v3181 = vadd.f32 %v3061, %v3180
        %v3182 = vpop.f32.mrb[0].mxu0
        %3183 = vmatprep.mubr.bf16.mxu0 0
        %3184 = vmatmul.mubr.bf16.gmra.mrb[0].mxu0 %v2981
        %v3185 = vpop.f32.mrb[0].mxu0
        %v3186 = vadd.f32 %v3061, %v3185
        %v3187 = vpop.f32.mrb[0].mxu0
        %v3188 = vpop.f32.mrb[0].mxu0
        %v3189 = vadd.f32 %v3061, %v3188
        %v3190 = vpop.f32.mrb[0].mxu0
        %3191 = vmatprep.mubr.bf16.mxu0 0
        %3192 = vmatmul.mubr.bf16.gmra.mrb[0].mxu0 %v2982
        %v3193 = vpop.f32.mrb[0].mxu0
        %v3194 = vadd.f32 %v3061, %v3193
        %v3195 = vpop.f32.mrb[0].mxu0
        %v3196 = vpop.f32.mrb[0].mxu0
        %v3197 = vadd.f32 %v3061, %v3196
        %v3198 = vpop.f32.mrb[0].mxu0
        %3199 = vmatprep.mubr.bf16.mxu0 0
        %3200 = vmatmul.mubr.bf16.gmra.mrb[0].mxu0 %v2983
        %v3201 = vpop.f32.mrb[0].mxu0
        %v3202 = vadd.f32 %v3061, %v3201
        %v3203 = vpop.f32.mrb[0].mxu0
        %v3204 = vpop.f32.mrb[0].mxu0
        %v3205 = vadd.f32 %v3061, %v3204
        %v3206 = vpop.f32.mrb[0].mxu0
        %3207 = vmatprep.mubr.bf16.mxu0 0
        %3208 = vmatmul.mubr.bf16.gmra.mrb[0].mxu0 %v2984
        %v3209 = vpop.f32.mrb[0].mxu0
        %v3210 = vadd.f32 %v3061, %v3209
        %v3211 = vpop.f32.mrb[0].mxu0
        %v3212 = vpop.f32.mrb[0].mxu0
        %v3213 = vadd.f32 %v3061, %v3212
        %v3214 = vpop.f32.mrb[0].mxu0
        %3215 = vmatprep.mubr.bf16.mxu0 0
        %3216 = vmatmul.mubr.bf16.gmra.mrb[0].mxu0 %v2985
        %v3217 = vpop.f32.mrb[0].mxu0
        %v3218 = vadd.f32 %v3061, %v3217
        %v3219 = vpop.f32.mrb[0].mxu0
        %v3220 = vpop.f32.mrb[0].mxu0
        %v3221 = vadd.f32 %v3061, %v3220
        %v3222 = vpop.f32.mrb[0].mxu0
        %3223 = vmatprep.mubr.bf16.mxu0 0
        %3224 = vmatmul.mubr.bf16.gmra.mrb[0].mxu0 %v2986
        %v3225 = vpop.f32.mrb[0].mxu0
        %v3226 = vadd.f32 %v3061, %v3225
        %v3227 = vpop.f32.mrb[0].mxu0
        %v3228 = vpop.f32.mrb[0].mxu0
        %v3229 = vadd.f32 %v3061, %v3228
        %v3230 = vpop.f32.mrb[0].mxu0
        %3231 = vmatprep.mubr.bf16.mxu0 0
        %3232 = vmatmul.mubr.bf16.gmra.mrb[0].mxu0 %v2987
        %v3233 = vpop.f32.mrb[0].mxu0
        %v3234 = vadd.f32 %v3061, %v3233
        %v3235 = vpop.f32.mrb[0].mxu0
        %v3236 = vpop.f32.mrb[0].mxu0
        %v3237 = vadd.f32 %v3061, %v3236
        %v3238 = vpop.f32.mrb[0].mxu0
        %3239 = vmatprep.mubr.bf16.mxu0 0
        %3240 = vmatmul.mubr.bf16.gmra.mrb[0].mxu0 %v2988
        %v3241 = vpop.f32.mrb[0].mxu0
        %v3242 = vadd.f32 %v3061, %v3241
        %v3243 = vpop.f32.mrb[0].mxu0
        %v3244 = vpop.f32.mrb[0].mxu0
        %v3245 = vadd.f32 %v3061, %v3244
        %v3246 = vpop.f32.mrb[0].mxu0
        %3247 = vmatprep.mubr.bf16.mxu0 0
        %3248 = vmatmul.mubr.bf16.gmra.mrb[0].mxu0 %v2989
        %v3249 = vpop.f32.mrb[0].mxu0
        %v3250 = vadd.f32 %v3061, %v3249
        %v3251 = vpop.f32.mrb[0].mxu0
        %v3252 = vpop.f32.mrb[0].mxu0
        %v3253 = vadd.f32 %v3061, %v3252
        %v3254 = vpop.f32.mrb[0].mxu0
        %3255 = vmatprep.mubr.bf16.mxu0 0
        %3256 = vmatmul.mubr.bf16.gmra.mrb[0].mxu0 %v2990
        %v3257 = vpop.f32.mrb[0].mxu0
        %v3258 = vadd.f32 %v3061, %v3257
        %v3259 = vpop.f32.mrb[0].mxu0
        %v3260 = vpop.f32.mrb[0].mxu0
        %v3261 = vadd.f32 %v3061, %v3260
        %v3262 = vpop.f32.mrb[0].mxu0
        %3263 = vmatprep.mubr.bf16.mxu0 0
        %3264 = vmatmul.mubr.bf16.gmra.mrb[0].mxu0 %v2991
        %v3265 = vpop.f32.mrb[0].mxu0
        %v3266 = vadd.f32 %v3061, %v3265
        %v3267 = vpop.f32.mrb[0].mxu0
        %v3268 = vpop.f32.mrb[0].mxu0
        %v3269 = vadd.f32 %v3061, %v3268
        %v3270 = vpop.f32.mrb[0].mxu0
        %3271 = vmatprep.mubr.bf16.mxu0 0
        %3272 = vmatmul.mubr.bf16.gmra.mrb[0].mxu0 %v2992
        %v3273 = vpop.f32.mrb[0].mxu0
        %v3274 = vadd.f32 %v3061, %v3273
        %v3275 = vpop.f32.mrb[0].mxu0
        %v3276 = vpop.f32.mrb[0].mxu0
        %v3277 = vadd.f32 %v3061, %v3276
        %v3278 = vpop.f32.mrb[0].mxu0
        %3279 = vmatprep.mubr.bf16.mxu0 0
        %3280 = vmatmul.mubr.bf16.gmra.mrb[0].mxu0 %v2993
        %v3281 = vpop.f32.mrb[0].mxu0
        %v3282 = vadd.f32 %v3061, %v3281
        %v3283 = vpop.f32.mrb[0].mxu0
        %v3284 = vpop.f32.mrb[0].mxu0
        %v3285 = vadd.f32 %v3061, %v3284
        %v3286 = vpop.f32.mrb[0].mxu0
        %3287 = vmatprep.mubr.bf16.mxu0 0
        %3288 = vmatmul.mubr.bf16.gmra.mrb[0].mxu0 %v2994
        %v3289 = vpop.f32.mrb[0].mxu0
        %v3290 = vadd.f32 %v3061, %v3289
        %v3291 = vpop.f32.mrb[0].mxu0
        %v3292 = vpop.f32.mrb[0].mxu0
        %v3293 = vadd.f32 %v3061, %v3292
        %v3294 = vpop.f32.mrb[0].mxu0
        %3295 = vmatprep.mubr.bf16.mxu0 0
        %3296 = vmatmul.mubr.bf16.gmra.mrb[0].mxu0 %v2995
        %v3297 = vpop.f32.mrb[0].mxu0
        %v3298 = vadd.f32 %v3061, %v3297
        %v3299 = vpop.f32.mrb[0].mxu0
        %v3300 = vpop.f32.mrb[0].mxu0
        %v3301 = vadd.f32 %v3061, %v3300
        %v3302 = vpop.f32.mrb[0].mxu0
        %3303 = vmatprep.mubr.bf16.mxu0 0
        %3304 = vmatmul.mubr.bf16.gmra.mrb[0].mxu0 %v2996
        %v3305 = vpop.f32.mrb[0].mxu0
        %v3306 = vadd.f32 %v3061, %v3305
        %v3307 = vpop.f32.mrb[0].mxu0
        %v3308 = vpop.f32.mrb[0].mxu0
        %v3309 = vadd.f32 %v3061, %v3308
        %v3310 = vpop.f32.mrb[0].mxu0
        %3311 = vmatprep.mubr.bf16.mxu0 0
        %3312 = vmatmul.mubr.bf16.gmra.mrb[0].mxu0 %v2997
        %v3313 = vpop.f32.mrb[0].mxu0
        %v3314 = vadd.f32 %v3061, %v3313
        %v3315 = vpop.f32.mrb[0].mxu0
        %v3316 = vpop.f32.mrb[0].mxu0
        %v3317 = vadd.f32 %v3061, %v3316
        %v3318 = vpop.f32.mrb[0].mxu0
        %3319 = vmatprep.mubr.bf16.mxu0 0
        %3320 = vmatmul.mubr.bf16.gmra.mrb[0].mxu0 %v2998
        %v3321 = vpop.f32.mrb[0].mxu0
        %v3322 = vadd.f32 %v3061, %v3321
        %v3323 = vpop.f32.mrb[0].mxu0
        %v3324 = vpop.f32.mrb[0].mxu0
        %v3325 = vadd.f32 %v3061, %v3324
        %v3326 = vpop.f32.mrb[0].mxu0
        %3327 = vmatprep.mubr.bf16.mxu0 0
        %3328 = vmatmul.mubr.bf16.gmra.mrb[0].mxu0 %v2999
        %v3329 = vpop.f32.mrb[0].mxu0
        %v3330 = vadd.f32 %v3061, %v3329
        %v3331 = vpop.f32.mrb[0].mxu0
        %v3332 = vpop.f32.mrb[0].mxu0
        %v3333 = vadd.f32 %v3061, %v3332
        %v3334 = vpop.f32.mrb[0].mxu0
        %3335 = vmatprep.mubr.bf16.mxu0 0
        %3336 = vmatmul.mubr.bf16.gmra.mrb[0].mxu0 %v3000
        %v3337 = vpop.f32.mrb[0].mxu0
        %v3338 = vadd.f32 %v3061, %v3337
        %v3339 = vpop.f32.mrb[0].mxu0
        %v3340 = vpop.f32.mrb[0].mxu0
        %v3341 = vadd.f32 %v3061, %v3340
        %v3342 = vpop.f32.mrb[0].mxu0
        %3343 = vmatprep.mubr.bf16.mxu0 0
        %3344 = vmatmul.mubr.bf16.gmra.mrb[0].mxu0 %v3001
        %v3345 = vpop.f32.mrb[0].mxu0
        %v3346 = vadd.f32 %v3061, %v3345
        %v3347 = vpop.f32.mrb[0].mxu0
        %v3348 = vpop.f32.mrb[0].mxu0
        %v3349 = vadd.f32 %v3061, %v3348
        %v3350 = vpop.f32.mrb[0].mxu0
        %3351 = vmatprep.mubr.bf16.mxu0 0
        %3352 = vmatmul.mubr.bf16.gmra.mrb[0].mxu0 %v3002
        %v3353 = vpop.f32.mrb[0].mxu0
        %v3354 = vadd.f32 %v3061, %v3353
        %v3355 = vpop.f32.mrb[0].mxu0
        %v3356 = vpop.f32.mrb[0].mxu0
        %v3357 = vadd.f32 %v3061, %v3356
        %v3358 = vpop.f32.mrb[0].mxu0
        %3359 = vmatprep.mubr.bf16.mxu0 0
        %3360 = vmatmul.mubr.bf16.gmra.mrb[0].mxu0 %v3003
        %v3361 = vpop.f32.mrb[0].mxu0
        %v3362 = vadd.f32 %v3061, %v3361
        %v3363 = vpop.f32.mrb[0].mxu0
        %v3364 = vpop.f32.mrb[0].mxu0
        %v3365 = vadd.f32 %v3061, %v3364
        %v3366 = vpop.f32.mrb[0].mxu0
        %3367 = vmatprep.mubr.bf16.mxu0 0
        %3368 = vmatmul.mubr.bf16.gmra.mrb[0].mxu0 %v3004
        %v3369 = vpop.f32.mrb[0].mxu0
        %v3370 = vadd.f32 %v3061, %v3369
        %v3371 = vpop.f32.mrb[0].mxu0
        %v3372 = vpop.f32.mrb[0].mxu0
        %v3373 = vadd.f32 %v3061, %v3372
        %v3374 = vpop.f32.mrb[0].mxu0
        %3375 = vmatprep.mubr.bf16.mxu0 0
        %3376 = vmatmul.mubr.bf16.gmra.mrb[0].mxu0 %v3005
        %v3377 = vpop.f32.mrb[0].mxu0
        %v3378 = vadd.f32 %v3061, %v3377
        %v3379 = vpop.f32.mrb[0].mxu0
        %v3380 = vpop.f32.mrb[0].mxu0
        %v3381 = vadd.f32 %v3061, %v3380
        %v3382 = vpop.f32.mrb[0].mxu0
        %3383 = vmatprep.mubr.bf16.mxu0 0
        %3384 = vmatmul.mubr.bf16.gmra.mrb[0].mxu0 %v3006
        %v3385 = vpop.f32.mrb[0].mxu0
        %v3386 = vadd.f32 %v3061, %v3385
        %v3387 = vpop.f32.mrb[0].mxu0
        %v3388 = vpop.f32.mrb[0].mxu0
        %v3389 = vadd.f32 %v3061, %v3388
        %v3390 = vpop.f32.mrb[0].mxu0
        %3391 = vmatprep.mubr.bf16.mxu0 0
        %3392 = vmatmul.mubr.bf16.gmra.mrb[0].mxu0 %v3007
        %v3393 = vpop.f32.mrb[0].mxu0
        %v3394 = vadd.f32 %v3061, %v3393
        %v3395 = vpop.f32.mrb[0].mxu0
        %v3396 = vpop.f32.mrb[0].mxu0
        %v3397 = vadd.f32 %v3061, %v3396
        %v3398 = vpop.f32.mrb[0].mxu0
        %3399 = vmatprep.mubr.bf16.mxu0 0
        %3400 = vmatmul.mubr.bf16.gmra.mrb[0].mxu0 %v3008
        %v3401 = vpop.f32.mrb[0].mxu0
        %v3402 = vadd.f32 %v3061, %v3401
        %v3403 = vpop.f32.mrb[0].mxu0
        %v3404 = vpop.f32.mrb[0].mxu0
        %v3405 = vadd.f32 %v3061, %v3404
        %v3406 = vpop.f32.mrb[0].mxu0
        %3407 = vmatprep.mubr.bf16.mxu0 0
        %3408 = vmatmul.mubr.bf16.gmra.mrb[0].mxu0 %v3009
        %v3409 = vpop.f32.mrb[0].mxu0
        %v3410 = vadd.f32 %v3061, %v3409
        %v3411 = vpop.f32.mrb[0].mxu0
        %v3412 = vpop.f32.mrb[0].mxu0
        %v3413 = vadd.f32 %v3061, %v3412
        %v3414 = vpop.f32.mrb[0].mxu0
        %3415 = vmatprep.mubr.bf16.mxu0 0
        %3416 = vmatmul.mubr.bf16.gmra.mrb[0].mxu0 %v3010
        %v3417 = vpop.f32.mrb[0].mxu0
        %v3418 = vadd.f32 %v3061, %v3417
        %v3419 = vpop.f32.mrb[0].mxu0
        %v3420 = vpop.f32.mrb[0].mxu0
        %v3421 = vadd.f32 %v3061, %v3420
        %v3422 = vpop.f32.mrb[0].mxu0
        %3423 = vmatprep.mubr.bf16.mxu0 0
        %3424 = vmatmul.mubr.bf16.gmra.mrb[0].mxu0 %v3011
        %v3425 = vpop.f32.mrb[0].mxu0
        %v3426 = vadd.f32 %v3061, %v3425
        %v3427 = vpop.f32.mrb[0].mxu0
        %v3428 = vpop.f32.mrb[0].mxu0
        %v3429 = vadd.f32 %v3061, %v3428
        %v3430 = vpop.f32.mrb[0].mxu0
        %3431 = vmatprep.mubr.bf16.mxu0 0
        %3432 = vmatmul.mubr.bf16.gmra.mrb[0].mxu0 %v3012
        %v3433 = vpop.f32.mrb[0].mxu0
        %v3434 = vadd.f32 %v3061, %v3433
        %v3435 = vpop.f32.mrb[0].mxu0
        %v3436 = vpop.f32.mrb[0].mxu0
        %v3437 = vadd.f32 %v3061, %v3436
        %v3438 = vpop.f32.mrb[0].mxu0
        %3439 = vmatprep.mubr.bf16.mxu0 0
        %3440 = vmatmul.mubr.bf16.gmra.mrb[0].mxu0 %v3013
        %v3441 = vpop.f32.mrb[0].mxu0
        %v3442 = vadd.f32 %v3061, %v3441
        %v3443 = vpop.f32.mrb[0].mxu0
        %v3444 = vpop.f32.mrb[0].mxu0
        %v3445 = vadd.f32 %v3061, %v3444
        %v3446 = vpop.f32.mrb[0].mxu0
        %3447 = vmatprep.mubr.bf16.mxu0 0
        %3448 = vmatmul.mubr.bf16.gmra.mrb[0].mxu0 %v3014
        %v3449 = vpop.f32.mrb[0].mxu0
        %v3450 = vadd.f32 %v3061, %v3449
        %v3451 = vpop.f32.mrb[0].mxu0
        %v3452 = vpop.f32.mrb[0].mxu0
        %v3453 = vadd.f32 %v3061, %v3452
        %v3454 = vpop.f32.mrb[0].mxu0
        %3455 = vmatprep.mubr.bf16.mxu0 0
        %3456 = vmatmul.mubr.bf16.gmra.mrb[0].mxu0 %v3015
        %v3457 = vpop.f32.mrb[0].mxu0
        %v3458 = vadd.f32 %v3061, %v3457
        %v3459 = vpop.f32.mrb[0].mxu0
        %v3460 = vpop.f32.mrb[0].mxu0
        %v3461 = vadd.f32 %v3061, %v3460
        %v3462 = vpop.f32.mrb[0].mxu0
        %3463 = vmatprep.mubr.bf16.mxu0 0
        %3464 = vmatmul.mubr.bf16.gmra.mrb[0].mxu0 %v3016
        %v3465 = vpop.f32.mrb[0].mxu0
        %v3466 = vadd.f32 %v3061, %v3465
        %v3467 = vpop.f32.mrb[0].mxu0
        %v3468 = vpop.f32.mrb[0].mxu0
        %v3469 = vadd.f32 %v3061, %v3468
        %v3470 = vpop.f32.mrb[0].mxu0
        %3471 = vmatprep.mubr.bf16.mxu0 0
        %3472 = vmatmul.mubr.bf16.gmra.mrb[0].mxu0 %v3017
        %v3473 = vpop.f32.mrb[0].mxu0
        %v3474 = vadd.f32 %v3061, %v3473
        %v3475 = vpop.f32.mrb[0].mxu0
        %v3476 = vpop.f32.mrb[0].mxu0
        %v3477 = vadd.f32 %v3061, %v3476
        %v3478 = vpop.f32.mrb[0].mxu0
        %3479 = vmatprep.mubr.bf16.mxu0 0
        %3480 = vmatmul.mubr.bf16.gmra.mrb[0].mxu0 %v3018
        %v3481 = vpop.f32.mrb[0].mxu0
        %v3482 = vadd.f32 %v3061, %v3481
        %v3483 = vpop.f32.mrb[0].mxu0
        %v3484 = vpop.f32.mrb[0].mxu0
        %v3485 = vadd.f32 %v3061, %v3484
        %v3486 = vpop.f32.mrb[0].mxu0
        %3487 = vmatprep.mubr.bf16.mxu0 0
        %3488 = vmatmul.mubr.bf16.gmra.mrb[0].mxu0 %v3019
        %v3489 = vpop.f32.mrb[0].mxu0
        %v3490 = vadd.f32 %v3061, %v3489
        %v3491 = vpop.f32.mrb[0].mxu0
        %v3492 = vpop.f32.mrb[0].mxu0
        %v3493 = vadd.f32 %v3061, %v3492
        %v3494 = vpop.f32.mrb[0].mxu0
        %3495 = vmatprep.mubr.bf16.mxu0 0
        %3496 = vmatmul.mubr.bf16.gmra.mrb[0].mxu0 %v3020
        %v3497 = vpop.f32.mrb[0].mxu0
        %v3498 = vadd.f32 %v3061, %v3497
        %v3499 = vpop.f32.mrb[0].mxu0
        %v3500 = vpop.f32.mrb[0].mxu0
        %v3501 = vadd.f32 %v3061, %v3500
        %v3502 = vpop.f32.mrb[0].mxu0
        %3503 = vmatprep.mubr.bf16.mxu0 0
        %3504 = vmatmul.mubr.bf16.gmra.mrb[0].mxu0 %v3021
        %v3505 = vpop.f32.mrb[0].mxu0
        %v3506 = vadd.f32 %v3061, %v3505
        %v3507 = vpop.f32.mrb[0].mxu0
        %v3508 = vpop.f32.mrb[0].mxu0
        %v3509 = vadd.f32 %v3061, %v3508
        %v3510 = vpop.f32.mrb[0].mxu0
        %3511 = vmatprep.mubr.bf16.mxu0 0
        %3512 = vmatmul.mubr.bf16.gmra.mrb[0].mxu0 %v3022
        %v3513 = vpop.f32.mrb[0].mxu0
        %v3514 = vadd.f32 %v3061, %v3513
        %v3515 = vpop.f32.mrb[0].mxu0
        %v3516 = vpop.f32.mrb[0].mxu0
        %v3517 = vadd.f32 %v3061, %v3516
        %v3518 = vpop.f32.mrb[0].mxu0
        %3519 = vmatprep.mubr.bf16.mxu0 0
        %3520 = vmatmul.mubr.bf16.gmra.mrb[0].mxu0 %v3023
        %v3521 = vpop.f32.mrb[0].mxu0
        %v3522 = vadd.f32 %v3061, %v3521
        %v3523 = vpop.f32.mrb[0].mxu0
        %v3524 = vpop.f32.mrb[0].mxu0
        %v3525 = vadd.f32 %v3061, %v3524
        %v3526 = vpop.f32.mrb[0].mxu0
        %3527 = vmatprep.mubr.bf16.mxu0 0
        %3528 = vmatmul.mubr.bf16.gmra.mrb[0].mxu0 %v3024
        %v3529 = vpop.f32.mrb[0].mxu0
        %v3530 = vadd.f32 %v3061, %v3529
        %v3531 = vpop.f32.mrb[0].mxu0
        %v3532 = vpop.f32.mrb[0].mxu0
        %v3533 = vadd.f32 %v3061, %v3532
        %v3534 = vpop.f32.mrb[0].mxu0
        %3535 = vmatprep.mubr.bf16.mxu0 0
        %3536 = vmatmul.mubr.bf16.gmra.mrb[0].mxu0 %v3025
        %v3537 = vpop.f32.mrb[0].mxu0
        %v3538 = vadd.f32 %v3061, %v3537
        %v3539 = vpop.f32.mrb[0].mxu0
        %v3540 = vpop.f32.mrb[0].mxu0
        %v3541 = vadd.f32 %v3061, %v3540
        %v3542 = vpop.f32.mrb[0].mxu0
        %3543 = vmatprep.mubr.bf16.mxu0 0
        %3544 = vmatmul.mubr.bf16.gmra.mrb[0].mxu0 %v3026
        %v3545 = vpop.f32.mrb[0].mxu0
        %v3546 = vadd.f32 %v3061, %v3545
        %v3547 = vpop.f32.mrb[0].mxu0
        %v3548 = vpop.f32.mrb[0].mxu0
        %v3549 = vadd.f32 %v3061, %v3548
        %v3550 = vpop.f32.mrb[0].mxu0
        %3551 = vmatprep.mubr.bf16.mxu0 0
        %3552 = vmatmul.mubr.bf16.gmra.mrb[0].mxu0 %v3027
        %v3553 = vpop.f32.mrb[0].mxu0
        %v3554 = vadd.f32 %v3061, %v3553
        %v3555 = vpop.f32.mrb[0].mxu0
        %v3556 = vpop.f32.mrb[0].mxu0
        %v3557 = vadd.f32 %v3061, %v3556
        %v3558 = vpop.f32.mrb[0].mxu0
        %3559 = vmatprep.mubr.bf16.mxu0 0
        %3560 = vmatmul.mubr.bf16.gmra.mrb[0].mxu0 %v3028
        %v3561 = vpop.f32.mrb[0].mxu0
        %v3562 = vadd.f32 %v3061, %v3561
        %v3563 = vpop.f32.mrb[0].mxu0
        %v3564 = vpop.f32.mrb[0].mxu0
        %v3565 = vadd.f32 %v3061, %v3564
        %v3566 = vpop.f32.mrb[0].mxu0
        %3567 = vmatprep.mubr.bf16.mxu0 0
        %3568 = vmatmul.mubr.bf16.gmra.mrb[0].mxu0 %v3029
        %v3569 = vpop.f32.mrb[0].mxu0
        %v3570 = vadd.f32 %v3061, %v3569
        %v3571 = vpop.f32.mrb[0].mxu0
        %v3572 = vpop.f32.mrb[0].mxu0
        %v3573 = vadd.f32 %v3061, %v3572
        %v3574 = vpop.f32.mrb[0].mxu0
        %3575 = vmatprep.mubr.bf16.mxu0 0
        %3576 = vmatmul.mubr.bf16.gmra.mrb[0].mxu0 %v3030
        %v3577 = vpop.f32.mrb[0].mxu0
        %v3578 = vadd.f32 %v3061, %v3577
        %v3579 = vpop.f32.mrb[0].mxu0
        %v3580 = vpop.f32.mrb[0].mxu0
        %v3581 = vadd.f32 %v3061, %v3580
        %v3582 = vpop.f32.mrb[0].mxu0
        %3583 = vmatprep.mubr.bf16.mxu0 0
        %3584 = vmatmul.mubr.bf16.gmra.mrb[0].mxu0 %v3031
        %v3585 = vpop.f32.mrb[0].mxu0
        %v3586 = vadd.f32 %v3061, %v3585
        %v3587 = vpop.f32.mrb[0].mxu0
        %v3588 = vpop.f32.mrb[0].mxu0
        %v3589 = vadd.f32 %v3061, %v3588
        %v3590 = vpop.f32.mrb[0].mxu0
        %3591 = vmatprep.mubr.bf16.mxu0 0
        %3592 = vmatmul.mubr.bf16.gmra.mrb[0].mxu0 %v3032
        %v3593 = vpop.f32.mrb[0].mxu0
        %v3594 = vadd.f32 %v3061, %v3593
        %v3595 = vpop.f32.mrb[0].mxu0
        %v3596 = vpop.f32.mrb[0].mxu0
        %v3597 = vadd.f32 %v3061, %v3596
        %v3598 = vpop.f32.mrb[0].mxu0
        %3599 = vmatprep.mubr.bf16.mxu0 0
        %3600 = vmatmul.mubr.bf16.gmra.mrb[0].mxu0 %v3033
        %v3601 = vpop.f32.mrb[0].mxu0
        %v3602 = vadd.f32 %v3061, %v3601
        %v3603 = vpop.f32.mrb[0].mxu0
        %v3604 = vpop.f32.mrb[0].mxu0
        %v3605 = vadd.f32 %v3061, %v3604
        %v3606 = vpop.f32.mrb[0].mxu0
        %3607 = vmatprep.mubr.bf16.mxu0 0
        %3608 = vmatmul.mubr.bf16.gmra.mrb[0].mxu0 %v3034
        %v3609 = vpop.f32.mrb[0].mxu0
        %v3610 = vadd.f32 %v3061, %v3609
        %v3611 = vpop.f32.mrb[0].mxu0
        %v3612 = vpop.f32.mrb[0].mxu0
        %v3613 = vadd.f32 %v3061, %v3612
        %v3614 = vpop.f32.mrb[0].mxu0
        %3615 = vmatprep.mubr.bf16.mxu0 0
        %3616 = vmatmul.mubr.bf16.gmra.mrb[0].mxu0 %v3035
        %v3617 = vpop.f32.mrb[0].mxu0
        %v3618 = vadd.f32 %v3061, %v3617
        %v3619 = vpop.f32.mrb[0].mxu0
        %v3620 = vpop.f32.mrb[0].mxu0
        %v3621 = vadd.f32 %v3061, %v3620
        %v3622 = vpop.f32.mrb[0].mxu0
        %3623 = vmatprep.mubr.bf16.mxu0 0
        %3624 = vmatmul.mubr.bf16.gmra.mrb[0].mxu0 %v3036
        %v3625 = vpop.f32.mrb[0].mxu0
        %v3626 = vadd.f32 %v3061, %v3625
        %v3627 = vpop.f32.mrb[0].mxu0
        %v3628 = vpop.f32.mrb[0].mxu0
        %v3629 = vadd.f32 %v3061, %v3628
        %v3630 = vpop.f32.mrb[0].mxu0
        %3631 = vmatprep.mubr.bf16.mxu0 0
        %3632 = vmatmul.mubr.bf16.gmra.mrb[0].mxu0 %v3037
        %v3633 = vpop.f32.mrb[0].mxu0
        %v3634 = vadd.f32 %v3061, %v3633
        %v3635 = vpop.f32.mrb[0].mxu0
        %v3636 = vpop.f32.mrb[0].mxu0
        %v3637 = vadd.f32 %v3061, %v3636
        %v3638 = vpop.f32.mrb[0].mxu0
        %3639 = vmatprep.mubr.bf16.mxu0 0
        %3640 = vmatmul.mubr.bf16.gmra.mrb[0].mxu0 %v3038
        %v3641 = vpop.f32.mrb[0].mxu0
        %v3642 = vadd.f32 %v3061, %v3641
        %v3643 = vpop.f32.mrb[0].mxu0
        %v3644 = vpop.f32.mrb[0].mxu0
        %v3645 = vadd.f32 %v3061, %v3644
        %v3646 = vpop.f32.mrb[0].mxu0
        %3647 = vmatprep.mubr.bf16.mxu0 0
        %3648 = vmatmul.mubr.bf16.gmra.mrb[0].mxu0 %v3039
        %v3649 = vpop.f32.mrb[0].mxu0
        %v3650 = vadd.f32 %v3061, %v3649
        %v3651 = vpop.f32.mrb[0].mxu0
        %v3652 = vpop.f32.mrb[0].mxu0
        %v3653 = vadd.f32 %v3061, %v3652
        %v3654 = vpop.f32.mrb[0].mxu0
        %3655 = vdwg.mxu0
        %v3656 = vmax.f32 %v3146, 0.0
        %v3657 = vmax.f32 %v3149, 0.0
        %v3658 = vmax.f32 %v3154, 0.0
        %v3659 = vmax.f32 %v3157, 0.0
        %v3660 = vmax.f32 %v3162, 0.0
        %v3661 = vmax.f32 %v3165, 0.0
        %v3662 = vmax.f32 %v3170, 0.0
        %v3663 = vmax.f32 %v3173, 0.0
        %v3664 = vmax.f32 %v3178, 0.0
        %v3665 = vmax.f32 %v3181, 0.0
        %v3666 = vmax.f32 %v3186, 0.0
        %v3667 = vmax.f32 %v3189, 0.0
        %v3668 = vmax.f32 %v3194, 0.0
        %v3669 = vmax.f32 %v3197, 0.0
        %v3670 = vmax.f32 %v3202, 0.0
        %v3671 = vmax.f32 %v3205, 0.0
        %v3672 = vmax.f32 %v3210, 0.0
        %v3673 = vmax.f32 %v3213, 0.0
        %v3674 = vmax.f32 %v3218, 0.0
        %v3675 = vmax.f32 %v3221, 0.0
        %v3676 = vmax.f32 %v3226, 0.0
        %v3677 = vmax.f32 %v3229, 0.0
        %v3678 = vmax.f32 %v3234, 0.0
        %v3679 = vmax.f32 %v3237, 0.0
        %v3680 = vmax.f32 %v3242, 0.0
        %v3681 = vmax.f32 %v3245, 0.0
        %v3682 = vmax.f32 %v3250, 0.0
        %v3683 = vmax.f32 %v3253, 0.0
        %v3684 = vmax.f32 %v3258, 0.0
        %v3685 = vmax.f32 %v3261, 0.0
        %v3686 = vmax.f32 %v3266, 0.0
        %v3687 = vmax.f32 %v3269, 0.0
        %v3688 = vmax.f32 %v3274, 0.0
        %v3689 = vmax.f32 %v3277, 0.0
        %v3690 = vmax.f32 %v3282, 0.0
        %v3691 = vmax.f32 %v3285, 0.0
        %v3692 = vmax.f32 %v3290, 0.0
        %v3693 = vmax.f32 %v3293, 0.0
        %v3694 = vmax.f32 %v3298, 0.0
        %v3695 = vmax.f32 %v3301, 0.0
        %v3696 = vmax.f32 %v3306, 0.0
        %v3697 = vmax.f32 %v3309, 0.0
        %v3698 = vmax.f32 %v3314, 0.0
        %v3699 = vmax.f32 %v3317, 0.0
        %v3700 = vmax.f32 %v3322, 0.0
        %v3701 = vmax.f32 %v3325, 0.0
        %v3702 = vmax.f32 %v3330, 0.0
        %v3703 = vmax.f32 %v3333, 0.0
        %v3704 = vmax.f32 %v3338, 0.0
        %v3705 = vmax.f32 %v3341, 0.0
        %v3706 = vmax.f32 %v3346, 0.0
        %v3707 = vmax.f32 %v3349, 0.0
        %v3708 = vmax.f32 %v3354, 0.0
        %v3709 = vmax.f32 %v3357, 0.0
        %v3710 = vmax.f32 %v3362, 0.0
        %v3711 = vmax.f32 %v3365, 0.0
        %v3712 = vmax.f32 %v3370, 0.0
        %v3713 = vmax.f32 %v3373, 0.0
        %v3714 = vmax.f32 %v3378, 0.0
        %v3715 = vmax.f32 %v3381, 0.0
        %v3716 = vmax.f32 %v3386, 0.0
        %v3717 = vmax.f32 %v3389, 0.0
        %v3718 = vmax.f32 %v3394, 0.0
        %v3719 = vmax.f32 %v3397, 0.0
        %v3720 = vmax.f32 %v3402, 0.0
        %v3721 = vmax.f32 %v3405, 0.0
        %v3722 = vmax.f32 %v3410, 0.0
        %v3723 = vmax.f32 %v3413, 0.0
        %v3724 = vmax.f32 %v3418, 0.0
        %v3725 = vmax.f32 %v3421, 0.0
        %v3726 = vmax.f32 %v3426, 0.0
        %v3727 = vmax.f32 %v3429, 0.0
        %v3728 = vmax.f32 %v3434, 0.0
        %v3729 = vmax.f32 %v3437, 0.0
        %v3730 = vmax.f32 %v3442, 0.0
        %v3731 = vmax.f32 %v3445, 0.0
        %v3732 = vmax.f32 %v3450, 0.0
        %v3733 = vmax.f32 %v3453, 0.0
        %v3734 = vmax.f32 %v3458, 0.0
        %v3735 = vmax.f32 %v3461, 0.0
        %v3736 = vmax.f32 %v3466, 0.0
        %v3737 = vmax.f32 %v3469, 0.0
        %v3738 = vmax.f32 %v3474, 0.0
        %v3739 = vmax.f32 %v3477, 0.0
        %v3740 = vmax.f32 %v3482, 0.0
        %v3741 = vmax.f32 %v3485, 0.0
        %v3742 = vmax.f32 %v3490, 0.0
        %v3743 = vmax.f32 %v3493, 0.0
        %v3744 = vmax.f32 %v3498, 0.0
        %v3745 = vmax.f32 %v3501, 0.0
        %v3746 = vmax.f32 %v3506, 0.0
        %v3747 = vmax.f32 %v3509, 0.0
        %v3748 = vmax.f32 %v3514, 0.0
        %v3749 = vmax.f32 %v3517, 0.0
        %v3750 = vmax.f32 %v3522, 0.0
        %v3751 = vmax.f32 %v3525, 0.0
        %v3752 = vmax.f32 %v3530, 0.0
        %v3753 = vmax.f32 %v3533, 0.0
        %v3754 = vmax.f32 %v3538, 0.0
        %v3755 = vmax.f32 %v3541, 0.0
        %v3756 = vmax.f32 %v3546, 0.0
        %v3757 = vmax.f32 %v3549, 0.0
        %v3758 = vmax.f32 %v3554, 0.0
        %v3759 = vmax.f32 %v3557, 0.0
        %v3760 = vmax.f32 %v3562, 0.0
        %v3761 = vmax.f32 %v3565, 0.0
        %v3762 = vmax.f32 %v3570, 0.0
        %v3763 = vmax.f32 %v3573, 0.0
        %v3764 = vmax.f32 %v3578, 0.0
        %v3765 = vmax.f32 %v3581, 0.0
        %v3766 = vmax.f32 %v3586, 0.0
        %v3767 = vmax.f32 %v3589, 0.0
        %v3768 = vmax.f32 %v3594, 0.0
        %v3769 = vmax.f32 %v3597, 0.0
        %v3770 = vmax.f32 %v3602, 0.0
        %v3771 = vmax.f32 %v3605, 0.0
        %v3772 = vmax.f32 %v3610, 0.0
        %v3773 = vmax.f32 %v3613, 0.0
        %v3774 = vmax.f32 %v3618, 0.0
        %v3775 = vmax.f32 %v3621, 0.0
        %v3776 = vmax.f32 %v3626, 0.0
        %v3777 = vmax.f32 %v3629, 0.0
        %v3778 = vmax.f32 %v3634, 0.0
        %v3779 = vmax.f32 %v3637, 0.0
        %v3780 = vmax.f32 %v3642, 0.0
        %v3781 = vmax.f32 %v3645, 0.0
        %v3782 = vmax.f32 %v3650, 0.0
        %v3783 = vmax.f32 %v3653, 0.0
        %v3784 = vld [vmem:[#allocation11] sm:$0x1]
        %v3786 = vlaneseq
        %v3787 = vshrl.u32 %v3786, 7
        %v3788 = vsub.s32 0, %v3787
        %v3789 = vrot.slane %v3784, %v3788
        %v3791 = vmul.f32 %v3656, %v3789
        %v3792 = vmul.f32 %v3657, %v3789
        %v3793 = vmul.f32 %v3658, %v3789
        %v3794 = vmul.f32 %v3659, %v3789
        %v3795 = vmul.f32 %v3660, %v3789
        %v3796 = vmul.f32 %v3661, %v3789
        %v3797 = vmul.f32 %v3662, %v3789
        %v3798 = vmul.f32 %v3663, %v3789
        %v3799 = vmul.f32 %v3664, %v3789
        %v3800 = vmul.f32 %v3665, %v3789
        %v3801 = vmul.f32 %v3666, %v3789
        %v3802 = vmul.f32 %v3667, %v3789
        %v3803 = vmul.f32 %v3668, %v3789
        %v3804 = vmul.f32 %v3669, %v3789
        %v3805 = vmul.f32 %v3670, %v3789
        %v3806 = vmul.f32 %v3671, %v3789
        %v3807 = vmul.f32 %v3672, %v3789
        %v3808 = vmul.f32 %v3673, %v3789
        %v3809 = vmul.f32 %v3674, %v3789
        %v3810 = vmul.f32 %v3675, %v3789
        %v3811 = vmul.f32 %v3676, %v3789
        %v3812 = vmul.f32 %v3677, %v3789
        %v3813 = vmul.f32 %v3678, %v3789
        %v3814 = vmul.f32 %v3679, %v3789
        %v3815 = vmul.f32 %v3680, %v3789
        %v3816 = vmul.f32 %v3681, %v3789
        %v3817 = vmul.f32 %v3682, %v3789
        %v3818 = vmul.f32 %v3683, %v3789
        %v3819 = vmul.f32 %v3684, %v3789
        %v3820 = vmul.f32 %v3685, %v3789
        %v3821 = vmul.f32 %v3686, %v3789
        %v3822 = vmul.f32 %v3687, %v3789
        %v3823 = vmul.f32 %v3688, %v3789
        %v3824 = vmul.f32 %v3689, %v3789
        %v3825 = vmul.f32 %v3690, %v3789
        %v3826 = vmul.f32 %v3691, %v3789
        %v3827 = vmul.f32 %v3692, %v3789
        %v3828 = vmul.f32 %v3693, %v3789
        %v3829 = vmul.f32 %v3694, %v3789
        %v3830 = vmul.f32 %v3695, %v3789
        %v3831 = vmul.f32 %v3696, %v3789
        %v3832 = vmul.f32 %v3697, %v3789
        %v3833 = vmul.f32 %v3698, %v3789
        %v3834 = vmul.f32 %v3699, %v3789
        %v3835 = vmul.f32 %v3700, %v3789
        %v3836 = vmul.f32 %v3701, %v3789
        %v3837 = vmul.f32 %v3702, %v3789
        %v3838 = vmul.f32 %v3703, %v3789
        %v3839 = vmul.f32 %v3704, %v3789
        %v3840 = vmul.f32 %v3705, %v3789
        %v3841 = vmul.f32 %v3706, %v3789
        %v3842 = vmul.f32 %v3707, %v3789
        %v3843 = vmul.f32 %v3708, %v3789
        %v3844 = vmul.f32 %v3709, %v3789
        %v3845 = vmul.f32 %v3710, %v3789
        %v3846 = vmul.f32 %v3711, %v3789
        %v3847 = vmul.f32 %v3712, %v3789
        %v3848 = vmul.f32 %v3713, %v3789
        %v3849 = vmul.f32 %v3714, %v3789
        %v3850 = vmul.f32 %v3715, %v3789
        %v3851 = vmul.f32 %v3716, %v3789
        %v3852 = vmul.f32 %v3717, %v3789
        %v3853 = vmul.f32 %v3718, %v3789
        %v3854 = vmul.f32 %v3719, %v3789
        %v3855 = vmul.f32 %v3720, %v3789
        %v3856 = vmul.f32 %v3721, %v3789
        %v3857 = vmul.f32 %v3722, %v3789
        %v3858 = vmul.f32 %v3723, %v3789
        %v3859 = vmul.f32 %v3724, %v3789
        %v3860 = vmul.f32 %v3725, %v3789
        %v3861 = vmul.f32 %v3726, %v3789
        %v3862 = vmul.f32 %v3727, %v3789
        %v3863 = vmul.f32 %v3728, %v3789
        %v3864 = vmul.f32 %v3729, %v3789
        %v3865 = vmul.f32 %v3730, %v3789
        %v3866 = vmul.f32 %v3731, %v3789
        %v3867 = vmul.f32 %v3732, %v3789
        %v3868 = vmul.f32 %v3733, %v3789
        %v3869 = vmul.f32 %v3734, %v3789
        %v3870 = vmul.f32 %v3735, %v3789
        %v3871 = vmul.f32 %v3736, %v3789
        %v3872 = vmul.f32 %v3737, %v3789
        %v3873 = vmul.f32 %v3738, %v3789
        %v3874 = vmul.f32 %v3739, %v3789
        %v3875 = vmul.f32 %v3740, %v3789
        %v3876 = vmul.f32 %v3741, %v3789
        %v3877 = vmul.f32 %v3742, %v3789
        %v3878 = vmul.f32 %v3743, %v3789
        %v3879 = vmul.f32 %v3744, %v3789
        %v3880 = vmul.f32 %v3745, %v3789
        %v3881 = vmul.f32 %v3746, %v3789
        %v3882 = vmul.f32 %v3747, %v3789
        %v3883 = vmul.f32 %v3748, %v3789
        %v3884 = vmul.f32 %v3749, %v3789
        %v3885 = vmul.f32 %v3750, %v3789
        %v3886 = vmul.f32 %v3751, %v3789
        %v3887 = vmul.f32 %v3752, %v3789
        %v3888 = vmul.f32 %v3753, %v3789
        %v3889 = vmul.f32 %v3754, %v3789
        %v3890 = vmul.f32 %v3755, %v3789
        %v3891 = vmul.f32 %v3756, %v3789
        %v3892 = vmul.f32 %v3757, %v3789
        %v3893 = vmul.f32 %v3758, %v3789
        %v3894 = vmul.f32 %v3759, %v3789
        %v3895 = vmul.f32 %v3760, %v3789
        %v3896 = vmul.f32 %v3761, %v3789
        %v3897 = vmul.f32 %v3762, %v3789
        %v3898 = vmul.f32 %v3763, %v3789
        %v3899 = vmul.f32 %v3764, %v3789
        %v3900 = vmul.f32 %v3765, %v3789
        %v3901 = vmul.f32 %v3766, %v3789
        %v3902 = vmul.f32 %v3767, %v3789
        %v3903 = vmul.f32 %v3768, %v3789
        %v3904 = vmul.f32 %v3769, %v3789
        %v3905 = vmul.f32 %v3770, %v3789
        %v3906 = vmul.f32 %v3771, %v3789
        %v3907 = vmul.f32 %v3772, %v3789
        %v3908 = vmul.f32 %v3773, %v3789
        %v3909 = vmul.f32 %v3774, %v3789
        %v3910 = vmul.f32 %v3775, %v3789
        %v3911 = vmul.f32 %v3776, %v3789
        %v3912 = vmul.f32 %v3777, %v3789
        %v3913 = vmul.f32 %v3778, %v3789
        %v3914 = vmul.f32 %v3779, %v3789
        %v3915 = vmul.f32 %v3780, %v3789
        %v3916 = vmul.f32 %v3781, %v3789
        %v3917 = vmul.f32 %v3782, %v3789
        %v3918 = vmul.f32 %v3783, %v3789
        %vm3919 = vcmask 523264
        %v3920 = vsel %vm3919, %v3791, 0.0
        %3921 = vadd.xlane.f32.xlu0 %v3920
        %v3922 = vpop.xlane.xlu0 %3921
        %v3923 = vsel %vm3919, %v3792, 0.0
        %3924 = vadd.xlane.f32.xlu0 %v3923
        %v3925 = vpop.xlane.xlu0 %3924
        %v3926 = vsel %vm3919, %v3793, 0.0
        %3927 = vadd.xlane.f32.xlu0 %v3926
        %v3928 = vpop.xlane.xlu0 %3927
        %v3929 = vsel %vm3919, %v3794, 0.0
        %3930 = vadd.xlane.f32.xlu0 %v3929
        %v3931 = vpop.xlane.xlu0 %3930
        %v3932 = vsel %vm3919, %v3795, 0.0
        %3933 = vadd.xlane.f32.xlu0 %v3932
        %v3934 = vpop.xlane.xlu0 %3933
        %v3935 = vsel %vm3919, %v3796, 0.0
        %3936 = vadd.xlane.f32.xlu0 %v3935
        %v3937 = vpop.xlane.xlu0 %3936
        %v3938 = vsel %vm3919, %v3797, 0.0
        %3939 = vadd.xlane.f32.xlu0 %v3938
        %v3940 = vpop.xlane.xlu0 %3939
        %v3941 = vsel %vm3919, %v3798, 0.0
        %3942 = vadd.xlane.f32.xlu0 %v3941
        %v3943 = vpop.xlane.xlu0 %3942
        %v3944 = vsel %vm3919, %v3799, 0.0
        %3945 = vadd.xlane.f32.xlu0 %v3944
        %v3946 = vpop.xlane.xlu0 %3945
        %v3947 = vsel %vm3919, %v3800, 0.0
        %3948 = vadd.xlane.f32.xlu0 %v3947
        %v3949 = vpop.xlane.xlu0 %3948
        %v3950 = vsel %vm3919, %v3801, 0.0
        %3951 = vadd.xlane.f32.xlu0 %v3950
        %v3952 = vpop.xlane.xlu0 %3951
        %v3953 = vsel %vm3919, %v3802, 0.0
        %3954 = vadd.xlane.f32.xlu0 %v3953
        %v3955 = vpop.xlane.xlu0 %3954
        %v3956 = vsel %vm3919, %v3803, 0.0
        %3957 = vadd.xlane.f32.xlu0 %v3956
        %v3958 = vpop.xlane.xlu0 %3957
        %v3959 = vsel %vm3919, %v3804, 0.0
        %3960 = vadd.xlane.f32.xlu0 %v3959
        %v3961 = vpop.xlane.xlu0 %3960
        %v3962 = vsel %vm3919, %v3805, 0.0
        %3963 = vadd.xlane.f32.xlu0 %v3962
        %v3964 = vpop.xlane.xlu0 %3963
        %v3965 = vsel %vm3919, %v3806, 0.0
        %3966 = vadd.xlane.f32.xlu0 %v3965
        %v3967 = vpop.xlane.xlu0 %3966
        %v3968 = vsel %vm3919, %v3807, 0.0
        %3969 = vadd.xlane.f32.xlu0 %v3968
        %v3970 = vpop.xlane.xlu0 %3969
        %v3971 = vsel %vm3919, %v3808, 0.0
        %3972 = vadd.xlane.f32.xlu0 %v3971
        %v3973 = vpop.xlane.xlu0 %3972
        %v3974 = vsel %vm3919, %v3809, 0.0
        %3975 = vadd.xlane.f32.xlu0 %v3974
        %v3976 = vpop.xlane.xlu0 %3975
        %v3977 = vsel %vm3919, %v3810, 0.0
        %3978 = vadd.xlane.f32.xlu0 %v3977
        %v3979 = vpop.xlane.xlu0 %3978
        %v3980 = vsel %vm3919, %v3811, 0.0
        %3981 = vadd.xlane.f32.xlu0 %v3980
        %v3982 = vpop.xlane.xlu0 %3981
        %v3983 = vsel %vm3919, %v3812, 0.0
        %3984 = vadd.xlane.f32.xlu0 %v3983
        %v3985 = vpop.xlane.xlu0 %3984
        %v3986 = vsel %vm3919, %v3813, 0.0
        %3987 = vadd.xlane.f32.xlu0 %v3986
        %v3988 = vpop.xlane.xlu0 %3987
        %v3989 = vsel %vm3919, %v3814, 0.0
        %3990 = vadd.xlane.f32.xlu0 %v3989
        %v3991 = vpop.xlane.xlu0 %3990
        %v3992 = vsel %vm3919, %v3815, 0.0
        %3993 = vadd.xlane.f32.xlu0 %v3992
        %v3994 = vpop.xlane.xlu0 %3993
        %v3995 = vsel %vm3919, %v3816, 0.0
        %3996 = vadd.xlane.f32.xlu0 %v3995
        %v3997 = vpop.xlane.xlu0 %3996
        %v3998 = vsel %vm3919, %v3817, 0.0
        %3999 = vadd.xlane.f32.xlu0 %v3998
        %v4000 = vpop.xlane.xlu0 %3999
        %v4001 = vsel %vm3919, %v3818, 0.0
        %4002 = vadd.xlane.f32.xlu0 %v4001
        %v4003 = vpop.xlane.xlu0 %4002
        %v4004 = vsel %vm3919, %v3819, 0.0
        %4005 = vadd.xlane.f32.xlu0 %v4004
        %v4006 = vpop.xlane.xlu0 %4005
        %v4007 = vsel %vm3919, %v3820, 0.0
        %4008 = vadd.xlane.f32.xlu0 %v4007
        %v4009 = vpop.xlane.xlu0 %4008
        %v4010 = vsel %vm3919, %v3821, 0.0
        %4011 = vadd.xlane.f32.xlu0 %v4010
        %v4012 = vpop.xlane.xlu0 %4011
        %v4013 = vsel %vm3919, %v3822, 0.0
        %4014 = vadd.xlane.f32.xlu0 %v4013
        %v4015 = vpop.xlane.xlu0 %4014
        %v4016 = vsel %vm3919, %v3823, 0.0
        %4017 = vadd.xlane.f32.xlu0 %v4016
        %v4018 = vpop.xlane.xlu0 %4017
        %v4019 = vsel %vm3919, %v3824, 0.0
        %4020 = vadd.xlane.f32.xlu0 %v4019
        %v4021 = vpop.xlane.xlu0 %4020
        %v4022 = vsel %vm3919, %v3825, 0.0
        %4023 = vadd.xlane.f32.xlu0 %v4022
        %v4024 = vpop.xlane.xlu0 %4023
        %v4025 = vsel %vm3919, %v3826, 0.0
        %4026 = vadd.xlane.f32.xlu0 %v4025
        %v4027 = vpop.xlane.xlu0 %4026
        %v4028 = vsel %vm3919, %v3827, 0.0
        %4029 = vadd.xlane.f32.xlu0 %v4028
        %v4030 = vpop.xlane.xlu0 %4029
        %v4031 = vsel %vm3919, %v3828, 0.0
        %4032 = vadd.xlane.f32.xlu0 %v4031
        %v4033 = vpop.xlane.xlu0 %4032
        %v4034 = vsel %vm3919, %v3829, 0.0
        %4035 = vadd.xlane.f32.xlu0 %v4034
        %v4036 = vpop.xlane.xlu0 %4035
        %v4037 = vsel %vm3919, %v3830, 0.0
        %4038 = vadd.xlane.f32.xlu0 %v4037
        %v4039 = vpop.xlane.xlu0 %4038
        %v4040 = vsel %vm3919, %v3831, 0.0
        %4041 = vadd.xlane.f32.xlu0 %v4040
        %v4042 = vpop.xlane.xlu0 %4041
        %v4043 = vsel %vm3919, %v3832, 0.0
        %4044 = vadd.xlane.f32.xlu0 %v4043
        %v4045 = vpop.xlane.xlu0 %4044
        %v4046 = vsel %vm3919, %v3833, 0.0
        %4047 = vadd.xlane.f32.xlu0 %v4046
        %v4048 = vpop.xlane.xlu0 %4047
        %v4049 = vsel %vm3919, %v3834, 0.0
        %4050 = vadd.xlane.f32.xlu0 %v4049
        %v4051 = vpop.xlane.xlu0 %4050
        %v4052 = vsel %vm3919, %v3835, 0.0
        %4053 = vadd.xlane.f32.xlu0 %v4052
        %v4054 = vpop.xlane.xlu0 %4053
        %v4055 = vsel %vm3919, %v3836, 0.0
        %4056 = vadd.xlane.f32.xlu0 %v4055
        %v4057 = vpop.xlane.xlu0 %4056
        %v4058 = vsel %vm3919, %v3837, 0.0
        %4059 = vadd.xlane.f32.xlu0 %v4058
        %v4060 = vpop.xlane.xlu0 %4059
        %v4061 = vsel %vm3919, %v3838, 0.0
        %4062 = vadd.xlane.f32.xlu0 %v4061
        %v4063 = vpop.xlane.xlu0 %4062
        %v4064 = vsel %vm3919, %v3839, 0.0
        %4065 = vadd.xlane.f32.xlu0 %v4064
        %v4066 = vpop.xlane.xlu0 %4065
        %v4067 = vsel %vm3919, %v3840, 0.0
        %4068 = vadd.xlane.f32.xlu0 %v4067
        %v4069 = vpop.xlane.xlu0 %4068
        %v4070 = vsel %vm3919, %v3841, 0.0
        %4071 = vadd.xlane.f32.xlu0 %v4070
        %v4072 = vpop.xlane.xlu0 %4071
        %v4073 = vsel %vm3919, %v3842, 0.0
        %4074 = vadd.xlane.f32.xlu0 %v4073
        %v4075 = vpop.xlane.xlu0 %4074
        %v4076 = vsel %vm3919, %v3843, 0.0
        %4077 = vadd.xlane.f32.xlu0 %v4076
        %v4078 = vpop.xlane.xlu0 %4077
        %v4079 = vsel %vm3919, %v3844, 0.0
        %4080 = vadd.xlane.f32.xlu0 %v4079
        %v4081 = vpop.xlane.xlu0 %4080
        %v4082 = vsel %vm3919, %v3845, 0.0
        %4083 = vadd.xlane.f32.xlu0 %v4082
        %v4084 = vpop.xlane.xlu0 %4083
        %v4085 = vsel %vm3919, %v3846, 0.0
        %4086 = vadd.xlane.f32.xlu0 %v4085
        %v4087 = vpop.xlane.xlu0 %4086
        %v4088 = vsel %vm3919, %v3847, 0.0
        %4089 = vadd.xlane.f32.xlu0 %v4088
        %v4090 = vpop.xlane.xlu0 %4089
        %v4091 = vsel %vm3919, %v3848, 0.0
        %4092 = vadd.xlane.f32.xlu0 %v4091
        %v4093 = vpop.xlane.xlu0 %4092
        %v4094 = vsel %vm3919, %v3849, 0.0
        %4095 = vadd.xlane.f32.xlu0 %v4094
        %v4096 = vpop.xlane.xlu0 %4095
        %v4097 = vsel %vm3919, %v3850, 0.0
        %4098 = vadd.xlane.f32.xlu0 %v4097
        %v4099 = vpop.xlane.xlu0 %4098
        %v4100 = vsel %vm3919, %v3851, 0.0
        %4101 = vadd.xlane.f32.xlu0 %v4100
        %v4102 = vpop.xlane.xlu0 %4101
        %v4103 = vsel %vm3919, %v3852, 0.0
        %4104 = vadd.xlane.f32.xlu0 %v4103
        %v4105 = vpop.xlane.xlu0 %4104
        %v4106 = vsel %vm3919, %v3853, 0.0
        %4107 = vadd.xlane.f32.xlu0 %v4106
        %v4108 = vpop.xlane.xlu0 %4107
        %v4109 = vsel %vm3919, %v3854, 0.0
        %4110 = vadd.xlane.f32.xlu0 %v4109
        %v4111 = vpop.xlane.xlu0 %4110
        %v4112 = vsel %vm3919, %v3855, 0.0
        %4113 = vadd.xlane.f32.xlu0 %v4112
        %v4114 = vpop.xlane.xlu0 %4113
        %v4115 = vsel %vm3919, %v3856, 0.0
        %4116 = vadd.xlane.f32.xlu0 %v4115
        %v4117 = vpop.xlane.xlu0 %4116
        %v4118 = vsel %vm3919, %v3857, 0.0
        %4119 = vadd.xlane.f32.xlu0 %v4118
        %v4120 = vpop.xlane.xlu0 %4119
        %v4121 = vsel %vm3919, %v3858, 0.0
        %4122 = vadd.xlane.f32.xlu0 %v4121
        %v4123 = vpop.xlane.xlu0 %4122
        %v4124 = vsel %vm3919, %v3859, 0.0
        %4125 = vadd.xlane.f32.xlu0 %v4124
        %v4126 = vpop.xlane.xlu0 %4125
        %v4127 = vsel %vm3919, %v3860, 0.0
        %4128 = vadd.xlane.f32.xlu0 %v4127
        %v4129 = vpop.xlane.xlu0 %4128
        %v4130 = vsel %vm3919, %v3861, 0.0
        %4131 = vadd.xlane.f32.xlu0 %v4130
        %v4132 = vpop.xlane.xlu0 %4131
        %v4133 = vsel %vm3919, %v3862, 0.0
        %4134 = vadd.xlane.f32.xlu0 %v4133
        %v4135 = vpop.xlane.xlu0 %4134
        %v4136 = vsel %vm3919, %v3863, 0.0
        %4137 = vadd.xlane.f32.xlu0 %v4136
        %v4138 = vpop.xlane.xlu0 %4137
        %v4139 = vsel %vm3919, %v3864, 0.0
        %4140 = vadd.xlane.f32.xlu0 %v4139
        %v4141 = vpop.xlane.xlu0 %4140
        %v4142 = vsel %vm3919, %v3865, 0.0
        %4143 = vadd.xlane.f32.xlu0 %v4142
        %v4144 = vpop.xlane.xlu0 %4143
        %v4145 = vsel %vm3919, %v3866, 0.0
        %4146 = vadd.xlane.f32.xlu0 %v4145
        %v4147 = vpop.xlane.xlu0 %4146
        %v4148 = vsel %vm3919, %v3867, 0.0
        %4149 = vadd.xlane.f32.xlu0 %v4148
        %v4150 = vpop.xlane.xlu0 %4149
        %v4151 = vsel %vm3919, %v3868, 0.0
        %4152 = vadd.xlane.f32.xlu0 %v4151
        %v4153 = vpop.xlane.xlu0 %4152
        %v4154 = vsel %vm3919, %v3869, 0.0
        %4155 = vadd.xlane.f32.xlu0 %v4154
        %v4156 = vpop.xlane.xlu0 %4155
        %v4157 = vsel %vm3919, %v3870, 0.0
        %4158 = vadd.xlane.f32.xlu0 %v4157
        %v4159 = vpop.xlane.xlu0 %4158
        %v4160 = vsel %vm3919, %v3871, 0.0
        %4161 = vadd.xlane.f32.xlu0 %v4160
        %v4162 = vpop.xlane.xlu0 %4161
        %v4163 = vsel %vm3919, %v3872, 0.0
        %4164 = vadd.xlane.f32.xlu0 %v4163
        %v4165 = vpop.xlane.xlu0 %4164
        %v4166 = vsel %vm3919, %v3873, 0.0
        %4167 = vadd.xlane.f32.xlu0 %v4166
        %v4168 = vpop.xlane.xlu0 %4167
        %v4169 = vsel %vm3919, %v3874, 0.0
        %4170 = vadd.xlane.f32.xlu0 %v4169
        %v4171 = vpop.xlane.xlu0 %4170
        %v4172 = vsel %vm3919, %v3875, 0.0
        %4173 = vadd.xlane.f32.xlu0 %v4172
        %v4174 = vpop.xlane.xlu0 %4173
        %v4175 = vsel %vm3919, %v3876, 0.0
        %4176 = vadd.xlane.f32.xlu0 %v4175
        %v4177 = vpop.xlane.xlu0 %4176
        %v4178 = vsel %vm3919, %v3877, 0.0
        %4179 = vadd.xlane.f32.xlu0 %v4178
        %v4180 = vpop.xlane.xlu0 %4179
        %v4181 = vsel %vm3919, %v3878, 0.0
        %4182 = vadd.xlane.f32.xlu0 %v4181
        %v4183 = vpop.xlane.xlu0 %4182
        %v4184 = vsel %vm3919, %v3879, 0.0
        %4185 = vadd.xlane.f32.xlu0 %v4184
        %v4186 = vpop.xlane.xlu0 %4185
        %v4187 = vsel %vm3919, %v3880, 0.0
        %4188 = vadd.xlane.f32.xlu0 %v4187
        %v4189 = vpop.xlane.xlu0 %4188
        %v4190 = vsel %vm3919, %v3881, 0.0
        %4191 = vadd.xlane.f32.xlu0 %v4190
        %v4192 = vpop.xlane.xlu0 %4191
        %v4193 = vsel %vm3919, %v3882, 0.0
        %4194 = vadd.xlane.f32.xlu0 %v4193
        %v4195 = vpop.xlane.xlu0 %4194
        %v4196 = vsel %vm3919, %v3883, 0.0
        %4197 = vadd.xlane.f32.xlu0 %v4196
        %v4198 = vpop.xlane.xlu0 %4197
        %v4199 = vsel %vm3919, %v3884, 0.0
        %4200 = vadd.xlane.f32.xlu0 %v4199
        %v4201 = vpop.xlane.xlu0 %4200
        %v4202 = vsel %vm3919, %v3885, 0.0
        %4203 = vadd.xlane.f32.xlu0 %v4202
        %v4204 = vpop.xlane.xlu0 %4203
        %v4205 = vsel %vm3919, %v3886, 0.0
        %4206 = vadd.xlane.f32.xlu0 %v4205
        %v4207 = vpop.xlane.xlu0 %4206
        %v4208 = vsel %vm3919, %v3887, 0.0
        %4209 = vadd.xlane.f32.xlu0 %v4208
        %v4210 = vpop.xlane.xlu0 %4209
        %v4211 = vsel %vm3919, %v3888, 0.0
        %4212 = vadd.xlane.f32.xlu0 %v4211
        %v4213 = vpop.xlane.xlu0 %4212
        %v4214 = vsel %vm3919, %v3889, 0.0
        %4215 = vadd.xlane.f32.xlu0 %v4214
        %v4216 = vpop.xlane.xlu0 %4215
        %v4217 = vsel %vm3919, %v3890, 0.0
        %4218 = vadd.xlane.f32.xlu0 %v4217
        %v4219 = vpop.xlane.xlu0 %4218
        %v4220 = vsel %vm3919, %v3891, 0.0
        %4221 = vadd.xlane.f32.xlu0 %v4220
        %v4222 = vpop.xlane.xlu0 %4221
        %v4223 = vsel %vm3919, %v3892, 0.0
        %4224 = vadd.xlane.f32.xlu0 %v4223
        %v4225 = vpop.xlane.xlu0 %4224
        %v4226 = vsel %vm3919, %v3893, 0.0
        %4227 = vadd.xlane.f32.xlu0 %v4226
        %v4228 = vpop.xlane.xlu0 %4227
        %v4229 = vsel %vm3919, %v3894, 0.0
        %4230 = vadd.xlane.f32.xlu0 %v4229
        %v4231 = vpop.xlane.xlu0 %4230
        %v4232 = vsel %vm3919, %v3895, 0.0
        %4233 = vadd.xlane.f32.xlu0 %v4232
        %v4234 = vpop.xlane.xlu0 %4233
        %v4235 = vsel %vm3919, %v3896, 0.0
        %4236 = vadd.xlane.f32.xlu0 %v4235
        %v4237 = vpop.xlane.xlu0 %4236
        %v4238 = vsel %vm3919, %v3897, 0.0
        %4239 = vadd.xlane.f32.xlu0 %v4238
        %v4240 = vpop.xlane.xlu0 %4239
        %v4241 = vsel %vm3919, %v3898, 0.0
        %4242 = vadd.xlane.f32.xlu0 %v4241
        %v4243 = vpop.xlane.xlu0 %4242
        %v4244 = vsel %vm3919, %v3899, 0.0
        %4245 = vadd.xlane.f32.xlu0 %v4244
        %v4246 = vpop.xlane.xlu0 %4245
        %v4247 = vsel %vm3919, %v3900, 0.0
        %4248 = vadd.xlane.f32.xlu0 %v4247
        %v4249 = vpop.xlane.xlu0 %4248
        %v4250 = vsel %vm3919, %v3901, 0.0
        %4251 = vadd.xlane.f32.xlu0 %v4250
        %v4252 = vpop.xlane.xlu0 %4251
        %v4253 = vsel %vm3919, %v3902, 0.0
        %4254 = vadd.xlane.f32.xlu0 %v4253
        %v4255 = vpop.xlane.xlu0 %4254
        %v4256 = vsel %vm3919, %v3903, 0.0
        %4257 = vadd.xlane.f32.xlu0 %v4256
        %v4258 = vpop.xlane.xlu0 %4257
        %v4259 = vsel %vm3919, %v3904, 0.0
        %4260 = vadd.xlane.f32.xlu0 %v4259
        %v4261 = vpop.xlane.xlu0 %4260
        %v4262 = vsel %vm3919, %v3905, 0.0
        %4263 = vadd.xlane.f32.xlu0 %v4262
        %v4264 = vpop.xlane.xlu0 %4263
        %v4265 = vsel %vm3919, %v3906, 0.0
        %4266 = vadd.xlane.f32.xlu0 %v4265
        %v4267 = vpop.xlane.xlu0 %4266
        %v4268 = vsel %vm3919, %v3907, 0.0
        %4269 = vadd.xlane.f32.xlu0 %v4268
        %v4270 = vpop.xlane.xlu0 %4269
        %v4271 = vsel %vm3919, %v3908, 0.0
        %4272 = vadd.xlane.f32.xlu0 %v4271
        %v4273 = vpop.xlane.xlu0 %4272
        %v4274 = vsel %vm3919, %v3909, 0.0
        %4275 = vadd.xlane.f32.xlu0 %v4274
        %v4276 = vpop.xlane.xlu0 %4275
        %v4277 = vsel %vm3919, %v3910, 0.0
        %4278 = vadd.xlane.f32.xlu0 %v4277
        %v4279 = vpop.xlane.xlu0 %4278
        %v4280 = vsel %vm3919, %v3911, 0.0
        %4281 = vadd.xlane.f32.xlu0 %v4280
        %v4282 = vpop.xlane.xlu0 %4281
        %v4283 = vsel %vm3919, %v3912, 0.0
        %4284 = vadd.xlane.f32.xlu0 %v4283
        %v4285 = vpop.xlane.xlu0 %4284
        %v4286 = vsel %vm3919, %v3913, 0.0
        %4287 = vadd.xlane.f32.xlu0 %v4286
        %v4288 = vpop.xlane.xlu0 %4287
        %v4289 = vsel %vm3919, %v3914, 0.0
        %4290 = vadd.xlane.f32.xlu0 %v4289
        %v4291 = vpop.xlane.xlu0 %4290
        %v4292 = vsel %vm3919, %v3915, 0.0
        %4293 = vadd.xlane.f32.xlu0 %v4292
        %v4294 = vpop.xlane.xlu0 %4293
        %v4295 = vsel %vm3919, %v3916, 0.0
        %4296 = vadd.xlane.f32.xlu0 %v4295
        %v4297 = vpop.xlane.xlu0 %4296
        %v4298 = vsel %vm3919, %v3917, 0.0
        %4299 = vadd.xlane.f32.xlu0 %v4298
        %v4300 = vpop.xlane.xlu0 %4299
        %v4301 = vsel %vm3919, %v3918, 0.0
        %4302 = vadd.xlane.f32.xlu0 %v4301
        %v4303 = vpop.xlane.xlu0 %4302
        %v4304 = vld [vmem:[#allocation2] sm:$0x1]
        %v4306 = vlaneseq
        %v4307 = vshrl.u32 %v4306, 7
        %v4308 = vsub.s32 0, %v4307
        %v4309 = vrot.slane %v4304, %v4308
        %v4311 = vadd.f32 %v3922, %v4309
        %v4312 = vadd.f32 %v3925, %v4309
        %v4313 = vadd.f32 %v3928, %v4309
        %v4314 = vadd.f32 %v3931, %v4309
        %v4315 = vadd.f32 %v3934, %v4309
        %v4316 = vadd.f32 %v3937, %v4309
        %v4317 = vadd.f32 %v3940, %v4309
        %v4318 = vadd.f32 %v3943, %v4309
        %v4319 = vadd.f32 %v3946, %v4309
        %v4320 = vadd.f32 %v3949, %v4309
        %v4321 = vadd.f32 %v3952, %v4309
        %v4322 = vadd.f32 %v3955, %v4309
        %v4323 = vadd.f32 %v3958, %v4309
        %v4324 = vadd.f32 %v3961, %v4309
        %v4325 = vadd.f32 %v3964, %v4309
        %v4326 = vadd.f32 %v3967, %v4309
        %v4327 = vadd.f32 %v3970, %v4309
        %v4328 = vadd.f32 %v3973, %v4309
        %v4329 = vadd.f32 %v3976, %v4309
        %v4330 = vadd.f32 %v3979, %v4309
        %v4331 = vadd.f32 %v3982, %v4309
        %v4332 = vadd.f32 %v3985, %v4309
        %v4333 = vadd.f32 %v3988, %v4309
        %v4334 = vadd.f32 %v3991, %v4309
        %v4335 = vadd.f32 %v3994, %v4309
        %v4336 = vadd.f32 %v3997, %v4309
        %v4337 = vadd.f32 %v4000, %v4309
        %v4338 = vadd.f32 %v4003, %v4309
        %v4339 = vadd.f32 %v4006, %v4309
        %v4340 = vadd.f32 %v4009, %v4309
        %v4341 = vadd.f32 %v4012, %v4309
        %v4342 = vadd.f32 %v4015, %v4309
        %v4343 = vadd.f32 %v4018, %v4309
        %v4344 = vadd.f32 %v4021, %v4309
        %v4345 = vadd.f32 %v4024, %v4309
        %v4346 = vadd.f32 %v4027, %v4309
        %v4347 = vadd.f32 %v4030, %v4309
        %v4348 = vadd.f32 %v4033, %v4309
        %v4349 = vadd.f32 %v4036, %v4309
        %v4350 = vadd.f32 %v4039, %v4309
        %v4351 = vadd.f32 %v4042, %v4309
        %v4352 = vadd.f32 %v4045, %v4309
        %v4353 = vadd.f32 %v4048, %v4309
        %v4354 = vadd.f32 %v4051, %v4309
        %v4355 = vadd.f32 %v4054, %v4309
        %v4356 = vadd.f32 %v4057, %v4309
        %v4357 = vadd.f32 %v4060, %v4309
        %v4358 = vadd.f32 %v4063, %v4309
        %v4359 = vadd.f32 %v4066, %v4309
        %v4360 = vadd.f32 %v4069, %v4309
        %v4361 = vadd.f32 %v4072, %v4309
        %v4362 = vadd.f32 %v4075, %v4309
        %v4363 = vadd.f32 %v4078, %v4309
        %v4364 = vadd.f32 %v4081, %v4309
        %v4365 = vadd.f32 %v4084, %v4309
        %v4366 = vadd.f32 %v4087, %v4309
        %v4367 = vadd.f32 %v4090, %v4309
        %v4368 = vadd.f32 %v4093, %v4309
        %v4369 = vadd.f32 %v4096, %v4309
        %v4370 = vadd.f32 %v4099, %v4309
        %v4371 = vadd.f32 %v4102, %v4309
        %v4372 = vadd.f32 %v4105, %v4309
        %v4373 = vadd.f32 %v4108, %v4309
        %v4374 = vadd.f32 %v4111, %v4309
        %v4375 = vadd.f32 %v4114, %v4309
        %v4376 = vadd.f32 %v4117, %v4309
        %v4377 = vadd.f32 %v4120, %v4309
        %v4378 = vadd.f32 %v4123, %v4309
        %v4379 = vadd.f32 %v4126, %v4309
        %v4380 = vadd.f32 %v4129, %v4309
        %v4381 = vadd.f32 %v4132, %v4309
        %v4382 = vadd.f32 %v4135, %v4309
        %v4383 = vadd.f32 %v4138, %v4309
        %v4384 = vadd.f32 %v4141, %v4309
        %v4385 = vadd.f32 %v4144, %v4309
        %v4386 = vadd.f32 %v4147, %v4309
        %v4387 = vadd.f32 %v4150, %v4309
        %v4388 = vadd.f32 %v4153, %v4309
        %v4389 = vadd.f32 %v4156, %v4309
        %v4390 = vadd.f32 %v4159, %v4309
        %v4391 = vadd.f32 %v4162, %v4309
        %v4392 = vadd.f32 %v4165, %v4309
        %v4393 = vadd.f32 %v4168, %v4309
        %v4394 = vadd.f32 %v4171, %v4309
        %v4395 = vadd.f32 %v4174, %v4309
        %v4396 = vadd.f32 %v4177, %v4309
        %v4397 = vadd.f32 %v4180, %v4309
        %v4398 = vadd.f32 %v4183, %v4309
        %v4399 = vadd.f32 %v4186, %v4309
        %v4400 = vadd.f32 %v4189, %v4309
        %v4401 = vadd.f32 %v4192, %v4309
        %v4402 = vadd.f32 %v4195, %v4309
        %v4403 = vadd.f32 %v4198, %v4309
        %v4404 = vadd.f32 %v4201, %v4309
        %v4405 = vadd.f32 %v4204, %v4309
        %v4406 = vadd.f32 %v4207, %v4309
        %v4407 = vadd.f32 %v4210, %v4309
        %v4408 = vadd.f32 %v4213, %v4309
        %v4409 = vadd.f32 %v4216, %v4309
        %v4410 = vadd.f32 %v4219, %v4309
        %v4411 = vadd.f32 %v4222, %v4309
        %v4412 = vadd.f32 %v4225, %v4309
        %v4413 = vadd.f32 %v4228, %v4309
        %v4414 = vadd.f32 %v4231, %v4309
        %v4415 = vadd.f32 %v4234, %v4309
        %v4416 = vadd.f32 %v4237, %v4309
        %v4417 = vadd.f32 %v4240, %v4309
        %v4418 = vadd.f32 %v4243, %v4309
        %v4419 = vadd.f32 %v4246, %v4309
        %v4420 = vadd.f32 %v4249, %v4309
        %v4421 = vadd.f32 %v4252, %v4309
        %v4422 = vadd.f32 %v4255, %v4309
        %v4423 = vadd.f32 %v4258, %v4309
        %v4424 = vadd.f32 %v4261, %v4309
        %v4425 = vadd.f32 %v4264, %v4309
        %v4426 = vadd.f32 %v4267, %v4309
        %v4427 = vadd.f32 %v4270, %v4309
        %v4428 = vadd.f32 %v4273, %v4309
        %v4429 = vadd.f32 %v4276, %v4309
        %v4430 = vadd.f32 %v4279, %v4309
        %v4431 = vadd.f32 %v4282, %v4309
        %v4432 = vadd.f32 %v4285, %v4309
        %v4433 = vadd.f32 %v4288, %v4309
        %v4434 = vadd.f32 %v4291, %v4309
        %v4435 = vadd.f32 %v4294, %v4309
        %v4436 = vadd.f32 %v4297, %v4309
        %v4437 = vadd.f32 %v4300, %v4309
        %v4438 = vadd.f32 %v4303, %v4309
        %vm4439 = vcmask 7168
        %4440 = vst.msk [vmem:[%s416] sm:$0xff] %vm4439, %v4311
        %4441 = vst.msk [vmem:[%s416 + $0x8] sm:$0xff] %vm4439, %v4312
        %4442 = vst.msk [vmem:[%s416 + $0x10] sm:$0xff] %vm4439, %v4313
        %4443 = vst.msk [vmem:[%s416 + $0x18] sm:$0xff] %vm4439, %v4314
        %4444 = vst.msk [vmem:[%s416 + $0x20] sm:$0xff] %vm4439, %v4315
        %4445 = vst.msk [vmem:[%s416 + $0x28] sm:$0xff] %vm4439, %v4316
        %4446 = vst.msk [vmem:[%s416 + $0x30] sm:$0xff] %vm4439, %v4317
        %4447 = vst.msk [vmem:[%s416 + $0x38] sm:$0xff] %vm4439, %v4318
        %4448 = vst.msk [vmem:[%s416 + $0x40] sm:$0xff] %vm4439, %v4319
        %4449 = vst.msk [vmem:[%s416 + $0x48] sm:$0xff] %vm4439, %v4320
        %4450 = vst.msk [vmem:[%s416 + $0x50] sm:$0xff] %vm4439, %v4321
        %4451 = vst.msk [vmem:[%s416 + $0x58] sm:$0xff] %vm4439, %v4322
        %4452 = vst.msk [vmem:[%s416 + $0x60] sm:$0xff] %vm4439, %v4323
        %4453 = vst.msk [vmem:[%s416 + $0x68] sm:$0xff] %vm4439, %v4324
        %4454 = vst.msk [vmem:[%s416 + $0x70] sm:$0xff] %vm4439, %v4325
        %4455 = vst.msk [vmem:[%s416 + $0x78] sm:$0xff] %vm4439, %v4326
        %4456 = vst.msk [vmem:[%s416 + $0x80] sm:$0xff] %vm4439, %v4327
        %4457 = vst.msk [vmem:[%s416 + $0x88] sm:$0xff] %vm4439, %v4328
        %4458 = vst.msk [vmem:[%s416 + $0x90] sm:$0xff] %vm4439, %v4329
        %4459 = vst.msk [vmem:[%s416 + $0x98] sm:$0xff] %vm4439, %v4330
        %4460 = vst.msk [vmem:[%s416 + $0xa0] sm:$0xff] %vm4439, %v4331
        %4461 = vst.msk [vmem:[%s416 + $0xa8] sm:$0xff] %vm4439, %v4332
        %4462 = vst.msk [vmem:[%s416 + $0xb0] sm:$0xff] %vm4439, %v4333
        %4463 = vst.msk [vmem:[%s416 + $0xb8] sm:$0xff] %vm4439, %v4334
        %4464 = vst.msk [vmem:[%s416 + $0xc0] sm:$0xff] %vm4439, %v4335
        %4465 = vst.msk [vmem:[%s416 + $0xc8] sm:$0xff] %vm4439, %v4336
        %4466 = vst.msk [vmem:[%s416 + $0xd0] sm:$0xff] %vm4439, %v4337
        %4467 = vst.msk [vmem:[%s416 + $0xd8] sm:$0xff] %vm4439, %v4338
        %4468 = vst.msk [vmem:[%s416 + $0xe0] sm:$0xff] %vm4439, %v4339
        %4469 = vst.msk [vmem:[%s416 + $0xe8] sm:$0xff] %vm4439, %v4340
        %4470 = vst.msk [vmem:[%s416 + $0xf0] sm:$0xff] %vm4439, %v4341
        %4471 = vst.msk [vmem:[%s416 + $0xf8] sm:$0xff] %vm4439, %v4342
        %4472 = vst.msk [vmem:[%s416 + $0x100] sm:$0xff] %vm4439, %v4343
        %4473 = vst.msk [vmem:[%s416 + $0x108] sm:$0xff] %vm4439, %v4344
        %4474 = vst.msk [vmem:[%s416 + $0x110] sm:$0xff] %vm4439, %v4345
        %4475 = vst.msk [vmem:[%s416 + $0x118] sm:$0xff] %vm4439, %v4346
        %4476 = vst.msk [vmem:[%s416 + $0x120] sm:$0xff] %vm4439, %v4347
        %4477 = vst.msk [vmem:[%s416 + $0x128] sm:$0xff] %vm4439, %v4348
        %4478 = vst.msk [vmem:[%s416 + $0x130] sm:$0xff] %vm4439, %v4349
        %4479 = vst.msk [vmem:[%s416 + $0x138] sm:$0xff] %vm4439, %v4350
        %4480 = vst.msk [vmem:[%s416 + $0x140] sm:$0xff] %vm4439, %v4351
        %4481 = vst.msk [vmem:[%s416 + $0x148] sm:$0xff] %vm4439, %v4352
        %4482 = vst.msk [vmem:[%s416 + $0x150] sm:$0xff] %vm4439, %v4353
        %4483 = vst.msk [vmem:[%s416 + $0x158] sm:$0xff] %vm4439, %v4354
        %4484 = vst.msk [vmem:[%s416 + $0x160] sm:$0xff] %vm4439, %v4355
        %4485 = vst.msk [vmem:[%s416 + $0x168] sm:$0xff] %vm4439, %v4356
        %4486 = vst.msk [vmem:[%s416 + $0x170] sm:$0xff] %vm4439, %v4357
        %4487 = vst.msk [vmem:[%s416 + $0x178] sm:$0xff] %vm4439, %v4358
        %4488 = vst.msk [vmem:[%s416 + $0x180] sm:$0xff] %vm4439, %v4359
        %4489 = vst.msk [vmem:[%s416 + $0x188] sm:$0xff] %vm4439, %v4360
        %4490 = vst.msk [vmem:[%s416 + $0x190] sm:$0xff] %vm4439, %v4361
        %4491 = vst.msk [vmem:[%s416 + $0x198] sm:$0xff] %vm4439, %v4362
        %4492 = vst.msk [vmem:[%s416 + $0x1a0] sm:$0xff] %vm4439, %v4363
        %4493 = vst.msk [vmem:[%s416 + $0x1a8] sm:$0xff] %vm4439, %v4364
        %4494 = vst.msk [vmem:[%s416 + $0x1b0] sm:$0xff] %vm4439, %v4365
        %4495 = vst.msk [vmem:[%s416 + $0x1b8] sm:$0xff] %vm4439, %v4366
        %4496 = vst.msk [vmem:[%s416 + $0x1c0] sm:$0xff] %vm4439, %v4367
        %4497 = vst.msk [vmem:[%s416 + $0x1c8] sm:$0xff] %vm4439, %v4368
        %4498 = vst.msk [vmem:[%s416 + $0x1d0] sm:$0xff] %vm4439, %v4369
        %4499 = vst.msk [vmem:[%s416 + $0x1d8] sm:$0xff] %vm4439, %v4370
        %4500 = vst.msk [vmem:[%s416 + $0x1e0] sm:$0xff] %vm4439, %v4371
        %4501 = vst.msk [vmem:[%s416 + $0x1e8] sm:$0xff] %vm4439, %v4372
        %4502 = vst.msk [vmem:[%s416 + $0x1f0] sm:$0xff] %vm4439, %v4373
        %4503 = vst.msk [vmem:[%s416 + $0x1f8] sm:$0xff] %vm4439, %v4374
        %4504 = vst.msk [vmem:[%s416 + $0x200] sm:$0xff] %vm4439, %v4375
        %4505 = vst.msk [vmem:[%s416 + $0x208] sm:$0xff] %vm4439, %v4376
        %4506 = vst.msk [vmem:[%s416 + $0x210] sm:$0xff] %vm4439, %v4377
        %4507 = vst.msk [vmem:[%s416 + $0x218] sm:$0xff] %vm4439, %v4378
        %4508 = vst.msk [vmem:[%s416 + $0x220] sm:$0xff] %vm4439, %v4379
        %4509 = vst.msk [vmem:[%s416 + $0x228] sm:$0xff] %vm4439, %v4380
        %4510 = vst.msk [vmem:[%s416 + $0x230] sm:$0xff] %vm4439, %v4381
        %4511 = vst.msk [vmem:[%s416 + $0x238] sm:$0xff] %vm4439, %v4382
        %4512 = vst.msk [vmem:[%s416 + $0x240] sm:$0xff] %vm4439, %v4383
        %4513 = vst.msk [vmem:[%s416 + $0x248] sm:$0xff] %vm4439, %v4384
        %4514 = vst.msk [vmem:[%s416 + $0x250] sm:$0xff] %vm4439, %v4385
        %4515 = vst.msk [vmem:[%s416 + $0x258] sm:$0xff] %vm4439, %v4386
        %4516 = vst.msk [vmem:[%s416 + $0x260] sm:$0xff] %vm4439, %v4387
        %4517 = vst.msk [vmem:[%s416 + $0x268] sm:$0xff] %vm4439, %v4388
        %4518 = vst.msk [vmem:[%s416 + $0x270] sm:$0xff] %vm4439, %v4389
        %4519 = vst.msk [vmem:[%s416 + $0x278] sm:$0xff] %vm4439, %v4390
        %4520 = vst.msk [vmem:[%s416 + $0x280] sm:$0xff] %vm4439, %v4391
        %4521 = vst.msk [vmem:[%s416 + $0x288] sm:$0xff] %vm4439, %v4392
        %4522 = vst.msk [vmem:[%s416 + $0x290] sm:$0xff] %vm4439, %v4393
        %4523 = vst.msk [vmem:[%s416 + $0x298] sm:$0xff] %vm4439, %v4394
        %4524 = vst.msk [vmem:[%s416 + $0x2a0] sm:$0xff] %vm4439, %v4395
        %4525 = vst.msk [vmem:[%s416 + $0x2a8] sm:$0xff] %vm4439, %v4396
        %4526 = vst.msk [vmem:[%s416 + $0x2b0] sm:$0xff] %vm4439, %v4397
        %4527 = vst.msk [vmem:[%s416 + $0x2b8] sm:$0xff] %vm4439, %v4398
        %4528 = vst.msk [vmem:[%s416 + $0x2c0] sm:$0xff] %vm4439, %v4399
        %4529 = vst.msk [vmem:[%s416 + $0x2c8] sm:$0xff] %vm4439, %v4400
        %4530 = vst.msk [vmem:[%s416 + $0x2d0] sm:$0xff] %vm4439, %v4401
        %4531 = vst.msk [vmem:[%s416 + $0x2d8] sm:$0xff] %vm4439, %v4402
        %4532 = vst.msk [vmem:[%s416 + $0x2e0] sm:$0xff] %vm4439, %v4403
        %4533 = vst.msk [vmem:[%s416 + $0x2e8] sm:$0xff] %vm4439, %v4404
        %4534 = vst.msk [vmem:[%s416 + $0x2f0] sm:$0xff] %vm4439, %v4405
        %4535 = vst.msk [vmem:[%s416 + $0x2f8] sm:$0xff] %vm4439, %v4406
        %4536 = vst.msk [vmem:[%s416 + $0x300] sm:$0xff] %vm4439, %v4407
        %4537 = vst.msk [vmem:[%s416 + $0x308] sm:$0xff] %vm4439, %v4408
        %4538 = vst.msk [vmem:[%s416 + $0x310] sm:$0xff] %vm4439, %v4409
        %4539 = vst.msk [vmem:[%s416 + $0x318] sm:$0xff] %vm4439, %v4410
        %4540 = vst.msk [vmem:[%s416 + $0x320] sm:$0xff] %vm4439, %v4411
        %4541 = vst.msk [vmem:[%s416 + $0x328] sm:$0xff] %vm4439, %v4412
        %4542 = vst.msk [vmem:[%s416 + $0x330] sm:$0xff] %vm4439, %v4413
        %4543 = vst.msk [vmem:[%s416 + $0x338] sm:$0xff] %vm4439, %v4414
        %4544 = vst.msk [vmem:[%s416 + $0x340] sm:$0xff] %vm4439, %v4415
        %4545 = vst.msk [vmem:[%s416 + $0x348] sm:$0xff] %vm4439, %v4416
        %4546 = vst.msk [vmem:[%s416 + $0x350] sm:$0xff] %vm4439, %v4417
        %4547 = vst.msk [vmem:[%s416 + $0x358] sm:$0xff] %vm4439, %v4418
        %4548 = vst.msk [vmem:[%s416 + $0x360] sm:$0xff] %vm4439, %v4419
        %4549 = vst.msk [vmem:[%s416 + $0x368] sm:$0xff] %vm4439, %v4420
        %4550 = vst.msk [vmem:[%s416 + $0x370] sm:$0xff] %vm4439, %v4421
        %4551 = vst.msk [vmem:[%s416 + $0x378] sm:$0xff] %vm4439, %v4422
        %4552 = vst.msk [vmem:[%s416 + $0x380] sm:$0xff] %vm4439, %v4423
        %4553 = vst.msk [vmem:[%s416 + $0x388] sm:$0xff] %vm4439, %v4424
        %4554 = vst.msk [vmem:[%s416 + $0x390] sm:$0xff] %vm4439, %v4425
        %4555 = vst.msk [vmem:[%s416 + $0x398] sm:$0xff] %vm4439, %v4426
        %4556 = vst.msk [vmem:[%s416 + $0x3a0] sm:$0xff] %vm4439, %v4427
        %4557 = vst.msk [vmem:[%s416 + $0x3a8] sm:$0xff] %vm4439, %v4428
        %4558 = vst.msk [vmem:[%s416 + $0x3b0] sm:$0xff] %vm4439, %v4429
        %4559 = vst.msk [vmem:[%s416 + $0x3b8] sm:$0xff] %vm4439, %v4430
        %4560 = vst.msk [vmem:[%s416 + $0x3c0] sm:$0xff] %vm4439, %v4431
        %4561 = vst.msk [vmem:[%s416 + $0x3c8] sm:$0xff] %vm4439, %v4432
        %4562 = vst.msk [vmem:[%s416 + $0x3d0] sm:$0xff] %vm4439, %v4433
        %4563 = vst.msk [vmem:[%s416 + $0x3d8] sm:$0xff] %vm4439, %v4434
        %4564 = vst.msk [vmem:[%s416 + $0x3e0] sm:$0xff] %vm4439, %v4435
        %4565 = vst.msk [vmem:[%s416 + $0x3e8] sm:$0xff] %vm4439, %v4436
        %4566 = vst.msk [vmem:[%s416 + $0x3f0] sm:$0xff] %vm4439, %v4437
        %4567 = vst.msk [vmem:[%s416 + $0x3f8] sm:$0xff] %vm4439, %v4438
        %s4568 = smul.u32 128, %s26
        %p4569 = scmp.lt.s32.totalorder %s4568, 511
        %s4570 = scalar_select %p4569, %s4568, 511
        %s4571 = smul.addr %s4570, 8
        %s4572 = scalar_lea.vmem %s9, %s4571
        // Predicated region
        $region81: #{tpu_custom_call.1} parent=55 // pred_check
          %p4573 = pneg %p238
        $region82: #{tpu_custom_call.1} parent=55 // pred_check_branch
          %4575 = sbr.rel (%p4573) target = $region84
        $region83: #{tpu_custom_call.1} parent=55 // pred_region
          %s4576 = smul.u32 128, %s26
        $region84: #{tpu_custom_call.1} parent=55 // pred_fallthru
          _
      $region56: #{tpu_custom_call.1} parent=5 // pred_fallthru
        _
      %p4577 = scmp.le.s32.totalorder 2, %s21
      // Predicated region
      $region85: #{tpu_custom_call.1} parent=5 // pred_check
        %p4578 = pneg %p4577
      $region86: #{tpu_custom_call.1} parent=5 // pred_check_branch
        %4580 = sbr.rel (%p4578) target = $region88
      $region87: #{tpu_custom_call.1} parent=5 // pred_region
        %s4581 = ssub.s32 %s21, 2
        // Predicated region
        $region89: #{tpu_custom_call.1} parent=87 // pred_check
          %p4582 = pneg %p244
        $region90: #{tpu_custom_call.1} parent=87 // pred_check_branch
          %4584 = sbr.rel (%p4582) target = $region92
        $region91: #{tpu_custom_call.1} parent=87 // pred_region
          %s4585 = smul.u32 128, %s27
          %p4586 = scmp.lt.s32.totalorder %s4585, 511
          %s4587 = scalar_select %p4586, %s4585, 511
          %s4588 = smul.addr %s4587, 8
          %s4589 = scalar_lea.vmem %s9, %s4588
        $region92: #{tpu_custom_call.1} parent=87 // pred_fallthru
          _
      $region88: #{tpu_custom_call.1} parent=5 // pred_fallthru
        _
    $region6: #{tpu_custom_call.1} parent=1 // loop_footer
      %s25 = sadd.s32 1, %s21
    $region7: #{tpu_custom_call.1} parent=1 // loop_footer_branch
      %20 = sbr.rel target = $region3
    $region8: #{tpu_custom_call.1} parent=1 // loop_exit
      _
    %4590 = vsyncpa [#allocation4], 1
    %s4591 = scalar_lea.sflag [#allocation4], 1
    %4592 = vsyncpa %s4591, 1
    %4593 = vsyncpa [#allocation6], 1
    %4594 = vsyncpa [#allocation9], 1
    %4595 = vsyncpa [#allocation12], 1

</llo_original>
